<compile_context>
chip_gen: v7x
topology: tpu7x:2x2x1
jax: 0.10.0
libtpu: 0.0.40
codegen_flags: <defaults>
</compile_context>

<pallas_src>
import functools

import jax
import jax.numpy as jnp
import numpy as np
from jax.experimental import pallas as pl
from jax.experimental.pallas import tpu as pltpu

EPS = 1e-5                       # nn.BatchNorm2d default eps
VMEM_LIMIT = 32 * 1024 * 1024    # safe on v5e/v6e/v7x


def _compiler_params():
    return pltpu.CompilerParams(
        dimension_semantics=("parallel", "parallel"),
        vmem_limit_bytes=VMEM_LIMIT,
    )


# ---------------------------------------------------------------- conv kernel

def _conv_bn_stats_kernel(*refs, pool_in, fuse_in, th, h_out, w_out, cin, cout):
    """3x3 conv over one haloed row tile.

    Optionally: 2x2 max-pool of the incoming tile (pool_in) and the previous
    layer's BN+ReLU (fuse_in).  Emits the raw (pre-BN) conv output plus the
    per-tile per-channel (sum, sum-of-squares) needed for this conv's BN.
    """
    if fuse_in:
        xm_ref, xn_ref, w_ref, s_ref, b_ref, raw_ref, st_ref = refs
    else:
        xm_ref, xn_ref, w_ref, raw_ref, st_ref = refs

    # Haloed tile: main rows of this tile + first rows of the next tile.
    x = jnp.concatenate([xm_ref[...], xn_ref[...]], axis=0)

    if pool_in:
        # (2*th+4, w_out+2, 2*cin) -> 2x2 max-pool -> (th+2, w_out+2, cin)
        x = x.reshape(th + 2, 2, w_out + 2, 2 * cin)
        x = jnp.max(x, axis=1)                          # row-pair max
        x = jnp.maximum(x[..., :cin], x[..., cin:])     # col-pair max (lane slice)

    if fuse_in:
        # Previous conv's BatchNorm + ReLU, fused into this conv's input stage.
        x = jnp.maximum(x * s_ref[...] + b_ref[...], 0.0)
        # Zero padding must be zero *after* BN+ReLU -> mask the halo back to 0.
        i = pl.program_id(1)
        row = jax.lax.broadcasted_iota(jnp.int32, x.shape, 0) + i * th
        col = jax.lax.broadcasted_iota(jnp.int32, x.shape, 1)
        interior = (row >= 1) & (row <= h_out) & (col >= 1) & (col <= w_out)
        x = jnp.where(interior, x, 0.0)

    w = w_ref[...]                                      # (3, 3, cin, cout), bf16
    acc = jnp.zeros((th * w_out, cout), jnp.float32)
    for dy in range(3):
        for dx in range(3):
            patch = (x[dy:dy + th, dx:dx + w_out, :]
                     .reshape(th * w_out, cin)
                     .astype(jnp.bfloat16))             # bf16 MXU operands
            acc = acc + jnp.dot(patch, w[dy, dx],
                                preferred_element_type=jnp.float32)

    raw_ref[...] = acc.reshape(th, w_out, cout)
    # Per-tile partial BatchNorm statistics (per output channel).
    st_ref[0:1, :] = jnp.sum(acc, axis=0, keepdims=True)
    st_ref[1:2, :] = jnp.sum(acc * acc, axis=0, keepdims=True)


def _pick_th(h_out, w_out, cin, cout, row_mult, budget_bytes=4 << 20):
    """Largest even divisor of h_out whose tile stays within a VMEM budget."""
    assert h_out % 2 == 0, "UNet spatial dims assumed even"
    per_row = 4 * w_out * (2 * row_mult * cin + 3 * cout)  # rough f32 bytes/output row
    for d in range(h_out, 1, -1):
        if h_out % d == 0 and d % 2 == 0 and d * per_row <= budget_bytes:
            return d
    return 2


def conv3x3_bn_stats(x_nhwc, w_hwio, scale_in=None, shift_in=None, *, pool_input=False):
    """3x3 'SAME' conv (optionally preceded by a fused 2x2 max-pool and by the
    previous layer's fused BN+ReLU).  Returns (raw pre-BN output, per-tile stats)."""
    N, H, W, Cin = x_nhwc.shape
    Cout = w_hwio.shape[-1]
    fuse_in = scale_in is not None

    if pool_input:
        h_out, w_out, row_mult = H // 2, W // 2, 2
        xp = jnp.pad(x_nhwc, ((0, 0), (2, 2), (2, 2), (0, 0)))
        xp = xp.reshape(N, H + 4, w_out + 2, 2 * Cin)   # free reshape: W-pairs on lanes
    else:
        h_out, w_out, row_mult = H, W, 1
        xp = jnp.pad(x_nhwc, ((0, 0), (1, 1), (1, 1), (0, 0)))

    th = _pick_th(h_out, w_out, Cin, Cout, row_mult)
    n_tiles = h_out // th
    wp, cc = xp.shape[2], xp.shape[3]

    main_spec = pl.BlockSpec((None, row_mult * th, wp, cc),
                             lambda n, i: (n, i, 0, 0))
    halo_spec = pl.BlockSpec((None, 2 * row_mult, wp, cc),
                             lambda n, i, _th=th: (n, (i + 1) * (_th // 2), 0, 0))
    w_spec = pl.BlockSpec((3, 3, Cin, Cout), lambda n, i: (0, 0, 0, 0))

    in_specs = [main_spec, halo_spec, w_spec]
    args = [xp, xp, w_hwio.astype(jnp.bfloat16)]
    if fuse_in:
        aff_spec = pl.BlockSpec((1, 1, Cin), lambda n, i: (0, 0, 0))
        in_specs += [aff_spec, aff_spec]
        args += [scale_in.reshape(1, 1, Cin), shift_in.reshape(1, 1, Cin)]

    kernel = functools.partial(
        _conv_bn_stats_kernel, pool_in=pool_input, fuse_in=fuse_in,
        th=th, h_out=h_out, w_out=w_out, cin=Cin, cout=Cout)

    raw, stats = pl.pallas_call(
        kernel,
        grid=(N, n_tiles),
        in_specs=in_specs,
        out_specs=(
            pl.BlockSpec((None, th, w_out, Cout), lambda n, i: (n, i, 0, 0)),
            pl.BlockSpec((None, None, 2, Cout), lambda n, i: (n, i, 0, 0)),
        ),
        out_shape=(
            jax.ShapeDtypeStruct((N, h_out, w_out, Cout), jnp.float32),
            jax.ShapeDtypeStruct((N, n_tiles, 2, Cout), jnp.float32),
        ),
        compiler_params=_compiler_params(),
    )(*args)
    return raw, stats


def _bn_affine(stats, gamma, beta, count):
    """Reduce per-tile (sum, sumsq) into the training-mode BN affine."""
    s = jnp.sum(stats[:, :, 0, :], axis=(0, 1))
    ss = jnp.sum(stats[:, :, 1, :], axis=(0, 1))
    mean = s / count
    var = ss / count - mean * mean                      # biased variance (training BN)
    scale = gamma * jax.lax.rsqrt(var + EPS)
    shift = beta - mean * scale
    return scale, shift


# ---------------------------------------------------------------- final BN+ReLU

def _affine_relu_kernel(x_ref, s_ref, b_ref, o_ref):
    o_ref[...] = jnp.maximum(x_ref[...] * s_ref[...] + b_ref[...], 0.0)


def _pick_rows_lane_dense(h, row_bytes, budget_bytes=4 << 20):
    cands = [d for d in range(h, 0, -1)
             if h % d == 0 and (d % 8 == 0 or d == h)]
    for d in cands:
        if d * row_bytes <= budget_bytes:
            return d
    return cands[-1]


def affine_relu(raw, scale, shift):
    N, H, W, C = raw.shape
    x2 = raw.reshape(N, H, W * C)                       # lane-dense view (free reshape)
    s2 = jnp.tile(scale, W).reshape(1, W * C)
    b2 = jnp.tile(shift, W).reshape(1, W * C)
    th = _pick_rows_lane_dense(H, 4 * W * C)
    out = pl.pallas_call(
        _affine_relu_kernel,
        grid=(N, H // th),
        in_specs=[pl.BlockSpec((None, th, W * C), lambda n, i: (n, i, 0)),
                  pl.BlockSpec((1, W * C), lambda n, i: (0, 0)),
                  pl.BlockSpec((1, W * C), lambda n, i: (0, 0))],
        out_specs=pl.BlockSpec((None, th, W * C), lambda n, i: (n, i, 0)),
        out_shape=jax.ShapeDtypeStruct((N, H, W * C), jnp.float32),
        compiler_params=_compiler_params(),
    )(x2, s2, b2)
    return out.reshape(N, H, W, C)


# ---------------------------------------------------------------- DecodeBlock

def init_decode_block_params(key, in_ch, out_ch):
    ks = jax.random.split(key, 8)

    def conv_w(k, cin, cout):
        bound = 1.0 / np.sqrt(cin * 9)                  # PyTorch default init scale
        return jax.random.uniform(k, (3, 3, cin, cout), jnp.float32, -bound, bound)

    return {
        "w1": conv_w(ks[0], in_ch, out_ch),
        "b1": jax.random.uniform(ks[1], (out_ch,), jnp.float32, -0.1, 0.1),
        "g1": 1.0 + 0.1 * jax.random.normal(ks[2], (out_ch,), jnp.float32),
        "beta1": 0.1 * jax.random.normal(ks[3], (out_ch,), jnp.float32),
        "w2": conv_w(ks[4], out_ch, out_ch),
        "b2": jax.random.uniform(ks[5], (out_ch,), jnp.float32, -0.1, 0.1),
        "g2": 1.0 + 0.1 * jax.random.normal(ks[6], (out_ch,), jnp.float32),
        "beta2": 0.1 * jax.random.normal(ks[7], (out_ch,), jnp.float32),
    }


@functools.partial(jax.jit, static_argnames=("first",))
def decode_block_forward(params, x_nchw, first=False):
    x = jnp.transpose(x_nchw, (0, 2, 3, 1))             # NCHW -> NHWC

    # conv1 (with fused 2x2 max-pool unless `first`): raw output + BN batch stats.
    # NOTE: conv biases b1/b2 are not used by the kernels: training-mode BN's
    # mean subtraction cancels them exactly (the f32 reference keeps them).
    raw1, st1 = conv3x3_bn_stats(x, params["w1"], pool_input=not first)
    n, h1, w1, _ = raw1.shape
    scale1, shift1 = _bn_affine(st1, params["g1"], params["beta1"], n * h1 * w1)

    # conv2, with conv1's BN + ReLU fused into its input stage.
    raw2, st2 = conv3x3_bn_stats(raw1, params["w2"], scale1, shift1)
    scale2, shift2 = _bn_affine(st2, params["g2"], params["beta2"], n * h1 * w1)

    y = affine_relu(raw2, scale2, shift2)               # final BN + ReLU (lane-dense)
    return jnp.transpose(y, (0, 3, 1, 2))               # NHWC -> NCHW
    # TODO(synk): training-mode BN running_mean/running_var updates are not tracked.


# ---------------------------------------------------------------- pure-JAX reference

def _ref_conv_bn_relu(x, w, b, g, beta):
    y = jax.lax.conv_general_dilated(
        x, w, (1, 1), "SAME",
        dimension_numbers=("NHWC", "HWIO", "NHWC"),
        precision=jax.lax.Precision.HIGHEST) + b        # bias kept: cancelled by BN
    mean = jnp.mean(y, axis=(0, 1, 2), keepdims=True)
    var = jnp.mean((y - mean) ** 2, axis=(0, 1, 2), keepdims=True)
    y = (y - mean) * jax.lax.rsqrt(var + EPS) * g + beta
    return jnp.maximum(y, 0.0)


def _ref_forward(params, x_nchw, first=False):
    x = jnp.transpose(x_nchw, (0, 2, 3, 1))
    if not first:
        N, H, W, C = x.shape
        x = jnp.max(x.reshape(N, H // 2, 2, W // 2, 2, C), axis=(2, 4))
    x = _ref_conv_bn_relu(x, params["w1"], params["b1"], params["g1"], params["beta1"])
    x = _ref_conv_bn_relu(x, params["w2"], params["b2"], params["g2"], params["beta2"])
    return jnp.transpose(x, (0, 3, 1, 2))


# ---------------------------------------------------------------- main

if __name__ == "__main__":
    key = jax.random.PRNGKey(0)
    k_x, k_p = jax.random.split(key)

    in_ch, out_ch = 4, 8
    x = jax.random.normal(k_x, (2, in_ch, 16, 16), jnp.float32)   # NCHW like PyTorch
    params = init_decode_block_params(k_p, in_ch, out_ch)

    # first=False path (fused MaxPool + conv1/BN/ReLU, conv2/BN/ReLU)
    out = jax.block_until_ready(decode_block_forward(params, x, first=False))
    ref = _ref_forward(params, x, first=False)
    assert out.shape == (2, out_ch, 8, 8), out.shape
    err = np.max(np.abs(np.asarray(out) - np.asarray(ref)))
    assert np.allclose(np.asarray(out), np.asarray(ref), rtol=2e-2, atol=2e-2), err

    # first=True path (no MaxPool)
    out_first = jax.block_until_ready(decode_block_forward(params, x, first=True))
    ref_first = _ref_forward(params, x, first=True)
    assert out_first.shape == (2, out_ch, 16, 16), out_first.shape
    err = np.max(np.abs(np.asarray(out_first) - np.asarray(ref_first)))
    assert np.allclose(np.asarray(out_first), np.asarray(ref_first), rtol=2e-2, atol=2e-2), err

    print("KERNEL_OK")
</pallas_src>

<mosaic_0001>
module attributes {stable_mosaic.version = 11 : i64} {
  func.func @_conv_bn_stats_kernel(%arg0: i32, %arg1: i32, %arg2: memref<1x16x10x8xf32, #tpu.memory_space<vmem>>, %arg3: memref<1x4x10x8xf32, #tpu.memory_space<vmem>>, %arg4: memref<3x3x4x8xbf16, #tpu.memory_space<vmem>>, %arg5: memref<1x8x8x8xf32, #tpu.memory_space<vmem>>, %arg6: memref<1x1x2x8xf32, #tpu.memory_space<vmem>>) attributes {dimension_semantics = [#tpu.dimension_semantics<parallel>, #tpu.dimension_semantics<parallel>], iteration_bounds = array<i64: 2, 1>, scalar_prefetch = 0 : i64, scratch_operands = 0 : i64, tpu.core_type = #tpu.core_type<tc>, window_params = [{transform_indices = @transform_0, window_bounds = array<i64: 1, 16, 10, 8>}, {transform_indices = @transform_1, window_bounds = array<i64: 1, 4, 10, 8>}, {pipeline_mode = #tpu.pipeline_mode<synchronous>, transform_indices = @transform_2, window_bounds = array<i64: 3, 3, 4, 8>}, {transform_indices = @transform_3, window_bounds = array<i64: 1, 8, 8, 8>}, {transform_indices = @transform_4, window_bounds = array<i64: 1, 1, 2, 8>}]} {
    %c0 = arith.constant 0 : index
    %c0_0 = arith.constant 0 : index
    %c0_1 = arith.constant 0 : index
    %c0_2 = arith.constant 0 : index
    %0 = vector.load %arg2[%c0, %c0_0, %c0_1, %c0_2] : memref<1x16x10x8xf32, #tpu.memory_space<vmem>>, vector<1x16x10x8xf32>
    %1 = vector.shape_cast %0 : vector<1x16x10x8xf32> to vector<16x10x8xf32>
    %c0_3 = arith.constant 0 : index
    %c0_4 = arith.constant 0 : index
    %c0_5 = arith.constant 0 : index
    %c0_6 = arith.constant 0 : index
    %2 = vector.load %arg3[%c0_3, %c0_4, %c0_5, %c0_6] : memref<1x4x10x8xf32, #tpu.memory_space<vmem>>, vector<1x4x10x8xf32>
    %3 = vector.shape_cast %2 : vector<1x4x10x8xf32> to vector<4x10x8xf32>
    %4 = tpu.concatenate %1, %3 in 0 : vector<16x10x8xf32>, vector<4x10x8xf32> -> vector<20x10x8xf32>
    %5 = vector.shape_cast %4 : vector<20x10x8xf32> to vector<10x2x10x8xf32>
    %cst = arith.constant dense<0xFF800000> : vector<10x10x8xf32>
    %6 = vector.multi_reduction <maximumf>, %5, %cst [1] : vector<10x2x10x8xf32> to vector<10x10x8xf32>
    %7 = vector.extract_strided_slice %6 {offsets = [0, 0, 0], sizes = [10, 10, 4], strides = [1, 1, 1]} : vector<10x10x8xf32> to vector<10x10x4xf32>
    %8 = vector.extract_strided_slice %6 {offsets = [0, 0, 4], sizes = [10, 10, 4], strides = [1, 1, 1]} : vector<10x10x8xf32> to vector<10x10x4xf32>
    %9 = arith.maximumf %7, %8 : vector<10x10x4xf32>
    %c0_7 = arith.constant 0 : index
    %c0_8 = arith.constant 0 : index
    %c0_9 = arith.constant 0 : index
    %c0_10 = arith.constant 0 : index
    %10 = vector.load %arg4[%c0_7, %c0_8, %c0_9, %c0_10] : memref<3x3x4x8xbf16, #tpu.memory_space<vmem>>, vector<3x3x4x8xbf16>
    %cst_11 = arith.constant 0.000000e+00 : f32
    %11 = vector.broadcast %cst_11 : f32 to vector<64x8xf32>
    %12 = vector.extract_strided_slice %9 {offsets = [0, 0, 0], sizes = [8, 8, 4], strides = [1, 1, 1]} : vector<10x10x4xf32> to vector<8x8x4xf32>
    %13 = vector.shape_cast %12 : vector<8x8x4xf32> to vector<64x4xf32>
    %14 = arith.truncf %13 : vector<64x4xf32> to vector<64x4xbf16>
    %15 = vector.extract_strided_slice %10 {offsets = [0, 0, 0, 0], sizes = [1, 1, 4, 8], strides = [1, 1, 1, 1]} : vector<3x3x4x8xbf16> to vector<1x1x4x8xbf16>
    %16 = vector.shape_cast %15 : vector<1x1x4x8xbf16> to vector<4x8xbf16>
    %cst_12 = arith.constant dense<0.000000e+00> : vector<64x8xf32>
    %17 = tpu.matmul %14, %16, %cst_12 {dimension_numbers = #tpu.dot_dimension_numbers<[1], [0], [0], [1], [0, 0, 1, 1], [], []>} : vector<64x4xbf16>, vector<4x8xbf16>, vector<64x8xf32> -> vector<64x8xf32>
    %18 = arith.addf %11, %17 : vector<64x8xf32>
    %19 = vector.extract_strided_slice %9 {offsets = [0, 1, 0], sizes = [8, 8, 4], strides = [1, 1, 1]} : vector<10x10x4xf32> to vector<8x8x4xf32>
    %20 = vector.shape_cast %19 : vector<8x8x4xf32> to vector<64x4xf32>
    %21 = arith.truncf %20 : vector<64x4xf32> to vector<64x4xbf16>
    %22 = vector.extract_strided_slice %10 {offsets = [0, 1, 0, 0], sizes = [1, 1, 4, 8], strides = [1, 1, 1, 1]} : vector<3x3x4x8xbf16> to vector<1x1x4x8xbf16>
    %23 = vector.shape_cast %22 : vector<1x1x4x8xbf16> to vector<4x8xbf16>
    %cst_13 = arith.constant dense<0.000000e+00> : vector<64x8xf32>
    %24 = tpu.matmul %21, %23, %cst_13 {dimension_numbers = #tpu.dot_dimension_numbers<[1], [0], [0], [1], [0, 0, 1, 1], [], []>} : vector<64x4xbf16>, vector<4x8xbf16>, vector<64x8xf32> -> vector<64x8xf32>
    %25 = arith.addf %18, %24 : vector<64x8xf32>
    %26 = vector.extract_strided_slice %9 {offsets = [0, 2, 0], sizes = [8, 8, 4], strides = [1, 1, 1]} : vector<10x10x4xf32> to vector<8x8x4xf32>
    %27 = vector.shape_cast %26 : vector<8x8x4xf32> to vector<64x4xf32>
    %28 = arith.truncf %27 : vector<64x4xf32> to vector<64x4xbf16>
    %29 = vector.extract_strided_slice %10 {offsets = [0, 2, 0, 0], sizes = [1, 1, 4, 8], strides = [1, 1, 1, 1]} : vector<3x3x4x8xbf16> to vector<1x1x4x8xbf16>
    %30 = vector.shape_cast %29 : vector<1x1x4x8xbf16> to vector<4x8xbf16>
    %cst_14 = arith.constant dense<0.000000e+00> : vector<64x8xf32>
    %31 = tpu.matmul %28, %30, %cst_14 {dimension_numbers = #tpu.dot_dimension_numbers<[1], [0], [0], [1], [0, 0, 1, 1], [], []>} : vector<64x4xbf16>, vector<4x8xbf16>, vector<64x8xf32> -> vector<64x8xf32>
    %32 = arith.addf %25, %31 : vector<64x8xf32>
    %33 = vector.extract_strided_slice %9 {offsets = [1, 0, 0], sizes = [8, 8, 4], strides = [1, 1, 1]} : vector<10x10x4xf32> to vector<8x8x4xf32>
    %34 = vector.shape_cast %33 : vector<8x8x4xf32> to vector<64x4xf32>
    %35 = arith.truncf %34 : vector<64x4xf32> to vector<64x4xbf16>
    %36 = vector.extract_strided_slice %10 {offsets = [1, 0, 0, 0], sizes = [1, 1, 4, 8], strides = [1, 1, 1, 1]} : vector<3x3x4x8xbf16> to vector<1x1x4x8xbf16>
    %37 = vector.shape_cast %36 : vector<1x1x4x8xbf16> to vector<4x8xbf16>
    %cst_15 = arith.constant dense<0.000000e+00> : vector<64x8xf32>
    %38 = tpu.matmul %35, %37, %cst_15 {dimension_numbers = #tpu.dot_dimension_numbers<[1], [0], [0], [1], [0, 0, 1, 1], [], []>} : vector<64x4xbf16>, vector<4x8xbf16>, vector<64x8xf32> -> vector<64x8xf32>
    %39 = arith.addf %32, %38 : vector<64x8xf32>
    %40 = vector.extract_strided_slice %9 {offsets = [1, 1, 0], sizes = [8, 8, 4], strides = [1, 1, 1]} : vector<10x10x4xf32> to vector<8x8x4xf32>
    %41 = vector.shape_cast %40 : vector<8x8x4xf32> to vector<64x4xf32>
    %42 = arith.truncf %41 : vector<64x4xf32> to vector<64x4xbf16>
    %43 = vector.extract_strided_slice %10 {offsets = [1, 1, 0, 0], sizes = [1, 1, 4, 8], strides = [1, 1, 1, 1]} : vector<3x3x4x8xbf16> to vector<1x1x4x8xbf16>
    %44 = vector.shape_cast %43 : vector<1x1x4x8xbf16> to vector<4x8xbf16>
    %cst_16 = arith.constant dense<0.000000e+00> : vector<64x8xf32>
    %45 = tpu.matmul %42, %44, %cst_16 {dimension_numbers = #tpu.dot_dimension_numbers<[1], [0], [0], [1], [0, 0, 1, 1], [], []>} : vector<64x4xbf16>, vector<4x8xbf16>, vector<64x8xf32> -> vector<64x8xf32>
    %46 = arith.addf %39, %45 : vector<64x8xf32>
    %47 = vector.extract_strided_slice %9 {offsets = [1, 2, 0], sizes = [8, 8, 4], strides = [1, 1, 1]} : vector<10x10x4xf32> to vector<8x8x4xf32>
    %48 = vector.shape_cast %47 : vector<8x8x4xf32> to vector<64x4xf32>
    %49 = arith.truncf %48 : vector<64x4xf32> to vector<64x4xbf16>
    %50 = vector.extract_strided_slice %10 {offsets = [1, 2, 0, 0], sizes = [1, 1, 4, 8], strides = [1, 1, 1, 1]} : vector<3x3x4x8xbf16> to vector<1x1x4x8xbf16>
    %51 = vector.shape_cast %50 : vector<1x1x4x8xbf16> to vector<4x8xbf16>
    %cst_17 = arith.constant dense<0.000000e+00> : vector<64x8xf32>
    %52 = tpu.matmul %49, %51, %cst_17 {dimension_numbers = #tpu.dot_dimension_numbers<[1], [0], [0], [1], [0, 0, 1, 1], [], []>} : vector<64x4xbf16>, vector<4x8xbf16>, vector<64x8xf32> -> vector<64x8xf32>
    %53 = arith.addf %46, %52 : vector<64x8xf32>
    %54 = vector.extract_strided_slice %9 {offsets = [2, 0, 0], sizes = [8, 8, 4], strides = [1, 1, 1]} : vector<10x10x4xf32> to vector<8x8x4xf32>
    %55 = vector.shape_cast %54 : vector<8x8x4xf32> to vector<64x4xf32>
    %56 = arith.truncf %55 : vector<64x4xf32> to vector<64x4xbf16>
    %57 = vector.extract_strided_slice %10 {offsets = [2, 0, 0, 0], sizes = [1, 1, 4, 8], strides = [1, 1, 1, 1]} : vector<3x3x4x8xbf16> to vector<1x1x4x8xbf16>
    %58 = vector.shape_cast %57 : vector<1x1x4x8xbf16> to vector<4x8xbf16>
    %cst_18 = arith.constant dense<0.000000e+00> : vector<64x8xf32>
    %59 = tpu.matmul %56, %58, %cst_18 {dimension_numbers = #tpu.dot_dimension_numbers<[1], [0], [0], [1], [0, 0, 1, 1], [], []>} : vector<64x4xbf16>, vector<4x8xbf16>, vector<64x8xf32> -> vector<64x8xf32>
    %60 = arith.addf %53, %59 : vector<64x8xf32>
    %61 = vector.extract_strided_slice %9 {offsets = [2, 1, 0], sizes = [8, 8, 4], strides = [1, 1, 1]} : vector<10x10x4xf32> to vector<8x8x4xf32>
    %62 = vector.shape_cast %61 : vector<8x8x4xf32> to vector<64x4xf32>
    %63 = arith.truncf %62 : vector<64x4xf32> to vector<64x4xbf16>
    %64 = vector.extract_strided_slice %10 {offsets = [2, 1, 0, 0], sizes = [1, 1, 4, 8], strides = [1, 1, 1, 1]} : vector<3x3x4x8xbf16> to vector<1x1x4x8xbf16>
    %65 = vector.shape_cast %64 : vector<1x1x4x8xbf16> to vector<4x8xbf16>
    %cst_19 = arith.constant dense<0.000000e+00> : vector<64x8xf32>
    %66 = tpu.matmul %63, %65, %cst_19 {dimension_numbers = #tpu.dot_dimension_numbers<[1], [0], [0], [1], [0, 0, 1, 1], [], []>} : vector<64x4xbf16>, vector<4x8xbf16>, vector<64x8xf32> -> vector<64x8xf32>
    %67 = arith.addf %60, %66 : vector<64x8xf32>
    %68 = vector.extract_strided_slice %9 {offsets = [2, 2, 0], sizes = [8, 8, 4], strides = [1, 1, 1]} : vector<10x10x4xf32> to vector<8x8x4xf32>
    %69 = vector.shape_cast %68 : vector<8x8x4xf32> to vector<64x4xf32>
    %70 = arith.truncf %69 : vector<64x4xf32> to vector<64x4xbf16>
    %71 = vector.extract_strided_slice %10 {offsets = [2, 2, 0, 0], sizes = [1, 1, 4, 8], strides = [1, 1, 1, 1]} : vector<3x3x4x8xbf16> to vector<1x1x4x8xbf16>
    %72 = vector.shape_cast %71 : vector<1x1x4x8xbf16> to vector<4x8xbf16>
    %cst_20 = arith.constant dense<0.000000e+00> : vector<64x8xf32>
    %73 = tpu.matmul %70, %72, %cst_20 {dimension_numbers = #tpu.dot_dimension_numbers<[1], [0], [0], [1], [0, 0, 1, 1], [], []>} : vector<64x4xbf16>, vector<4x8xbf16>, vector<64x8xf32> -> vector<64x8xf32>
    %74 = arith.addf %67, %73 : vector<64x8xf32>
    %75 = vector.shape_cast %74 : vector<64x8xf32> to vector<8x8x8xf32>
    %c0_21 = arith.constant 0 : index
    %c0_22 = arith.constant 0 : index
    %c0_23 = arith.constant 0 : index
    %c0_24 = arith.constant 0 : index
    %76 = vector.load %arg5[%c0_21, %c0_22, %c0_23, %c0_24] : memref<1x8x8x8xf32, #tpu.memory_space<vmem>>, vector<1x8x8x8xf32>
    %77 = vector.shape_cast %76 : vector<1x8x8x8xf32> to vector<8x8x8xf32>
    %78 = vector.shape_cast %75 : vector<8x8x8xf32> to vector<1x8x8x8xf32>
    tpu.vector_store %arg5[%c0_21, %c0_22, %c0_23, %c0_24], %78 {strides = array<i32>} : memref<1x8x8x8xf32, #tpu.memory_space<vmem>>, vector<1x8x8x8xf32>,
    %cst_25 = arith.constant dense<0.000000e+00> : vector<8xf32>
    %79 = vector.multi_reduction <add>, %74, %cst_25 [0] : vector<64x8xf32> to vector<8xf32>
    %80 = vector.shape_cast %79 : vector<8xf32> to vector<1x8xf32>
    %c0_26 = arith.constant 0 : index
    %c0_27 = arith.constant 0 : index
    %c0_28 = arith.constant 0 : index
    %c0_29 = arith.constant 0 : index
    %81 = vector.load %arg6[%c0_26, %c0_27, %c0_28, %c0_29] : memref<1x1x2x8xf32, #tpu.memory_space<vmem>>, vector<1x1x1x8xf32>
    %82 = vector.shape_cast %81 : vector<1x1x1x8xf32> to vector<1x8xf32>
    %83 = vector.shape_cast %80 : vector<1x8xf32> to vector<1x1x1x8xf32>
    tpu.vector_store %arg6[%c0_26, %c0_27, %c0_28, %c0_29], %83 {strides = array<i32>} : memref<1x1x2x8xf32, #tpu.memory_space<vmem>>, vector<1x1x1x8xf32>,
    %84 = arith.mulf %74, %74 : vector<64x8xf32>
    %cst_30 = arith.constant dense<0.000000e+00> : vector<8xf32>
    %85 = vector.multi_reduction <add>, %84, %cst_30 [0] : vector<64x8xf32> to vector<8xf32>
    %86 = vector.shape_cast %85 : vector<8xf32> to vector<1x8xf32>
    %c0_31 = arith.constant 0 : index
    %c0_32 = arith.constant 0 : index
    %c1 = arith.constant 1 : index
    %c0_33 = arith.constant 0 : index
    %87 = vector.load %arg6[%c0_31, %c0_32, %c1, %c0_33] : memref<1x1x2x8xf32, #tpu.memory_space<vmem>>, vector<1x1x1x8xf32>
    %88 = vector.shape_cast %87 : vector<1x1x1x8xf32> to vector<1x8xf32>
    %89 = vector.shape_cast %86 : vector<1x8xf32> to vector<1x1x1x8xf32>
    tpu.vector_store %arg6[%c0_31, %c0_32, %c1, %c0_33], %89 {strides = array<i32>} : memref<1x1x2x8xf32, #tpu.memory_space<vmem>>, vector<1x1x1x8xf32>,
    return
  }
  func.func @transform_0(%arg0: i32, %arg1: i32) -> (i32, i32, i32, i32) {
    %c0_i32 = arith.constant 0 : i32
    %c0_i32_0 = arith.constant 0 : i32
    %c0_i32_1 = arith.constant 0 : i32
    return %arg0, %arg1, %c0_i32, %c0_i32_0 : i32, i32, i32, i32
  }
  func.func @transform_1(%arg0: i32, %arg1: i32) -> (i32, i32, i32, i32) {
    %c1_i32 = arith.constant 1 : i32
    %0 = arith.addi %arg1, %c1_i32 : i32
    %c4_i32 = arith.constant 4 : i32
    %1 = arith.muli %0, %c4_i32 : i32
    %c0_i32 = arith.constant 0 : i32
    %c0_i32_0 = arith.constant 0 : i32
    %c0_i32_1 = arith.constant 0 : i32
    return %arg0, %1, %c0_i32, %c0_i32_0 : i32, i32, i32, i32
  }
  func.func @transform_2(%arg0: i32, %arg1: i32) -> (i32, i32, i32, i32) {
    %c0_i32 = arith.constant 0 : i32
    %c0_i32_0 = arith.constant 0 : i32
    %c0_i32_1 = arith.constant 0 : i32
    %c0_i32_2 = arith.constant 0 : i32
    %c0_i32_3 = arith.constant 0 : i32
    return %c0_i32, %c0_i32_0, %c0_i32_1, %c0_i32_2 : i32, i32, i32, i32
  }
  func.func @transform_3(%arg0: i32, %arg1: i32) -> (i32, i32, i32, i32) {
    %c0_i32 = arith.constant 0 : i32
    %c0_i32_0 = arith.constant 0 : i32
    %c0_i32_1 = arith.constant 0 : i32
    return %arg0, %arg1, %c0_i32, %c0_i32_0 : i32, i32, i32, i32
  }
  func.func @transform_4(%arg0: i32, %arg1: i32) -> (i32, i32, i32, i32) {
    %c0_i32 = arith.constant 0 : i32
    %c0_i32_0 = arith.constant 0 : i32
    %c0_i32_1 = arith.constant 0 : i32
    return %arg0, %arg1, %c0_i32, %c0_i32_0 : i32, i32, i32, i32
  }
}

module attributes {stable_mosaic.version = 11 : i64} {
  func.func @_affine_relu_kernel(%arg0: i32, %arg1: i32, %arg2: memref<1x8x64xf32, #tpu.memory_space<vmem>>, %arg3: memref<1x64xf32, #tpu.memory_space<vmem>>, %arg4: memref<1x64xf32, #tpu.memory_space<vmem>>, %arg5: memref<1x8x64xf32, #tpu.memory_space<vmem>>) attributes {dimension_semantics = [#tpu.dimension_semantics<parallel>, #tpu.dimension_semantics<parallel>], iteration_bounds = array<i64: 2, 1>, scalar_prefetch = 0 : i64, scratch_operands = 0 : i64, tpu.core_type = #tpu.core_type<tc>, window_params = [{transform_indices = @transform_0, window_bounds = array<i64: 1, 8, 64>}, {pipeline_mode = #tpu.pipeline_mode<synchronous>, transform_indices = @transform_1, window_bounds = array<i64: 1, 64>}, {pipeline_mode = #tpu.pipeline_mode<synchronous>, transform_indices = @transform_2, window_bounds = array<i64: 1, 64>}, {transform_indices = @transform_3, window_bounds = array<i64: 1, 8, 64>}]} {
    %c0 = arith.constant 0 : index
    %c0_0 = arith.constant 0 : index
    %c0_1 = arith.constant 0 : index
    %0 = vector.load %arg2[%c0, %c0_0, %c0_1] : memref<1x8x64xf32, #tpu.memory_space<vmem>>, vector<1x8x64xf32>
    %1 = vector.shape_cast %0 : vector<1x8x64xf32> to vector<8x64xf32>
    %c0_2 = arith.constant 0 : index
    %c0_3 = arith.constant 0 : index
    %2 = vector.load %arg3[%c0_2, %c0_3] : memref<1x64xf32, #tpu.memory_space<vmem>>, vector<1x64xf32>
    %3 = vector.broadcast %2 : vector<1x64xf32> to vector<8x64xf32>
    %4 = arith.mulf %1, %3 : vector<8x64xf32>
    %c0_4 = arith.constant 0 : index
    %c0_5 = arith.constant 0 : index
    %5 = vector.load %arg4[%c0_4, %c0_5] : memref<1x64xf32, #tpu.memory_space<vmem>>, vector<1x64xf32>
    %6 = vector.broadcast %5 : vector<1x64xf32> to vector<8x64xf32>
    %7 = arith.addf %4, %6 : vector<8x64xf32>
    %cst = arith.constant 0.000000e+00 : f32
    %8 = vector.broadcast %cst : f32 to vector<8x64xf32>
    %9 = arith.maximumf %7, %8 : vector<8x64xf32>
    %c0_6 = arith.constant 0 : index
    %c0_7 = arith.constant 0 : index
    %c0_8 = arith.constant 0 : index
    %10 = vector.load %arg5[%c0_6, %c0_7, %c0_8] : memref<1x8x64xf32, #tpu.memory_space<vmem>>, vector<1x8x64xf32>
    %11 = vector.shape_cast %10 : vector<1x8x64xf32> to vector<8x64xf32>
    %12 = vector.shape_cast %9 : vector<8x64xf32> to vector<1x8x64xf32>
    tpu.vector_store %arg5[%c0_6, %c0_7, %c0_8], %12 {strides = array<i32>} : memref<1x8x64xf32, #tpu.memory_space<vmem>>, vector<1x8x64xf32>,
    return
  }
  func.func @transform_0(%arg0: i32, %arg1: i32) -> (i32, i32, i32) {
    %c0_i32 = arith.constant 0 : i32
    %c0_i32_0 = arith.constant 0 : i32
    return %arg0, %arg1, %c0_i32 : i32, i32, i32
  }
  func.func @transform_1(%arg0: i32, %arg1: i32) -> (i32, i32) {
    %c0_i32 = arith.constant 0 : i32
    %c0_i32_0 = arith.constant 0 : i32
    %c0_i32_1 = arith.constant 0 : i32
    return %c0_i32, %c0_i32_0 : i32, i32
  }
  func.func @transform_2(%arg0: i32, %arg1: i32) -> (i32, i32) {
    %c0_i32 = arith.constant 0 : i32
    %c0_i32_0 = arith.constant 0 : i32
    %c0_i32_1 = arith.constant 0 : i32
    return %c0_i32, %c0_i32_0 : i32, i32
  }
  func.func @transform_3(%arg0: i32, %arg1: i32) -> (i32, i32, i32) {
    %c0_i32 = arith.constant 0 : i32
    %c0_i32_0 = arith.constant 0 : i32
    return %arg0, %arg1, %c0_i32 : i32, i32, i32
  }
}

module attributes {stable_mosaic.version = 11 : i64} {
  func.func @_conv_bn_stats_kernel(%arg0: i32, %arg1: i32, %arg2: memref<1x8x10x8xf32, #tpu.memory_space<vmem>>, %arg3: memref<1x2x10x8xf32, #tpu.memory_space<vmem>>, %arg4: memref<3x3x8x8xbf16, #tpu.memory_space<vmem>>, %arg5: memref<1x1x8xf32, #tpu.memory_space<vmem>>, %arg6: memref<1x1x8xf32, #tpu.memory_space<vmem>>, %arg7: memref<1x8x8x8xf32, #tpu.memory_space<vmem>>, %arg8: memref<1x1x2x8xf32, #tpu.memory_space<vmem>>) attributes {dimension_semantics = [#tpu.dimension_semantics<parallel>, #tpu.dimension_semantics<parallel>], iteration_bounds = array<i64: 2, 1>, scalar_prefetch = 0 : i64, scratch_operands = 0 : i64, tpu.core_type = #tpu.core_type<tc>, window_params = [{transform_indices = @transform_0, window_bounds = array<i64: 1, 8, 10, 8>}, {transform_indices = @transform_1, window_bounds = array<i64: 1, 2, 10, 8>}, {pipeline_mode = #tpu.pipeline_mode<synchronous>, transform_indices = @transform_2, window_bounds = array<i64: 3, 3, 8, 8>}, {pipeline_mode = #tpu.pipeline_mode<synchronous>, transform_indices = @transform_3, window_bounds = array<i64: 1, 1, 8>}, {pipeline_mode = #tpu.pipeline_mode<synchronous>, transform_indices = @transform_4, window_bounds = array<i64: 1, 1, 8>}, {transform_indices = @transform_5, window_bounds = array<i64: 1, 8, 8, 8>}, {transform_indices = @transform_6, window_bounds = array<i64: 1, 1, 2, 8>}]} {
    %c0 = arith.constant 0 : index
    %c0_0 = arith.constant 0 : index
    %c0_1 = arith.constant 0 : index
    %c0_2 = arith.constant 0 : index
    %0 = vector.load %arg2[%c0, %c0_0, %c0_1, %c0_2] : memref<1x8x10x8xf32, #tpu.memory_space<vmem>>, vector<1x8x10x8xf32>
    %1 = vector.shape_cast %0 : vector<1x8x10x8xf32> to vector<8x10x8xf32>
    %c0_3 = arith.constant 0 : index
    %c0_4 = arith.constant 0 : index
    %c0_5 = arith.constant 0 : index
    %c0_6 = arith.constant 0 : index
    %2 = vector.load %arg3[%c0_3, %c0_4, %c0_5, %c0_6] : memref<1x2x10x8xf32, #tpu.memory_space<vmem>>, vector<1x2x10x8xf32>
    %3 = vector.shape_cast %2 : vector<1x2x10x8xf32> to vector<2x10x8xf32>
    %4 = tpu.concatenate %1, %3 in 0 : vector<8x10x8xf32>, vector<2x10x8xf32> -> vector<10x10x8xf32>
    %c0_7 = arith.constant 0 : index
    %c0_8 = arith.constant 0 : index
    %c0_9 = arith.constant 0 : index
    %5 = vector.load %arg5[%c0_7, %c0_8, %c0_9] : memref<1x1x8xf32, #tpu.memory_space<vmem>>, vector<1x1x8xf32>
    %6 = vector.broadcast %5 : vector<1x1x8xf32> to vector<10x10x8xf32>
    %7 = arith.mulf %4, %6 : vector<10x10x8xf32>
    %c0_10 = arith.constant 0 : index
    %c0_11 = arith.constant 0 : index
    %c0_12 = arith.constant 0 : index
    %8 = vector.load %arg6[%c0_10, %c0_11, %c0_12] : memref<1x1x8xf32, #tpu.memory_space<vmem>>, vector<1x1x8xf32>
    %9 = vector.broadcast %8 : vector<1x1x8xf32> to vector<10x10x8xf32>
    %10 = arith.addf %7, %9 : vector<10x10x8xf32>
    %cst = arith.constant 0.000000e+00 : f32
    %11 = vector.broadcast %cst : f32 to vector<10x10x8xf32>
    %12 = arith.maximumf %10, %11 : vector<10x10x8xf32>
    %13 = tpu.iota {dimensions = array<i32: 0>} : vector<10x10x8xi32>
    %c8_i32 = arith.constant 8 : i32
    %14 = arith.muli %arg1, %c8_i32 : i32
    %15 = vector.broadcast %14 : i32 to vector<10x10x8xi32>
    %16 = arith.addi %13, %15 : vector<10x10x8xi32>
    %17 = tpu.iota {dimensions = array<i32: 1>} : vector<10x10x8xi32>
    %c1_i32 = arith.constant 1 : i32
    %18 = vector.broadcast %c1_i32 : i32 to vector<10x10x8xi32>
    %19 = arith.cmpi sge, %16, %18 : vector<10x10x8xi32>
    %c8_i32_13 = arith.constant 8 : i32
    %20 = vector.broadcast %c8_i32_13 : i32 to vector<10x10x8xi32>
    %21 = arith.cmpi sle, %16, %20 : vector<10x10x8xi32>
    %22 = arith.andi %19, %21 : vector<10x10x8xi1>
    %c1_i32_14 = arith.constant 1 : i32
    %23 = vector.broadcast %c1_i32_14 : i32 to vector<10x10x8xi32>
    %24 = arith.cmpi sge, %17, %23 : vector<10x10x8xi32>
    %25 = arith.andi %22, %24 : vector<10x10x8xi1>
    %c8_i32_15 = arith.constant 8 : i32
    %26 = vector.broadcast %c8_i32_15 : i32 to vector<10x10x8xi32>
    %27 = arith.cmpi sle, %17, %26 : vector<10x10x8xi32>
    %28 = arith.andi %25, %27 : vector<10x10x8xi1>
    %cst_16 = arith.constant 0.000000e+00 : f32
    %29 = vector.broadcast %cst_16 : f32 to vector<10x10x8xf32>
    %30 = arith.select %28, %12, %29 : vector<10x10x8xi1>, vector<10x10x8xf32>
    %c0_17 = arith.constant 0 : index
    %c0_18 = arith.constant 0 : index
    %c0_19 = arith.constant 0 : index
    %c0_20 = arith.constant 0 : index
    %31 = vector.load %arg4[%c0_17, %c0_18, %c0_19, %c0_20] : memref<3x3x8x8xbf16, #tpu.memory_space<vmem>>, vector<3x3x8x8xbf16>
    %cst_21 = arith.constant 0.000000e+00 : f32
    %32 = vector.broadcast %cst_21 : f32 to vector<64x8xf32>
    %33 = vector.extract_strided_slice %30 {offsets = [0, 0, 0], sizes = [8, 8, 8], strides = [1, 1, 1]} : vector<10x10x8xf32> to vector<8x8x8xf32>
    %34 = vector.shape_cast %33 : vector<8x8x8xf32> to vector<64x8xf32>
    %35 = arith.truncf %34 : vector<64x8xf32> to vector<64x8xbf16>
    %36 = vector.extract_strided_slice %31 {offsets = [0, 0, 0, 0], sizes = [1, 1, 8, 8], strides = [1, 1, 1, 1]} : vector<3x3x8x8xbf16> to vector<1x1x8x8xbf16>
    %37 = vector.shape_cast %36 : vector<1x1x8x8xbf16> to vector<8x8xbf16>
    %cst_22 = arith.constant dense<0.000000e+00> : vector<64x8xf32>
    %38 = tpu.matmul %35, %37, %cst_22 {dimension_numbers = #tpu.dot_dimension_numbers<[1], [0], [0], [1], [0, 0, 1, 1], [], []>} : vector<64x8xbf16>, vector<8x8xbf16>, vector<64x8xf32> -> vector<64x8xf32>
    %39 = arith.addf %32, %38 : vector<64x8xf32>
    %40 = vector.extract_strided_slice %30 {offsets = [0, 1, 0], sizes = [8, 8, 8], strides = [1, 1, 1]} : vector<10x10x8xf32> to vector<8x8x8xf32>
    %41 = vector.shape_cast %40 : vector<8x8x8xf32> to vector<64x8xf32>
    %42 = arith.truncf %41 : vector<64x8xf32> to vector<64x8xbf16>
    %43 = vector.extract_strided_slice %31 {offsets = [0, 1, 0, 0], sizes = [1, 1, 8, 8], strides = [1, 1, 1, 1]} : vector<3x3x8x8xbf16> to vector<1x1x8x8xbf16>
    %44 = vector.shape_cast %43 : vector<1x1x8x8xbf16> to vector<8x8xbf16>
    %cst_23 = arith.constant dense<0.000000e+00> : vector<64x8xf32>
    %45 = tpu.matmul %42, %44, %cst_23 {dimension_numbers = #tpu.dot_dimension_numbers<[1], [0], [0], [1], [0, 0, 1, 1], [], []>} : vector<64x8xbf16>, vector<8x8xbf16>, vector<64x8xf32> -> vector<64x8xf32>
    %46 = arith.addf %39, %45 : vector<64x8xf32>
    %47 = vector.extract_strided_slice %30 {offsets = [0, 2, 0], sizes = [8, 8, 8], strides = [1, 1, 1]} : vector<10x10x8xf32> to vector<8x8x8xf32>
    %48 = vector.shape_cast %47 : vector<8x8x8xf32> to vector<64x8xf32>
    %49 = arith.truncf %48 : vector<64x8xf32> to vector<64x8xbf16>
    %50 = vector.extract_strided_slice %31 {offsets = [0, 2, 0, 0], sizes = [1, 1, 8, 8], strides = [1, 1, 1, 1]} : vector<3x3x8x8xbf16> to vector<1x1x8x8xbf16>
    %51 = vector.shape_cast %50 : vector<1x1x8x8xbf16> to vector<8x8xbf16>
    %cst_24 = arith.constant dense<0.000000e+00> : vector<64x8xf32>
    %52 = tpu.matmul %49, %51, %cst_24 {dimension_numbers = #tpu.dot_dimension_numbers<[1], [0], [0], [1], [0, 0, 1, 1], [], []>} : vector<64x8xbf16>, vector<8x8xbf16>, vector<64x8xf32> -> vector<64x8xf32>
    %53 = arith.addf %46, %52 : vector<64x8xf32>
    %54 = vector.extract_strided_slice %30 {offsets = [1, 0, 0], sizes = [8, 8, 8], strides = [1, 1, 1]} : vector<10x10x8xf32> to vector<8x8x8xf32>
    %55 = vector.shape_cast %54 : vector<8x8x8xf32> to vector<64x8xf32>
    %56 = arith.truncf %55 : vector<64x8xf32> to vector<64x8xbf16>
    %57 = vector.extract_strided_slice %31 {offsets = [1, 0, 0, 0], sizes = [1, 1, 8, 8], strides = [1, 1, 1, 1]} : vector<3x3x8x8xbf16> to vector<1x1x8x8xbf16>
    %58 = vector.shape_cast %57 : vector<1x1x8x8xbf16> to vector<8x8xbf16>
    %cst_25 = arith.constant dense<0.000000e+00> : vector<64x8xf32>
    %59 = tpu.matmul %56, %58, %cst_25 {dimension_numbers = #tpu.dot_dimension_numbers<[1], [0], [0], [1], [0, 0, 1, 1], [], []>} : vector<64x8xbf16>, vector<8x8xbf16>, vector<64x8xf32> -> vector<64x8xf32>
    %60 = arith.addf %53, %59 : vector<64x8xf32>
    %61 = vector.extract_strided_slice %30 {offsets = [1, 1, 0], sizes = [8, 8, 8], strides = [1, 1, 1]} : vector<10x10x8xf32> to vector<8x8x8xf32>
    %62 = vector.shape_cast %61 : vector<8x8x8xf32> to vector<64x8xf32>
    %63 = arith.truncf %62 : vector<64x8xf32> to vector<64x8xbf16>
    %64 = vector.extract_strided_slice %31 {offsets = [1, 1, 0, 0], sizes = [1, 1, 8, 8], strides = [1, 1, 1, 1]} : vector<3x3x8x8xbf16> to vector<1x1x8x8xbf16>
    %65 = vector.shape_cast %64 : vector<1x1x8x8xbf16> to vector<8x8xbf16>
    %cst_26 = arith.constant dense<0.000000e+00> : vector<64x8xf32>
    %66 = tpu.matmul %63, %65, %cst_26 {dimension_numbers = #tpu.dot_dimension_numbers<[1], [0], [0], [1], [0, 0, 1, 1], [], []>} : vector<64x8xbf16>, vector<8x8xbf16>, vector<64x8xf32> -> vector<64x8xf32>
    %67 = arith.addf %60, %66 : vector<64x8xf32>
    %68 = vector.extract_strided_slice %30 {offsets = [1, 2, 0], sizes = [8, 8, 8], strides = [1, 1, 1]} : vector<10x10x8xf32> to vector<8x8x8xf32>
    %69 = vector.shape_cast %68 : vector<8x8x8xf32> to vector<64x8xf32>
    %70 = arith.truncf %69 : vector<64x8xf32> to vector<64x8xbf16>
    %71 = vector.extract_strided_slice %31 {offsets = [1, 2, 0, 0], sizes = [1, 1, 8, 8], strides = [1, 1, 1, 1]} : vector<3x3x8x8xbf16> to vector<1x1x8x8xbf16>
    %72 = vector.shape_cast %71 : vector<1x1x8x8xbf16> to vector<8x8xbf16>
    %cst_27 = arith.constant dense<0.000000e+00> : vector<64x8xf32>
    %73 = tpu.matmul %70, %72, %cst_27 {dimension_numbers = #tpu.dot_dimension_numbers<[1], [0], [0], [1], [0, 0, 1, 1], [], []>} : vector<64x8xbf16>, vector<8x8xbf16>, vector<64x8xf32> -> vector<64x8xf32>
    %74 = arith.addf %67, %73 : vector<64x8xf32>
    %75 = vector.extract_strided_slice %30 {offsets = [2, 0, 0], sizes = [8, 8, 8], strides = [1, 1, 1]} : vector<10x10x8xf32> to vector<8x8x8xf32>
    %76 = vector.shape_cast %75 : vector<8x8x8xf32> to vector<64x8xf32>
    %77 = arith.truncf %76 : vector<64x8xf32> to vector<64x8xbf16>
    %78 = vector.extract_strided_slice %31 {offsets = [2, 0, 0, 0], sizes = [1, 1, 8, 8], strides = [1, 1, 1, 1]} : vector<3x3x8x8xbf16> to vector<1x1x8x8xbf16>
    %79 = vector.shape_cast %78 : vector<1x1x8x8xbf16> to vector<8x8xbf16>
    %cst_28 = arith.constant dense<0.000000e+00> : vector<64x8xf32>
    %80 = tpu.matmul %77, %79, %cst_28 {dimension_numbers = #tpu.dot_dimension_numbers<[1], [0], [0], [1], [0, 0, 1, 1], [], []>} : vector<64x8xbf16>, vector<8x8xbf16>, vector<64x8xf32> -> vector<64x8xf32>
    %81 = arith.addf %74, %80 : vector<64x8xf32>
    %82 = vector.extract_strided_slice %30 {offsets = [2, 1, 0], sizes = [8, 8, 8], strides = [1, 1, 1]} : vector<10x10x8xf32> to vector<8x8x8xf32>
    %83 = vector.shape_cast %82 : vector<8x8x8xf32> to vector<64x8xf32>
    %84 = arith.truncf %83 : vector<64x8xf32> to vector<64x8xbf16>
    %85 = vector.extract_strided_slice %31 {offsets = [2, 1, 0, 0], sizes = [1, 1, 8, 8], strides = [1, 1, 1, 1]} : vector<3x3x8x8xbf16> to vector<1x1x8x8xbf16>
    %86 = vector.shape_cast %85 : vector<1x1x8x8xbf16> to vector<8x8xbf16>
    %cst_29 = arith.constant dense<0.000000e+00> : vector<64x8xf32>
    %87 = tpu.matmul %84, %86, %cst_29 {dimension_numbers = #tpu.dot_dimension_numbers<[1], [0], [0], [1], [0, 0, 1, 1], [], []>} : vector<64x8xbf16>, vector<8x8xbf16>, vector<64x8xf32> -> vector<64x8xf32>
    %88 = arith.addf %81, %87 : vector<64x8xf32>
    %89 = vector.extract_strided_slice %30 {offsets = [2, 2, 0], sizes = [8, 8, 8], strides = [1, 1, 1]} : vector<10x10x8xf32> to vector<8x8x8xf32>
    %90 = vector.shape_cast %89 : vector<8x8x8xf32> to vector<64x8xf32>
    %91 = arith.truncf %90 : vector<64x8xf32> to vector<64x8xbf16>
    %92 = vector.extract_strided_slice %31 {offsets = [2, 2, 0, 0], sizes = [1, 1, 8, 8], strides = [1, 1, 1, 1]} : vector<3x3x8x8xbf16> to vector<1x1x8x8xbf16>
    %93 = vector.shape_cast %92 : vector<1x1x8x8xbf16> to vector<8x8xbf16>
    %cst_30 = arith.constant dense<0.000000e+00> : vector<64x8xf32>
    %94 = tpu.matmul %91, %93, %cst_30 {dimension_numbers = #tpu.dot_dimension_numbers<[1], [0], [0], [1], [0, 0, 1, 1], [], []>} : vector<64x8xbf16>, vector<8x8xbf16>, vector<64x8xf32> -> vector<64x8xf32>
    %95 = arith.addf %88, %94 : vector<64x8xf32>
    %96 = vector.shape_cast %95 : vector<64x8xf32> to vector<8x8x8xf32>
    %c0_31 = arith.constant 0 : index
    %c0_32 = arith.constant 0 : index
    %c0_33 = arith.constant 0 : index
    %c0_34 = arith.constant 0 : index
    %97 = vector.load %arg7[%c0_31, %c0_32, %c0_33, %c0_34] : memref<1x8x8x8xf32, #tpu.memory_space<vmem>>, vector<1x8x8x8xf32>
    %98 = vector.shape_cast %97 : vector<1x8x8x8xf32> to vector<8x8x8xf32>
    %99 = vector.shape_cast %96 : vector<8x8x8xf32> to vector<1x8x8x8xf32>
    tpu.vector_store %arg7[%c0_31, %c0_32, %c0_33, %c0_34], %99 {strides = array<i32>} : memref<1x8x8x8xf32, #tpu.memory_space<vmem>>, vector<1x8x8x8xf32>,
    %cst_35 = arith.constant dense<0.000000e+00> : vector<8xf32>
    %100 = vector.multi_reduction <add>, %95, %cst_35 [0] : vector<64x8xf32> to vector<8xf32>
    %101 = vector.shape_cast %100 : vector<8xf32> to vector<1x8xf32>
    %c0_36 = arith.constant 0 : index
    %c0_37 = arith.constant 0 : index
    %c0_38 = arith.constant 0 : index
    %c0_39 = arith.constant 0 : index
    %102 = vector.load %arg8[%c0_36, %c0_37, %c0_38, %c0_39] : memref<1x1x2x8xf32, #tpu.memory_space<vmem>>, vector<1x1x1x8xf32>
    %103 = vector.shape_cast %102 : vector<1x1x1x8xf32> to vector<1x8xf32>
    %104 = vector.shape_cast %101 : vector<1x8xf32> to vector<1x1x1x8xf32>
    tpu.vector_store %arg8[%c0_36, %c0_37, %c0_38, %c0_39], %104 {strides = array<i32>} : memref<1x1x2x8xf32, #tpu.memory_space<vmem>>, vector<1x1x1x8xf32>,
    %105 = arith.mulf %95, %95 : vector<64x8xf32>
    %cst_40 = arith.constant dense<0.000000e+00> : vector<8xf32>
    %106 = vector.multi_reduction <add>, %105, %cst_40 [0] : vector<64x8xf32> to vector<8xf32>
    %107 = vector.shape_cast %106 : vector<8xf32> to vector<1x8xf32>
    %c0_41 = arith.constant 0 : index
    %c0_42 = arith.constant 0 : index
    %c1 = arith.constant 1 : index
    %c0_43 = arith.constant 0 : index
    %108 = vector.load %arg8[%c0_41, %c0_42, %c1, %c0_43] : memref<1x1x2x8xf32, #tpu.memory_space<vmem>>, vector<1x1x1x8xf32>
    %109 = vector.shape_cast %108 : vector<1x1x1x8xf32> to vector<1x8xf32>
    %110 = vector.shape_cast %107 : vector<1x8xf32> to vector<1x1x1x8xf32>
    tpu.vector_store %arg8[%c0_41, %c0_42, %c1, %c0_43], %110 {strides = array<i32>} : memref<1x1x2x8xf32, #tpu.memory_space<vmem>>, vector<1x1x1x8xf32>,
    return
  }
  func.func @transform_0(%arg0: i32, %arg1: i32) -> (i32, i32, i32, i32) {
    %c0_i32 = arith.constant 0 : i32
    %c0_i32_0 = arith.constant 0 : i32
    %c0_i32_1 = arith.constant 0 : i32
    return %arg0, %arg1, %c0_i32, %c0_i32_0 : i32, i32, i32, i32
  }
  func.func @transform_1(%arg0: i32, %arg1: i32) -> (i32, i32, i32, i32) {
    %c1_i32 = arith.constant 1 : i32
    %0 = arith.addi %arg1, %c1_i32 : i32
    %c4_i32 = arith.constant 4 : i32
    %1 = arith.muli %0, %c4_i32 : i32
    %c0_i32 = arith.constant 0 : i32
    %c0_i32_0 = arith.constant 0 : i32
    %c0_i32_1 = arith.constant 0 : i32
    return %arg0, %1, %c0_i32, %c0_i32_0 : i32, i32, i32, i32
  }
  func.func @transform_2(%arg0: i32, %arg1: i32) -> (i32, i32, i32, i32) {
    %c0_i32 = arith.constant 0 : i32
    %c0_i32_0 = arith.constant 0 : i32
    %c0_i32_1 = arith.constant 0 : i32
    %c0_i32_2 = arith.constant 0 : i32
    %c0_i32_3 = arith.constant 0 : i32
    return %c0_i32, %c0_i32_0, %c0_i32_1, %c0_i32_2 : i32, i32, i32, i32
  }
  func.func @transform_3(%arg0: i32, %arg1: i32) -> (i32, i32, i32) {
    %c0_i32 = arith.constant 0 : i32
    %c0_i32_0 = arith.constant 0 : i32
    %c0_i32_1 = arith.constant 0 : i32
    %c0_i32_2 = arith.constant 0 : i32
    return %c0_i32, %c0_i32_0, %c0_i32_1 : i32, i32, i32
  }
  func.func @transform_4(%arg0: i32, %arg1: i32) -> (i32, i32, i32) {
    %c0_i32 = arith.constant 0 : i32
    %c0_i32_0 = arith.constant 0 : i32
    %c0_i32_1 = arith.constant 0 : i32
    %c0_i32_2 = arith.constant 0 : i32
    return %c0_i32, %c0_i32_0, %c0_i32_1 : i32, i32, i32
  }
  func.func @transform_5(%arg0: i32, %arg1: i32) -> (i32, i32, i32, i32) {
    %c0_i32 = arith.constant 0 : i32
    %c0_i32_0 = arith.constant 0 : i32
    %c0_i32_1 = arith.constant 0 : i32
    return %arg0, %arg1, %c0_i32, %c0_i32_0 : i32, i32, i32, i32
  }
  func.func @transform_6(%arg0: i32, %arg1: i32) -> (i32, i32, i32, i32) {
    %c0_i32 = arith.constant 0 : i32
    %c0_i32_0 = arith.constant 0 : i32
    %c0_i32_1 = arith.constant 0 : i32
    return %arg0, %arg1, %c0_i32, %c0_i32_0 : i32, i32, i32, i32
  }
}

</mosaic_0001>

<llo_original>
// kernel: tile.13
$region0: #{tile.13}
  #allocation0 [shape = 's32[1]{0}', space=sflag, size = 0x4, scoped, tag = 'scoped memory for tile.13']
  %s0 = inlined_call_operand.vmem [shape: f32[8], index: 0, kind: input, shape index: {}]
  %s1 = inlined_call_operand.vmem [shape: f32[8,8], index: 1, kind: output, shape index: {}]
  // Predicated region
  $region2: #{tile.13} parent=0 // pred_check
    _
  $region3: #{tile.13} parent=0 // pred_check_branch
    %3 = sbr.rel (0) target = $region5
  $region4: #{tile.13} parent=0 // pred_region
    _
  $region5: #{tile.13} parent=0 // pred_fallthru
    _
  %v4 = vld [vmem:[%s0] ss:$0 sm:$0xff]
  %5 = vst [vmem:[%s1] sm:$0xff] %v4

// kernel: tile.14
$region0: #{tile.14}
  %s0 = inlined_call_operand.vmem [shape: f32[8,8], index: 0, kind: input, shape index: {}]
  %s1 = inlined_call_operand.vmem [shape: f32[1,64], index: 1, kind: output, shape index: {}]
  $region1: #{tile.14} parent=0
    #allocation0 [shape = 'u8[4096]{0}', space=vmem, size = 0x1000, scoped, tag = 'scoped mem for output reshape']
    %v2 = vld [vmem:[%s0] sm:$0x1]
    %vm3 = vcmask 64512
    %4 = vst.msk [vmem:[#allocation0] sm:$0x1] %vm3, %v2
    %s5 = scalar_lea.vmem %s0, 7
    %v6 = vld [vmem:[%s5] sm:$0x1]
    %7 = vrot.lane.b32.xlu0 %v6, 56
    %v8 = vpop.permute.xlu0 %7
    %vm9 = vcmask 523712
    %10 = vst.msk [vmem:[#allocation0] sm:$0x1] %vm9, %v8
    %s11 = scalar_lea.vmem %s0, 6
    %v12 = vld [vmem:[%s11] sm:$0x1]
    %13 = vrot.lane.b32.xlu0 %v12, 48
    %v14 = vpop.permute.xlu0 %13
    %vm15 = vcmask 458112
    %16 = vst.msk [vmem:[#allocation0] sm:$0x1] %vm15, %v14
    %s17 = scalar_lea.vmem %s0, 5
    %v18 = vld [vmem:[%s17] sm:$0x1]
    %19 = vrot.lane.b32.xlu0 %v18, 40
    %v20 = vpop.permute.xlu0 %19
    %vm21 = vcmask 392512
    %22 = vst.msk [vmem:[#allocation0] sm:$0x1] %vm21, %v20
    %s23 = scalar_lea.vmem %s0, 4
    %v24 = vld [vmem:[%s23] sm:$0x1]
    %25 = vrot.lane.b32.xlu0 %v24, 32
    %v26 = vpop.permute.xlu0 %25
    %vm27 = vcmask 326912
    %28 = vst.msk [vmem:[#allocation0] sm:$0x1] %vm27, %v26
    %s29 = scalar_lea.vmem %s0, 3
    %v30 = vld [vmem:[%s29] sm:$0x1]
    %31 = vrot.lane.b32.xlu0 %v30, 24
    %v32 = vpop.permute.xlu0 %31
    %vm33 = vcmask 261312
    %34 = vst.msk [vmem:[#allocation0] sm:$0x1] %vm33, %v32
    %s35 = scalar_lea.vmem %s0, 2
    %v36 = vld [vmem:[%s35] sm:$0x1]
    %37 = vrot.lane.b32.xlu0 %v36, 16
    %v38 = vpop.permute.xlu0 %37
    %vm39 = vcmask 195712
    %40 = vst.msk [vmem:[#allocation0] sm:$0x1] %vm39, %v38
    %s41 = scalar_lea.vmem %s0, 1
    %v42 = vld [vmem:[%s41] sm:$0x1]
    %43 = vrot.lane.b32.xlu0 %v42, 8
    %v44 = vpop.permute.xlu0 %43
    %vm45 = vcmask 130112
    %46 = vst.msk [vmem:[#allocation0] sm:$0x1] %vm45, %v44
    %s48 = sshllo.u32 0, 1
    %v50 = vld [vmem:[#allocation0] sm:%s48]
    %s51 = sshllo.u32 0, 1
    %52 = vst [vmem:[%s1] sm:%s51] %v50

// kernel: decode_block_forward.5
$region0: #{decode_block_forward.5}
  #allocation0 [shape = 'u32[]', space=smem, size = 0x4, offset = 0x4, fixed_abs, tag = 'smem constant byte address 0x4 - core index']
  #allocation1 [shape = 'u32[144,128]{1,0:T(1,128)}', space=vmem, size = 0x12000, scoped, tag = 'internal scratch']
  %s0 = inlined_call_operand.vmem [shape: f32[2,8,64], index: 0, kind: input, shape index: {}]
  %s1 = inlined_call_operand.vmem [shape: f32[1,64], index: 1, kind: input, shape index: {}]
  %s2 = inlined_call_operand.vmem [shape: f32[1,64], index: 2, kind: input, shape index: {}]
  %s3 = inlined_call_operand.vmem [shape: f32[2,8,64], index: 3, kind: output, shape index: {}]
  %s4 = sld [smem:[#allocation0]]
  $region45: #{decode_block_forward.5} parent=0
    _
  %s6 = ssub.s32 1, %s4
  %s7 = scalar_select 0, %s6, %s4
  loop: start=0, step=1, limit=4
  $region2: #{decode_block_forward.5} parent=0 // loop_pre_header
    _
  $region3: #{decode_block_forward.5} parent=0 // loop_header
    %s9 = sphi 0, %s13
    %p10 = scmp.ge.s32.totalorder %s9, 4
    %s16 = sphi 0, %s28
    %s17 = sphi 0, %s24
    %s18 = sphi 0, %s16
    %s19 = sphi 0, %s17
    %s20 = sphi 0, %s18
    %s21 = sphi 0, %s19
    %s33 = sphi 0, %s35
    %s36 = sphi 0, %s33
    %s37 = sphi 0, %s36
    %s53 = sphi 0, %s37
    %s57 = sphi 0, %s57
    %s59 = sphi 0, %s57
    %s60 = sphi 0, %s59
    %s74 = sphi 0, %s60
    %s78 = sphi 0, %s78
    %s80 = sphi 0, %s78
    %s81 = sphi 0, %s80
    %s95 = sphi 0, %s81
    %s103 = sphi 0, %s105
    %s106 = sphi 0, %s103
    %s107 = sphi 0, %s106
    %s123 = sphi 0, %s107
  $region4: #{decode_block_forward.5} parent=0 // loop_header_branch
    %12 = sbr.rel (%p10) target = $region8
  $region5: #{decode_block_forward.5} parent=0 // loop_body
    %s14 = ssub.s32 %s9, 1
    %s15 = ssub.s32 %s9, 2
    %s22 = sadd.s32 1, %s17
    %p23 = scmp.ge.s32.totalorder %s22, 1
    %s24 = scalar_select %p23, 0, %s22
    %s25 = sadd.s32 1, %s16
    %s26 = scalar_select %p23, %s25, %s16
    %p27 = scmp.ge.s32.totalorder %s26, 2
    %s28 = scalar_select %p27, 0, %s26
    %s29 = ssub.s32 %s16, %s28
    %s30 = ssub.s32 %s17, %s24
    %s31 = sor.u32 %s29, %s30
    %p32 = scmp.eq.s32.totalorder %s31, 0
    %s34 = sadd.s32 %s33, 1
    %s35 = scalar_select %p32, %s33, %s34
    %p38 = pneg %p32
    %p39 = scmp.eq.s32.totalorder %s9, 1
    %p40 = por %p38, %p39
    %p41 = scmp.ne.s32.totalorder %s33, %s36
    %p42 = scmp.eq.s32.totalorder %s9, 0
    %p43 = por %p41, %p42
    %p44 = scmp.ne.s32.totalorder %s33, %s36
    %p45 = scmp.eq.s32.totalorder %s14, 1
    %p46 = por %p44, %p45
    %p47 = scmp.ne.s32.totalorder %s36, %s37
    %p48 = scmp.eq.s32.totalorder %s14, 0
    %p49 = por %p47, %p48
    %p50 = scmp.ne.s32.totalorder %s36, %s37
    %p51 = scmp.eq.s32.totalorder %s15, 1
    %p52 = por %p50, %p51
    %p54 = scmp.ne.s32.totalorder %s37, %s53
    %p55 = scmp.eq.s32.totalorder %s15, 0
    %p56 = por %p54, %p55
    %s58 = sadd.s32 %s57, 1
    %p61 = scmp.eq.s32.totalorder %s9, 1
    %p62 = scmp.ne.s32.totalorder %s57, %s59
    %p63 = scmp.eq.s32.totalorder %s9, 0
    %p64 = por %p62, %p63
    %p65 = scmp.ne.s32.totalorder %s57, %s59
    %p66 = scmp.eq.s32.totalorder %s14, 1
    %p67 = por %p65, %p66
    %p68 = scmp.ne.s32.totalorder %s59, %s60
    %p69 = scmp.eq.s32.totalorder %s14, 0
    %p70 = por %p68, %p69
    %p71 = scmp.ne.s32.totalorder %s59, %s60
    %p72 = scmp.eq.s32.totalorder %s15, 1
    %p73 = por %p71, %p72
    %p75 = scmp.ne.s32.totalorder %s60, %s74
    %p76 = scmp.eq.s32.totalorder %s15, 0
    %p77 = por %p75, %p76
    %s79 = sadd.s32 %s78, 1
    %p82 = scmp.eq.s32.totalorder %s9, 1
    %p83 = scmp.ne.s32.totalorder %s78, %s80
    %p84 = scmp.eq.s32.totalorder %s9, 0
    %p85 = por %p83, %p84
    %p86 = scmp.ne.s32.totalorder %s78, %s80
    %p87 = scmp.eq.s32.totalorder %s14, 1
    %p88 = por %p86, %p87
    %p89 = scmp.ne.s32.totalorder %s80, %s81
    %p90 = scmp.eq.s32.totalorder %s14, 0
    %p91 = por %p89, %p90
    %p92 = scmp.ne.s32.totalorder %s80, %s81
    %p93 = scmp.eq.s32.totalorder %s15, 1
    %p94 = por %p92, %p93
    %p96 = scmp.ne.s32.totalorder %s81, %s95
    %p97 = scmp.eq.s32.totalorder %s15, 0
    %p98 = por %p96, %p97
    %s99 = ssub.s32 %s16, %s28
    %s100 = ssub.s32 %s17, %s24
    %s101 = sor.u32 %s99, %s100
    %p102 = scmp.eq.s32.totalorder %s101, 0
    %s104 = sadd.s32 %s103, 1
    %s105 = scalar_select %p102, %s103, %s104
    %p108 = pneg %p102
    %p109 = scmp.eq.s32.totalorder %s9, 1
    %p110 = por %p108, %p109
    %p111 = scmp.ne.s32.totalorder %s103, %s106
    %p112 = scmp.eq.s32.totalorder %s9, 0
    %p113 = por %p111, %p112
    %p114 = scmp.ne.s32.totalorder %s103, %s106
    %p115 = scmp.eq.s32.totalorder %s14, 1
    %p116 = por %p114, %p115
    %p117 = scmp.ne.s32.totalorder %s106, %s107
    %p118 = scmp.eq.s32.totalorder %s14, 0
    %p119 = por %p117, %p118
    %p120 = scmp.ne.s32.totalorder %s106, %s107
    %p121 = scmp.eq.s32.totalorder %s15, 1
    %p122 = por %p120, %p121
    %p124 = scmp.ne.s32.totalorder %s107, %s123
    %p125 = scmp.eq.s32.totalorder %s15, 0
    %p126 = por %p124, %p125
    %p127 = scmp.le.s32.totalorder 1, %s9
    %p128 = scmp.lt.s32.totalorder %s9, 3
    %p129 = pnand %p127, %p128
    %p130 = pneg %p129
    // Predicated region
    $region9: #{decode_block_forward.5} parent=5 // pred_check
      _
    $region10: #{decode_block_forward.5} parent=5 // pred_check_branch
      %132 = sbr.rel (%p129) target = $region12
    $region11: #{decode_block_forward.5} parent=5 // pred_region
      %s133 = ssub.s32 %s9, 1
      // Predicated region
      $region13: #{decode_block_forward.5} parent=11 // pred_check
        %p134 = pneg %p70
      $region14: #{decode_block_forward.5} parent=11 // pred_check_branch
        %136 = sbr.rel (%p134) target = $region16
      $region15: #{decode_block_forward.5} parent=11 // pred_region
        _
      $region16: #{decode_block_forward.5} parent=11 // pred_fallthru
        _
      // Predicated region
      $region17: #{decode_block_forward.5} parent=11 // pred_check
        %p137 = pneg %p91
      $region18: #{decode_block_forward.5} parent=11 // pred_check_branch
        %139 = sbr.rel (%p137) target = $region20
      $region19: #{decode_block_forward.5} parent=11 // pred_region
        _
      $region20: #{decode_block_forward.5} parent=11 // pred_fallthru
        _
    $region12: #{decode_block_forward.5} parent=5 // pred_fallthru
      _
    %p140 = scmp.lt.s32.totalorder %s9, 2
    // Predicated region
    $region21: #{decode_block_forward.5} parent=5 // pred_check
      %p141 = pneg %p140
    $region22: #{decode_block_forward.5} parent=5 // pred_check_branch
      %143 = sbr.rel (%p141) target = $region24
    $region23: #{decode_block_forward.5} parent=5 // pred_region
      // Predicated region
      $region25: #{decode_block_forward.5} parent=23 // pred_check
        %p144 = pneg %p43
      $region26: #{decode_block_forward.5} parent=23 // pred_check_branch
        %146 = sbr.rel (%p144) target = $region28
      $region27: #{decode_block_forward.5} parent=23 // pred_region
        %p147 = scmp.lt.s32.totalorder %s16, 1
        %s148 = scalar_select %p147, %s16, 1
        %p149 = scmp.lt.s32.totalorder %s17, 0
        %s150 = scalar_select %p149, %s17, 0
        %s151 = sadd.s32 %s150, %s148
        %s152 = smul.addr %s151, 8
        %s153 = scalar_lea.vmem %s0, %s152
      $region28: #{decode_block_forward.5} parent=23 // pred_fallthru
        _
    $region24: #{decode_block_forward.5} parent=5 // pred_fallthru
      _
    %p154 = scmp.le.s32.totalorder 1, %s9
    %p155 = scmp.lt.s32.totalorder %s9, 3
    %p156 = pnand %p154, %p155
    %p157 = pneg %p156
    // Predicated region
    $region29: #{decode_block_forward.5} parent=5 // pred_check
      _
    $region30: #{decode_block_forward.5} parent=5 // pred_check_branch
      %159 = sbr.rel (%p156) target = $region32
    $region31: #{decode_block_forward.5} parent=5 // pred_region
      %s160 = ssub.s32 %s9, 1
      %p161 = scmp.lt.s32.totalorder %s18, 1
      %s162 = scalar_select %p161, %s18, 1
      %p163 = scmp.lt.s32.totalorder %s19, 0
      %s164 = scalar_select %p163, %s19, 0
      %s165 = sadd.s32 %s164, %s162
      %s166 = smul.addr %s165, 8
      %s167 = scalar_lea.vmem %s0, %s166
      %p168 = pneg %p49
      %p169 = pneg %p46
      %p170 = pneg %p70
      %p171 = pneg %p67
      %p172 = pneg %p91
      %p173 = pneg %p88
      %p174 = pneg %p119
      %p175 = pneg %p116
      %p176 = scmp.lt.s32.totalorder %s18, 1
      %s177 = scalar_select %p176, %s18, 1
      %p178 = scmp.lt.s32.totalorder %s19, 0
      %s179 = scalar_select %p178, %s19, 0
      %s180 = sadd.s32 %s179, %s177
      %s181 = smul.addr %s180, 8
      %s182 = scalar_lea.vmem %s3, %s181
      %p183 = scmp.lt.s32.totalorder %s18, 1
      %s184 = scalar_select %p183, %s18, 1
      %p185 = scmp.lt.s32.totalorder %s19, 0
      %s186 = scalar_select %p185, %s19, 0
      %s187 = sadd.s32 %s186, %s184
      %s188 = smul.addr %s187, 8
      %s189 = scalar_lea.vmem %s0, %s188
      %p190 = scmp.lt.s32.totalorder %s18, 1
      %s191 = scalar_select %p190, %s18, 1
      %p192 = scmp.lt.s32.totalorder %s19, 0
      %s193 = scalar_select %p192, %s19, 0
      %s194 = sadd.s32 %s193, %s191
      %s195 = smul.addr %s194, 8
      %s196 = scalar_lea.vmem %s3, %s195
      %v197 = vld [vmem:[%s189] sm:$0xff]
      %v198 = vld [vmem:[%s1] sm:$0x1]
      %v200 = vlaneseq
      %v201 = vshrl.u32 %v200, 7
      %v202 = vsub.s32 0, %v201
      %v203 = vrot.slane %v198, %v202
      %v205 = vmul.f32 %v197, %v203
      %v206 = vld [vmem:[%s2] sm:$0x1]
      %v208 = vlaneseq
      %v209 = vshrl.u32 %v208, 7
      %v210 = vsub.s32 0, %v209
      %v211 = vrot.slane %v206, %v210
      %v213 = vadd.f32 %v205, %v211
      %v214 = vmax.f32 %v213, 0.0
      %vm215 = vcmask 523264
      %216 = vst.msk [vmem:[%s196] sm:$0xff] %vm215, %v214
      %p217 = scmp.lt.s32.totalorder %s18, 1
      %s218 = scalar_select %p217, %s18, 1
      %p219 = scmp.lt.s32.totalorder %s19, 0
      %s220 = scalar_select %p219, %s19, 0
      %s221 = sadd.s32 %s220, %s218
      %s222 = smul.addr %s221, 8
      %s223 = scalar_lea.vmem %s3, %s222
      // Predicated region
      $region33: #{decode_block_forward.5} parent=31 // pred_check
        %p224 = pneg %p116
      $region34: #{decode_block_forward.5} parent=31 // pred_check_branch
        %226 = sbr.rel (%p224) target = $region36
      $region35: #{decode_block_forward.5} parent=31 // pred_region
        _
      $region36: #{decode_block_forward.5} parent=31 // pred_fallthru
        _
    $region32: #{decode_block_forward.5} parent=5 // pred_fallthru
      _
    %p227 = scmp.le.s32.totalorder 2, %s9
    // Predicated region
    $region37: #{decode_block_forward.5} parent=5 // pred_check
      %p228 = pneg %p227
    $region38: #{decode_block_forward.5} parent=5 // pred_check_branch
      %230 = sbr.rel (%p228) target = $region40
    $region39: #{decode_block_forward.5} parent=5 // pred_region
      %s231 = ssub.s32 %s9, 2
      // Predicated region
      $region41: #{decode_block_forward.5} parent=39 // pred_check
        %p232 = pneg %p122
      $region42: #{decode_block_forward.5} parent=39 // pred_check_branch
        %234 = sbr.rel (%p232) target = $region44
      $region43: #{decode_block_forward.5} parent=39 // pred_region
        %p235 = scmp.lt.s32.totalorder %s20, 1
        %s236 = scalar_select %p235, %s20, 1
        %p237 = scmp.lt.s32.totalorder %s21, 0
        %s238 = scalar_select %p237, %s21, 0
        %s239 = sadd.s32 %s238, %s236
        %s240 = smul.addr %s239, 8
        %s241 = scalar_lea.vmem %s3, %s240
      $region44: #{decode_block_forward.5} parent=39 // pred_fallthru
        _
    $region40: #{decode_block_forward.5} parent=5 // pred_fallthru
      _
  $region6: #{decode_block_forward.5} parent=0 // loop_footer
    %s13 = sadd.s32 1, %s9
  $region7: #{decode_block_forward.5} parent=0 // loop_footer_branch
    %8 = sbr.rel target = $region3
  $region8: #{decode_block_forward.5} parent=0 // loop_exit
    _

// kernel: decode_block_forward.4
$region0: #{decode_block_forward.4}
  #allocation0 [shape = 'u32[]', space=smem, size = 0x4, offset = 0x4, fixed_abs, tag = 'smem constant byte address 0x4 - core index']
  #allocation1 [shape = 'u32[144,128]{1,0:T(1,128)}', space=vmem, size = 0x12000, scoped, tag = 'internal scratch']
  %s0 = inlined_call_operand.vmem [shape: f32[2,10,10,8], index: 0, kind: input, shape index: {}, may-alias: {0,1}]
  %s1 = inlined_call_operand.vmem [shape: f32[2,10,10,8], index: 1, kind: input, shape index: {}, may-alias: {0,1}]
  %s2 = inlined_call_operand.vmem [shape: bf16[3,3,8,8], index: 2, kind: input, shape index: {}]
  %s3 = inlined_call_operand.vmem [shape: f32[1,1,8], index: 3, kind: input, shape index: {}]
  %s4 = inlined_call_operand.vmem [shape: f32[1,1,8], index: 4, kind: input, shape index: {}]
  %s5 = inlined_call_operand.vmem [shape: f32[2,8,8,8], index: 5, kind: output, shape index: {0}]
  %s6 = inlined_call_operand.vmem [shape: f32[2,1,2,8], index: 6, kind: output, shape index: {1}]
  %7 = xla_tuple %s5, %s6
  %s8 = sld [smem:[#allocation0]]
  $region61: #{decode_block_forward.4} parent=0
    _
  %s10 = ssub.s32 1, %s8
  %s11 = scalar_select 0, %s10, %s8
  loop: start=0, step=1, limit=4
  $region2: #{decode_block_forward.4} parent=0 // loop_pre_header
    _
  $region3: #{decode_block_forward.4} parent=0 // loop_header
    %s13 = sphi 0, %s17
    %p14 = scmp.ge.s32.totalorder %s13, 4
    %s20 = sphi 0, %s32
    %s21 = sphi 0, %s28
    %s22 = sphi 0, %s20
    %s23 = sphi 0, %s21
    %s24 = sphi 0, %s22
    %s25 = sphi 0, %s23
    %s37 = sphi 0, %s39
    %s40 = sphi 0, %s37
    %s41 = sphi 0, %s40
    %s57 = sphi 0, %s41
    %s69 = sphi 0, %s71
    %s72 = sphi 0, %s69
    %s73 = sphi 0, %s72
    %s89 = sphi 0, %s73
    %s93 = sphi 0, %s93
    %s95 = sphi 0, %s93
    %s96 = sphi 0, %s95
    %s110 = sphi 0, %s96
    %s114 = sphi 0, %s114
    %s116 = sphi 0, %s114
    %s117 = sphi 0, %s116
    %s131 = sphi 0, %s117
    %s135 = sphi 0, %s135
    %s137 = sphi 0, %s135
    %s138 = sphi 0, %s137
    %s152 = sphi 0, %s138
    %s160 = sphi 0, %s162
    %s163 = sphi 0, %s160
    %s164 = sphi 0, %s163
    %s180 = sphi 0, %s164
    %s188 = sphi 0, %s190
    %s191 = sphi 0, %s188
    %s192 = sphi 0, %s191
    %s208 = sphi 0, %s192
  $region4: #{decode_block_forward.4} parent=0 // loop_header_branch
    %16 = sbr.rel (%p14) target = $region8
  $region5: #{decode_block_forward.4} parent=0 // loop_body
    %s18 = ssub.s32 %s13, 1
    %s19 = ssub.s32 %s13, 2
    %s26 = sadd.s32 1, %s21
    %p27 = scmp.ge.s32.totalorder %s26, 1
    %s28 = scalar_select %p27, 0, %s26
    %s29 = sadd.s32 1, %s20
    %s30 = scalar_select %p27, %s29, %s20
    %p31 = scmp.ge.s32.totalorder %s30, 2
    %s32 = scalar_select %p31, 0, %s30
    %s33 = ssub.s32 %s20, %s32
    %s34 = ssub.s32 %s21, %s28
    %s35 = sor.u32 %s33, %s34
    %p36 = scmp.eq.s32.totalorder %s35, 0
    %s38 = sadd.s32 %s37, 1
    %s39 = scalar_select %p36, %s37, %s38
    %p42 = pneg %p36
    %p43 = scmp.eq.s32.totalorder %s13, 1
    %p44 = por %p42, %p43
    %p45 = scmp.ne.s32.totalorder %s37, %s40
    %p46 = scmp.eq.s32.totalorder %s13, 0
    %p47 = por %p45, %p46
    %p48 = scmp.ne.s32.totalorder %s37, %s40
    %p49 = scmp.eq.s32.totalorder %s18, 1
    %p50 = por %p48, %p49
    %p51 = scmp.ne.s32.totalorder %s40, %s41
    %p52 = scmp.eq.s32.totalorder %s18, 0
    %p53 = por %p51, %p52
    %p54 = scmp.ne.s32.totalorder %s40, %s41
    %p55 = scmp.eq.s32.totalorder %s19, 1
    %p56 = por %p54, %p55
    %p58 = scmp.ne.s32.totalorder %s41, %s57
    %p59 = scmp.eq.s32.totalorder %s19, 0
    %p60 = por %p58, %p59
    %s61 = sadd.s32 %s21, 1
    %s62 = smul.u32 %s61, 4
    %s63 = sadd.s32 %s28, 1
    %s64 = smul.u32 %s63, 4
    %s65 = ssub.s32 %s20, %s32
    %s66 = ssub.s32 %s62, %s64
    %s67 = sor.u32 %s65, %s66
    %p68 = scmp.eq.s32.totalorder %s67, 0
    %s70 = sadd.s32 %s69, 1
    %s71 = scalar_select %p68, %s69, %s70
    %p74 = pneg %p68
    %p75 = scmp.eq.s32.totalorder %s13, 1
    %p76 = por %p74, %p75
    %p77 = scmp.ne.s32.totalorder %s69, %s72
    %p78 = scmp.eq.s32.totalorder %s13, 0
    %p79 = por %p77, %p78
    %p80 = scmp.ne.s32.totalorder %s69, %s72
    %p81 = scmp.eq.s32.totalorder %s18, 1
    %p82 = por %p80, %p81
    %p83 = scmp.ne.s32.totalorder %s72, %s73
    %p84 = scmp.eq.s32.totalorder %s18, 0
    %p85 = por %p83, %p84
    %p86 = scmp.ne.s32.totalorder %s72, %s73
    %p87 = scmp.eq.s32.totalorder %s19, 1
    %p88 = por %p86, %p87
    %p90 = scmp.ne.s32.totalorder %s73, %s89
    %p91 = scmp.eq.s32.totalorder %s19, 0
    %p92 = por %p90, %p91
    %s94 = sadd.s32 %s93, 1
    %p97 = scmp.eq.s32.totalorder %s13, 1
    %p98 = scmp.ne.s32.totalorder %s93, %s95
    %p99 = scmp.eq.s32.totalorder %s13, 0
    %p100 = por %p98, %p99
    %p101 = scmp.ne.s32.totalorder %s93, %s95
    %p102 = scmp.eq.s32.totalorder %s18, 1
    %p103 = por %p101, %p102
    %p104 = scmp.ne.s32.totalorder %s95, %s96
    %p105 = scmp.eq.s32.totalorder %s18, 0
    %p106 = por %p104, %p105
    %p107 = scmp.ne.s32.totalorder %s95, %s96
    %p108 = scmp.eq.s32.totalorder %s19, 1
    %p109 = por %p107, %p108
    %p111 = scmp.ne.s32.totalorder %s96, %s110
    %p112 = scmp.eq.s32.totalorder %s19, 0
    %p113 = por %p111, %p112
    %s115 = sadd.s32 %s114, 1
    %p118 = scmp.eq.s32.totalorder %s13, 1
    %p119 = scmp.ne.s32.totalorder %s114, %s116
    %p120 = scmp.eq.s32.totalorder %s13, 0
    %p121 = por %p119, %p120
    %p122 = scmp.ne.s32.totalorder %s114, %s116
    %p123 = scmp.eq.s32.totalorder %s18, 1
    %p124 = por %p122, %p123
    %p125 = scmp.ne.s32.totalorder %s116, %s117
    %p126 = scmp.eq.s32.totalorder %s18, 0
    %p127 = por %p125, %p126
    %p128 = scmp.ne.s32.totalorder %s116, %s117
    %p129 = scmp.eq.s32.totalorder %s19, 1
    %p130 = por %p128, %p129
    %p132 = scmp.ne.s32.totalorder %s117, %s131
    %p133 = scmp.eq.s32.totalorder %s19, 0
    %p134 = por %p132, %p133
    %s136 = sadd.s32 %s135, 1
    %p139 = scmp.eq.s32.totalorder %s13, 1
    %p140 = scmp.ne.s32.totalorder %s135, %s137
    %p141 = scmp.eq.s32.totalorder %s13, 0
    %p142 = por %p140, %p141
    %p143 = scmp.ne.s32.totalorder %s135, %s137
    %p144 = scmp.eq.s32.totalorder %s18, 1
    %p145 = por %p143, %p144
    %p146 = scmp.ne.s32.totalorder %s137, %s138
    %p147 = scmp.eq.s32.totalorder %s18, 0
    %p148 = por %p146, %p147
    %p149 = scmp.ne.s32.totalorder %s137, %s138
    %p150 = scmp.eq.s32.totalorder %s19, 1
    %p151 = por %p149, %p150
    %p153 = scmp.ne.s32.totalorder %s138, %s152
    %p154 = scmp.eq.s32.totalorder %s19, 0
    %p155 = por %p153, %p154
    %s156 = ssub.s32 %s20, %s32
    %s157 = ssub.s32 %s21, %s28
    %s158 = sor.u32 %s156, %s157
    %p159 = scmp.eq.s32.totalorder %s158, 0
    %s161 = sadd.s32 %s160, 1
    %s162 = scalar_select %p159, %s160, %s161
    %p165 = pneg %p159
    %p166 = scmp.eq.s32.totalorder %s13, 1
    %p167 = por %p165, %p166
    %p168 = scmp.ne.s32.totalorder %s160, %s163
    %p169 = scmp.eq.s32.totalorder %s13, 0
    %p170 = por %p168, %p169
    %p171 = scmp.ne.s32.totalorder %s160, %s163
    %p172 = scmp.eq.s32.totalorder %s18, 1
    %p173 = por %p171, %p172
    %p174 = scmp.ne.s32.totalorder %s163, %s164
    %p175 = scmp.eq.s32.totalorder %s18, 0
    %p176 = por %p174, %p175
    %p177 = scmp.ne.s32.totalorder %s163, %s164
    %p178 = scmp.eq.s32.totalorder %s19, 1
    %p179 = por %p177, %p178
    %p181 = scmp.ne.s32.totalorder %s164, %s180
    %p182 = scmp.eq.s32.totalorder %s19, 0
    %p183 = por %p181, %p182
    %s184 = ssub.s32 %s20, %s32
    %s185 = ssub.s32 %s21, %s28
    %s186 = sor.u32 %s184, %s185
    %p187 = scmp.eq.s32.totalorder %s186, 0
    %s189 = sadd.s32 %s188, 1
    %s190 = scalar_select %p187, %s188, %s189
    %p193 = pneg %p187
    %p194 = scmp.eq.s32.totalorder %s13, 1
    %p195 = por %p193, %p194
    %p196 = scmp.ne.s32.totalorder %s188, %s191
    %p197 = scmp.eq.s32.totalorder %s13, 0
    %p198 = por %p196, %p197
    %p199 = scmp.ne.s32.totalorder %s188, %s191
    %p200 = scmp.eq.s32.totalorder %s18, 1
    %p201 = por %p199, %p200
    %p202 = scmp.ne.s32.totalorder %s191, %s192
    %p203 = scmp.eq.s32.totalorder %s18, 0
    %p204 = por %p202, %p203
    %p205 = scmp.ne.s32.totalorder %s191, %s192
    %p206 = scmp.eq.s32.totalorder %s19, 1
    %p207 = por %p205, %p206
    %p209 = scmp.ne.s32.totalorder %s192, %s208
    %p210 = scmp.eq.s32.totalorder %s19, 0
    %p211 = por %p209, %p210
    %p212 = scmp.le.s32.totalorder 1, %s13
    %p213 = scmp.lt.s32.totalorder %s13, 3
    %p214 = pnand %p212, %p213
    %p215 = pneg %p214
    // Predicated region
    $region9: #{decode_block_forward.4} parent=5 // pred_check
      _
    $region10: #{decode_block_forward.4} parent=5 // pred_check_branch
      %217 = sbr.rel (%p214) target = $region12
    $region11: #{decode_block_forward.4} parent=5 // pred_region
      %s218 = ssub.s32 %s13, 1
      // Predicated region
      $region13: #{decode_block_forward.4} parent=11 // pred_check
        %p219 = pneg %p106
      $region14: #{decode_block_forward.4} parent=11 // pred_check_branch
        %221 = sbr.rel (%p219) target = $region16
      $region15: #{decode_block_forward.4} parent=11 // pred_region
        _
      $region16: #{decode_block_forward.4} parent=11 // pred_fallthru
        _
      // Predicated region
      $region17: #{decode_block_forward.4} parent=11 // pred_check
        %p222 = pneg %p127
      $region18: #{decode_block_forward.4} parent=11 // pred_check_branch
        %224 = sbr.rel (%p222) target = $region20
      $region19: #{decode_block_forward.4} parent=11 // pred_region
        _
      $region20: #{decode_block_forward.4} parent=11 // pred_fallthru
        _
      // Predicated region
      $region21: #{decode_block_forward.4} parent=11 // pred_check
        %p225 = pneg %p148
      $region22: #{decode_block_forward.4} parent=11 // pred_check_branch
        %227 = sbr.rel (%p225) target = $region24
      $region23: #{decode_block_forward.4} parent=11 // pred_region
        _
      $region24: #{decode_block_forward.4} parent=11 // pred_fallthru
        _
    $region12: #{decode_block_forward.4} parent=5 // pred_fallthru
      _
    %p228 = scmp.lt.s32.totalorder %s13, 2
    // Predicated region
    $region25: #{decode_block_forward.4} parent=5 // pred_check
      %p229 = pneg %p228
    $region26: #{decode_block_forward.4} parent=5 // pred_check_branch
      %231 = sbr.rel (%p229) target = $region28
    $region27: #{decode_block_forward.4} parent=5 // pred_region
      // Predicated region
      $region29: #{decode_block_forward.4} parent=27 // pred_check
        %p232 = pneg %p47
      $region30: #{decode_block_forward.4} parent=27 // pred_check_branch
        %234 = sbr.rel (%p232) target = $region32
      $region31: #{decode_block_forward.4} parent=27 // pred_region
        %s235 = smul.u32 8, %s21
        %s236 = ssub.s32 10, %s235
        %p237 = scmp.lt.s32.totalorder %s236, 8
        %s238 = scalar_select %p237, %s236, 8
        %s239 = smul.u32 128, %s238
        %s240 = smul.u32 %s239, 2
        %p241 = scmp.lt.s32.totalorder %s20, 1
        %s242 = scalar_select %p241, %s20, 1
        %p243 = scmp.lt.s32.totalorder %s235, 9
        %s244 = scalar_select %p243, %s235, 9
        %s245 = smul.addr %s244, 2
        %s246 = smul.addr %s242, 20
        %s247 = sadd.s32 %s245, %s246
        %s248 = smul.addr %s247, 8
        %s249 = scalar_lea.vmem %s0, %s248
        %s250 = smul.u32 8, %s21
        %s251 = ssub.s32 10, %s250
        %p252 = scmp.lt.s32.totalorder %s251, 8
        %s253 = scalar_select %p252, %s251, 8
        %s254 = smul.u32 128, %s253
        %s255 = smul.u32 %s254, 2
      $region32: #{decode_block_forward.4} parent=27 // pred_fallthru
        _
      // Predicated region
      $region33: #{decode_block_forward.4} parent=27 // pred_check
        %p256 = pneg %p79
      $region34: #{decode_block_forward.4} parent=27 // pred_check_branch
        %258 = sbr.rel (%p256) target = $region36
      $region35: #{decode_block_forward.4} parent=27 // pred_region
        %s259 = sadd.s32 %s21, 1
        %s260 = smul.u32 %s259, 4
        %s261 = smul.u32 2, %s260
        %p262 = scmp.lt.s32.totalorder %s20, 1
        %s263 = scalar_select %p262, %s20, 1
        %p264 = scmp.lt.s32.totalorder %s261, 9
        %s265 = scalar_select %p264, %s261, 9
        %s266 = smul.addr %s265, 2
        %s267 = smul.addr %s263, 20
        %s268 = sadd.s32 %s266, %s267
        %s269 = smul.addr %s268, 8
        %s270 = scalar_lea.vmem %s1, %s269
        %s271 = sadd.s32 %s21, 1
        %s272 = smul.u32 %s271, 4
        %s273 = smul.u32 2, %s272
      $region36: #{decode_block_forward.4} parent=27 // pred_fallthru
        _
    $region28: #{decode_block_forward.4} parent=5 // pred_fallthru
      _
    %p274 = scmp.le.s32.totalorder 1, %s13
    %p275 = scmp.lt.s32.totalorder %s13, 3
    %p276 = pnand %p274, %p275
    %p277 = pneg %p276
    // Predicated region
    $region37: #{decode_block_forward.4} parent=5 // pred_check
      _
    $region38: #{decode_block_forward.4} parent=5 // pred_check_branch
      %279 = sbr.rel (%p276) target = $region40
    $region39: #{decode_block_forward.4} parent=5 // pred_region
      %s280 = ssub.s32 %s13, 1
      %s281 = smul.u32 8, %s23
      %s282 = ssub.s32 10, %s281
      %p283 = scmp.lt.s32.totalorder %s282, 8
      %s284 = scalar_select %p283, %s282, 8
      %s285 = smul.u32 128, %s284
      %s286 = smul.u32 %s285, 2
      %p287 = scmp.lt.s32.totalorder %s22, 1
      %s288 = scalar_select %p287, %s22, 1
      %p289 = scmp.lt.s32.totalorder %s281, 9
      %s290 = scalar_select %p289, %s281, 9
      %s291 = smul.addr %s290, 2
      %s292 = smul.addr %s288, 20
      %s293 = sadd.s32 %s291, %s292
      %s294 = smul.addr %s293, 8
      %s295 = scalar_lea.vmem %s0, %s294
      %p296 = pneg %p53
      %p297 = pneg %p50
      %s298 = sadd.s32 %s23, 1
      %s299 = smul.u32 %s298, 4
      %s300 = smul.u32 2, %s299
      %p301 = scmp.lt.s32.totalorder %s22, 1
      %s302 = scalar_select %p301, %s22, 1
      %p303 = scmp.lt.s32.totalorder %s300, 9
      %s304 = scalar_select %p303, %s300, 9
      %s305 = smul.addr %s304, 2
      %s306 = smul.addr %s302, 20
      %s307 = sadd.s32 %s305, %s306
      %s308 = smul.addr %s307, 8
      %s309 = scalar_lea.vmem %s1, %s308
      %p310 = pneg %p85
      %p311 = pneg %p82
      %p312 = pneg %p106
      %p313 = pneg %p103
      %p314 = pneg %p127
      %p315 = pneg %p124
      %p316 = pneg %p148
      %p317 = pneg %p145
      %p318 = pneg %p176
      %p319 = pneg %p173
      %s320 = smul.u32 8, %s23
      %p321 = scmp.lt.s32.totalorder %s22, 1
      %s322 = scalar_select %p321, %s22, 1
      %p323 = scmp.lt.s32.totalorder %s320, 7
      %s324 = scalar_select %p323, %s320, 7
      %s325 = smul.addr %s322, 8
      %s326 = sadd.s32 %s324, %s325
      %s327 = smul.addr %s326, 8
      %s328 = scalar_lea.vmem %s5, %s327
      %p329 = pneg %p204
      %p330 = pneg %p201
      %p331 = scmp.lt.s32.totalorder %s22, 1
      %s332 = scalar_select %p331, %s22, 1
      %p333 = scmp.lt.s32.totalorder %s23, 0
      %s334 = scalar_select %p333, %s23, 0
      %s335 = sadd.s32 %s334, %s332
      %s336 = smul.addr %s335, 2
      %s337 = scalar_lea.vmem %s6, %s336
      %s338 = smul.u32 8, %s23
      %s339 = ssub.s32 10, %s338
      %p340 = scmp.lt.s32.totalorder %s339, 8
      %s341 = scalar_select %p340, %s339, 8
      %s342 = smul.u32 128, %s341
      %s343 = smul.u32 %s342, 2
      %p344 = scmp.lt.s32.totalorder %s22, 1
      %s345 = scalar_select %p344, %s22, 1
      %p346 = scmp.lt.s32.totalorder %s338, 9
      %s347 = scalar_select %p346, %s338, 9
      %s348 = smul.addr %s347, 2
      %s349 = smul.addr %s345, 20
      %s350 = sadd.s32 %s348, %s349
      %s351 = smul.addr %s350, 8
      %s352 = scalar_lea.vmem %s0, %s351
      %s353 = smul.u32 8, %s23
      %s354 = ssub.s32 10, %s353
      %p355 = scmp.lt.s32.totalorder %s354, 8
      %s356 = scalar_select %p355, %s354, 8
      %s357 = smul.u32 128, %s356
      %s358 = smul.u32 %s357, 2
      %s359 = sadd.s32 %s23, 1
      %s360 = smul.u32 %s359, 4
      %s361 = smul.u32 2, %s360
      %p362 = scmp.lt.s32.totalorder %s22, 1
      %s363 = scalar_select %p362, %s22, 1
      %p364 = scmp.lt.s32.totalorder %s361, 9
      %s365 = scalar_select %p364, %s361, 9
      %s366 = smul.addr %s365, 2
      %s367 = smul.addr %s363, 20
      %s368 = sadd.s32 %s366, %s367
      %s369 = smul.addr %s368, 8
      %s370 = scalar_lea.vmem %s1, %s369
      %s371 = sadd.s32 %s23, 1
      %s372 = smul.u32 %s371, 4
      %s373 = smul.u32 2, %s372
      %s374 = smul.u32 8, %s23
      %p375 = scmp.lt.s32.totalorder %s22, 1
      %s376 = scalar_select %p375, %s22, 1
      %p377 = scmp.lt.s32.totalorder %s374, 7
      %s378 = scalar_select %p377, %s374, 7
      %s379 = smul.addr %s376, 8
      %s380 = sadd.s32 %s378, %s379
      %s381 = smul.addr %s380, 8
      %s382 = scalar_lea.vmem %s5, %s381
      %s383 = smul.u32 8, %s23
      %p384 = scmp.lt.s32.totalorder %s22, 1
      %s385 = scalar_select %p384, %s22, 1
      %p386 = scmp.lt.s32.totalorder %s23, 0
      %s387 = scalar_select %p386, %s23, 0
      %s388 = sadd.s32 %s387, %s385
      %s389 = smul.addr %s388, 2
      %s390 = scalar_lea.vmem %s6, %s389
      %v392 = vld [vmem:[%s352] sm:$0xff]
      %v393 = vld [vmem:[%s352 + $0x8] sm:$0x3]
      %v394 = vld [vmem:[%s352 + $0x10] sm:$0xff]
      %v395 = vld [vmem:[%s352 + $0x18] sm:$0x3]
      %v396 = vld [vmem:[%s352 + $0x20] sm:$0xff]
      %v397 = vld [vmem:[%s352 + $0x28] sm:$0x3]
      %v398 = vld [vmem:[%s352 + $0x30] sm:$0xff]
      %v399 = vld [vmem:[%s352 + $0x38] sm:$0x3]
      %v400 = vld [vmem:[%s352 + $0x40] sm:$0xff]
      %v401 = vld [vmem:[%s352 + $0x48] sm:$0x3]
      %v402 = vld [vmem:[%s352 + $0x50] sm:$0xff]
      %v403 = vld [vmem:[%s352 + $0x58] sm:$0x3]
      %v404 = vld [vmem:[%s352 + $0x60] sm:$0xff]
      %v405 = vld [vmem:[%s352 + $0x68] sm:$0x3]
      %v406 = vld [vmem:[%s352 + $0x70] sm:$0xff]
      %v407 = vld [vmem:[%s352 + $0x78] sm:$0x3]
      %v408 = vld [vmem:[%s370] sm:$0xff]
      %v409 = vld [vmem:[%s370 + $0x8] sm:$0x3]
      %v410 = vld [vmem:[%s370 + $0x10] sm:$0xff]
      %v411 = vld [vmem:[%s370 + $0x18] sm:$0x3]
      %v412 = vld [vmem:[%s3] sm:$0x1]
      %v414 = vlaneseq
      %v415 = vshrl.u32 %v414, 7
      %v416 = vsub.s32 0, %v415
      %v417 = vrot.slane %v412, %v416
      %v419 = vmul.f32 %v392, %v417
      %v420 = vmul.f32 %v393, %v417
      %v421 = vmul.f32 %v394, %v417
      %v422 = vmul.f32 %v395, %v417
      %v423 = vmul.f32 %v396, %v417
      %v424 = vmul.f32 %v397, %v417
      %v425 = vmul.f32 %v398, %v417
      %v426 = vmul.f32 %v399, %v417
      %v427 = vmul.f32 %v400, %v417
      %v428 = vmul.f32 %v401, %v417
      %v429 = vmul.f32 %v402, %v417
      %v430 = vmul.f32 %v403, %v417
      %v431 = vmul.f32 %v404, %v417
      %v432 = vmul.f32 %v405, %v417
      %v433 = vmul.f32 %v406, %v417
      %v434 = vmul.f32 %v407, %v417
      %v435 = vmul.f32 %v408, %v417
      %v436 = vmul.f32 %v409, %v417
      %v437 = vmul.f32 %v410, %v417
      %v438 = vmul.f32 %v411, %v417
      %v439 = vld [vmem:[%s4] sm:$0x1]
      %v441 = vlaneseq
      %v442 = vshrl.u32 %v441, 7
      %v443 = vsub.s32 0, %v442
      %v444 = vrot.slane %v439, %v443
      %v446 = vadd.f32 %v419, %v444
      %v447 = vadd.f32 %v420, %v444
      %v448 = vadd.f32 %v421, %v444
      %v449 = vadd.f32 %v422, %v444
      %v450 = vadd.f32 %v423, %v444
      %v451 = vadd.f32 %v424, %v444
      %v452 = vadd.f32 %v425, %v444
      %v453 = vadd.f32 %v426, %v444
      %v454 = vadd.f32 %v427, %v444
      %v455 = vadd.f32 %v428, %v444
      %v456 = vadd.f32 %v429, %v444
      %v457 = vadd.f32 %v430, %v444
      %v458 = vadd.f32 %v431, %v444
      %v459 = vadd.f32 %v432, %v444
      %v460 = vadd.f32 %v433, %v444
      %v461 = vadd.f32 %v434, %v444
      %v462 = vadd.f32 %v435, %v444
      %v463 = vadd.f32 %v436, %v444
      %v464 = vadd.f32 %v437, %v444
      %v465 = vadd.f32 %v438, %v444
      %v466 = vmax.f32 %v446, 0.0
      %v467 = vmax.f32 %v447, 0.0
      %v468 = vmax.f32 %v448, 0.0
      %v469 = vmax.f32 %v449, 0.0
      %v470 = vmax.f32 %v450, 0.0
      %v471 = vmax.f32 %v451, 0.0
      %v472 = vmax.f32 %v452, 0.0
      %v473 = vmax.f32 %v453, 0.0
      %v474 = vmax.f32 %v454, 0.0
      %v475 = vmax.f32 %v455, 0.0
      %v476 = vmax.f32 %v456, 0.0
      %v477 = vmax.f32 %v457, 0.0
      %v478 = vmax.f32 %v458, 0.0
      %v479 = vmax.f32 %v459, 0.0
      %v480 = vmax.f32 %v460, 0.0
      %v481 = vmax.f32 %v461, 0.0
      %v482 = vmax.f32 %v462, 0.0
      %v483 = vmax.f32 %v463, 0.0
      %v484 = vmax.f32 %v464, 0.0
      %v485 = vmax.f32 %v465, 0.0
      %s486 = smul.u32 %s23, 8
      %v487 = vstv %s486
      %v488 = vadd.s32 %v487, 1
      %v489 = vadd.s32 %v487, 2
      %v490 = vadd.s32 %v487, 3
      %v491 = vadd.s32 %v487, 4
      %v492 = vadd.s32 %v487, 5
      %v493 = vadd.s32 %v487, 6
      %v494 = vadd.s32 %v487, 7
      %v495 = vadd.s32 %v487, 8
      %v496 = vadd.s32 %v487, 9
      %v497 = vlaneseq
      %v498 = vshrl.u32 %v497, 7
      %v499 = vadd.s32 %v498, 8
      %vm500 = vcmp.ge.s32.totalorder %v487, 1
      %vm501 = vcmp.ge.s32.totalorder %v488, 1
      %vm502 = vcmp.ge.s32.totalorder %v489, 1
      %vm503 = vcmp.ge.s32.totalorder %v490, 1
      %vm504 = vcmp.ge.s32.totalorder %v491, 1
      %vm505 = vcmp.ge.s32.totalorder %v492, 1
      %vm506 = vcmp.ge.s32.totalorder %v493, 1
      %vm507 = vcmp.ge.s32.totalorder %v494, 1
      %vm508 = vcmp.ge.s32.totalorder %v495, 1
      %vm509 = vcmp.ge.s32.totalorder %v496, 1
      %vm510 = vcmp.le.s32.totalorder %v487, 8
      %vm511 = vcmp.le.s32.totalorder %v488, 8
      %vm512 = vcmp.le.s32.totalorder %v489, 8
      %vm513 = vcmp.le.s32.totalorder %v490, 8
      %vm514 = vcmp.le.s32.totalorder %v491, 8
      %vm515 = vcmp.le.s32.totalorder %v492, 8
      %vm516 = vcmp.le.s32.totalorder %v493, 8
      %vm517 = vcmp.le.s32.totalorder %v494, 8
      %vm518 = vcmp.le.s32.totalorder %v495, 8
      %vm519 = vcmp.le.s32.totalorder %v496, 8
      %vm520 = vmand %vm500, %vm510
      %vm521 = vmand %vm501, %vm511
      %vm522 = vmand %vm502, %vm512
      %vm523 = vmand %vm503, %vm513
      %vm524 = vmand %vm504, %vm514
      %vm525 = vmand %vm505, %vm515
      %vm526 = vmand %vm506, %vm516
      %vm527 = vmand %vm507, %vm517
      %vm528 = vmand %vm508, %vm518
      %vm529 = vmand %vm509, %vm519
      %vm530 = vcmp.ge.s32.totalorder %v498, 1
      %vm531 = vcmp.ge.s32.totalorder %v499, 1
      %vm532 = vmand %vm520, %vm530
      %vm533 = vmand %vm520, %vm531
      %vm534 = vmand %vm521, %vm530
      %vm535 = vmand %vm521, %vm531
      %vm536 = vmand %vm522, %vm530
      %vm537 = vmand %vm522, %vm531
      %vm538 = vmand %vm523, %vm530
      %vm539 = vmand %vm523, %vm531
      %vm540 = vmand %vm524, %vm530
      %vm541 = vmand %vm524, %vm531
      %vm542 = vmand %vm525, %vm530
      %vm543 = vmand %vm525, %vm531
      %vm544 = vmand %vm526, %vm530
      %vm545 = vmand %vm526, %vm531
      %vm546 = vmand %vm527, %vm530
      %vm547 = vmand %vm527, %vm531
      %vm548 = vmand %vm528, %vm530
      %vm549 = vmand %vm528, %vm531
      %vm550 = vmand %vm529, %vm530
      %vm551 = vmand %vm529, %vm531
      %vm552 = vcmp.le.s32.totalorder %v498, 8
      %vm553 = vcmp.le.s32.totalorder %v499, 8
      %vm554 = vmand %vm532, %vm552
      %vm555 = vmand %vm533, %vm553
      %vm556 = vmand %vm534, %vm552
      %vm557 = vmand %vm535, %vm553
      %vm558 = vmand %vm536, %vm552
      %vm559 = vmand %vm537, %vm553
      %vm560 = vmand %vm538, %vm552
      %vm561 = vmand %vm539, %vm553
      %vm562 = vmand %vm540, %vm552
      %vm563 = vmand %vm541, %vm553
      %vm564 = vmand %vm542, %vm552
      %vm565 = vmand %vm543, %vm553
      %vm566 = vmand %vm544, %vm552
      %vm567 = vmand %vm545, %vm553
      %vm568 = vmand %vm546, %vm552
      %vm569 = vmand %vm547, %vm553
      %vm570 = vmand %vm548, %vm552
      %vm571 = vmand %vm549, %vm553
      %vm572 = vmand %vm550, %vm552
      %vm573 = vmand %vm551, %vm553
      %v574 = vsel %vm554, %v466, 0.0
      %v575 = vsel %vm555, %v467, 0.0
      %v576 = vsel %vm556, %v468, 0.0
      %v577 = vsel %vm557, %v469, 0.0
      %v578 = vsel %vm558, %v470, 0.0
      %v579 = vsel %vm559, %v471, 0.0
      %v580 = vsel %vm560, %v472, 0.0
      %v581 = vsel %vm561, %v473, 0.0
      %v582 = vsel %vm562, %v474, 0.0
      %v583 = vsel %vm563, %v475, 0.0
      %v584 = vsel %vm564, %v476, 0.0
      %v585 = vsel %vm565, %v477, 0.0
      %v586 = vsel %vm566, %v478, 0.0
      %v587 = vsel %vm567, %v479, 0.0
      %v588 = vsel %vm568, %v480, 0.0
      %v589 = vsel %vm569, %v481, 0.0
      %v590 = vsel %vm570, %v482, 0.0
      %v591 = vsel %vm571, %v483, 0.0
      %v592 = vsel %vm572, %v484, 0.0
      %v593 = vsel %vm573, %v485, 0.0
      %v594 = vld [vmem:[%s2] sm:$0xf]
      %v595 = vld [vmem:[%s2 + $0x4] sm:$0xf]
      %v596 = vld [vmem:[%s2 + $0x8] sm:$0xf]
      %v597 = vld [vmem:[%s2 + $0xc] sm:$0xf]
      %v598 = vld [vmem:[%s2 + $0x10] sm:$0xf]
      %v599 = vld [vmem:[%s2 + $0x14] sm:$0xf]
      %v600 = vld [vmem:[%s2 + $0x18] sm:$0xf]
      %v601 = vld [vmem:[%s2 + $0x1c] sm:$0xf]
      %v602 = vld [vmem:[%s2 + $0x20] sm:$0xf]
      %v603 = vpack.c.bf16 %v576, %v574
      %v604 = vpack.c.bf16 %v580, %v578
      %v605 = vpack.c.bf16 %v584, %v582
      %v606 = vpack.c.bf16 %v588, %v586
      %vm623 = vcmask 1046528
      %v624 = vrot.slane %v574, 1
      %v625 = vrot.slane %v575, 1
      %v626 = vsel %vm623, %v624, %v625
      %v627 = vrot.slane %v576, 1
      %v628 = vrot.slane %v577, 1
      %v629 = vsel %vm623, %v627, %v628
      %v630 = vrot.slane %v578, 1
      %v631 = vrot.slane %v579, 1
      %v632 = vsel %vm623, %v630, %v631
      %v633 = vrot.slane %v580, 1
      %v634 = vrot.slane %v581, 1
      %v635 = vsel %vm623, %v633, %v634
      %v636 = vrot.slane %v582, 1
      %v637 = vrot.slane %v583, 1
      %v638 = vsel %vm623, %v636, %v637
      %v639 = vrot.slane %v584, 1
      %v640 = vrot.slane %v585, 1
      %v641 = vsel %vm623, %v639, %v640
      %v642 = vrot.slane %v586, 1
      %v643 = vrot.slane %v587, 1
      %v644 = vsel %vm623, %v642, %v643
      %v645 = vrot.slane %v588, 1
      %v646 = vrot.slane %v589, 1
      %v647 = vsel %vm623, %v645, %v646
      %v656 = vpack.c.bf16 %v629, %v626
      %v657 = vpack.c.bf16 %v635, %v632
      %v658 = vpack.c.bf16 %v641, %v638
      %v659 = vpack.c.bf16 %v647, %v644
      %vm660 = vcmask 64512
      %v662 = vsel %vm660, %v656, 0
      %v665 = vsel %vm660, %v657, 0
      %v668 = vsel %vm660, %v658, 0
      %v671 = vsel %vm660, %v659, 0
      %vm673 = vcmask 1043456
      %v675 = vsel %vm673, %v595, 0
      %677 = vmatprep.subr.bf16.mxu0 0
      %678 = vmatpush1.bf16.msra.mxu0 %v675
      %679 = vmatprep.subr.bf16.mxu0 0
      %680 = vmatpush1.bf16.msra.mxu0 0
      %681 = vmatprep.subr.bf16.mxu0 0
      %682 = vmatpush1.bf16.msra.mxu0 0
      %683 = vmatprep.subr.bf16.mxu0 0
      %684 = vmatpush1.bf16.msra.mxu0 0
      %685 = vmatprep.subr.bf16.mxu0 0
      %686 = vmatpush1.bf16.msra.mxu0 0
      %687 = vmatprep.subr.bf16.mxu0 0
      %688 = vmatpush1.bf16.msra.mxu0 0
      %689 = vmatprep.subr.bf16.mxu0 0
      %690 = vmatpush1.bf16.msra.mxu0 0
      %691 = vmatprep.subr.bf16.mxu0 0
      %692 = vmatpush1.bf16.msra.mxu0 0
      %693 = vmatprep.subr.bf16.mxu0 0
      %694 = vmatpush1.bf16.msra.mxu0 0
      %695 = vmatprep.subr.bf16.mxu0 0
      %696 = vmatpush1.bf16.msra.mxu0 0
      %697 = vmatprep.subr.bf16.mxu0 0
      %698 = vmatpush1.bf16.msra.mxu0 0
      %699 = vmatprep.subr.bf16.mxu0 0
      %700 = vmatpush1.bf16.msra.mxu0 0
      %701 = vmatprep.subr.bf16.mxu0 0
      %702 = vmatpush1.bf16.msra.mxu0 0
      %703 = vmatprep.subr.bf16.mxu0 0
      %704 = vmatpush1.bf16.msra.mxu0 0
      %705 = vmatprep.subr.bf16.mxu0 0
      %706 = vmatpush1.bf16.msra.mxu0 0
      %707 = vmatprep.subr.bf16.mxu0 0
      %708 = vmatpush1.bf16.msra.mxu0 0
      %709 = vmatprep.mubr.bf16.mxu0 0
      %710 = vmatmul.mubr.bf16.gmra.mrb[0].mxu0 %v662
      %v711 = vpop.f32.mrb[0].mxu0
      %v712 = vadd.f32 0.0, %v711
      %v713 = vpop.f32.mrb[0].mxu0
      %v714 = vpop.f32.mrb[0].mxu0
      %v715 = vadd.f32 0.0, %v714
      %v716 = vpop.f32.mrb[0].mxu0
      %717 = vmatprep.mubr.bf16.mxu0 0
      %718 = vmatmul.mubr.bf16.gmra.mrb[0].mxu0 %v665
      %v719 = vpop.f32.mrb[0].mxu0
      %v720 = vadd.f32 0.0, %v719
      %v721 = vpop.f32.mrb[0].mxu0
      %v722 = vpop.f32.mrb[0].mxu0
      %v723 = vadd.f32 0.0, %v722
      %v724 = vpop.f32.mrb[0].mxu0
      %725 = vmatprep.mubr.bf16.mxu0 0
      %726 = vmatmul.mubr.bf16.gmra.mrb[0].mxu0 %v668
      %v727 = vpop.f32.mrb[0].mxu0
      %v728 = vadd.f32 0.0, %v727
      %v729 = vpop.f32.mrb[0].mxu0
      %v730 = vpop.f32.mrb[0].mxu0
      %v731 = vadd.f32 0.0, %v730
      %v732 = vpop.f32.mrb[0].mxu0
      %733 = vmatprep.mubr.bf16.mxu0 0
      %734 = vmatmul.mubr.bf16.gmra.mrb[0].mxu0 %v671
      %v735 = vpop.f32.mrb[0].mxu0
      %v736 = vadd.f32 0.0, %v735
      %v737 = vpop.f32.mrb[0].mxu0
      %v738 = vpop.f32.mrb[0].mxu0
      %v739 = vadd.f32 0.0, %v738
      %v740 = vpop.f32.mrb[0].mxu0
      %741 = vdwg.mxu0
      %v743 = vsel %vm660, %v603, 0
      %v746 = vsel %vm660, %v604, 0
      %v749 = vsel %vm660, %v605, 0
      %v752 = vsel %vm660, %v606, 0
      %v755 = vsel %vm673, %v594, 0
      %757 = vmatprep.subr.bf16.mxu0 0
      %758 = vmatpush1.bf16.msra.mxu0 %v755
      %759 = vmatprep.subr.bf16.mxu0 0
      %760 = vmatpush1.bf16.msra.mxu0 0
      %761 = vmatprep.subr.bf16.mxu0 0
      %762 = vmatpush1.bf16.msra.mxu0 0
      %763 = vmatprep.subr.bf16.mxu0 0
      %764 = vmatpush1.bf16.msra.mxu0 0
      %765 = vmatprep.subr.bf16.mxu0 0
      %766 = vmatpush1.bf16.msra.mxu0 0
      %767 = vmatprep.subr.bf16.mxu0 0
      %768 = vmatpush1.bf16.msra.mxu0 0
      %769 = vmatprep.subr.bf16.mxu0 0
      %770 = vmatpush1.bf16.msra.mxu0 0
      %771 = vmatprep.subr.bf16.mxu0 0
      %772 = vmatpush1.bf16.msra.mxu0 0
      %773 = vmatprep.subr.bf16.mxu0 0
      %774 = vmatpush1.bf16.msra.mxu0 0
      %775 = vmatprep.subr.bf16.mxu0 0
      %776 = vmatpush1.bf16.msra.mxu0 0
      %777 = vmatprep.subr.bf16.mxu0 0
      %778 = vmatpush1.bf16.msra.mxu0 0
      %779 = vmatprep.subr.bf16.mxu0 0
      %780 = vmatpush1.bf16.msra.mxu0 0
      %781 = vmatprep.subr.bf16.mxu0 0
      %782 = vmatpush1.bf16.msra.mxu0 0
      %783 = vmatprep.subr.bf16.mxu0 0
      %784 = vmatpush1.bf16.msra.mxu0 0
      %785 = vmatprep.subr.bf16.mxu0 0
      %786 = vmatpush1.bf16.msra.mxu0 0
      %787 = vmatprep.subr.bf16.mxu0 0
      %788 = vmatpush1.bf16.msra.mxu0 0
      %789 = vmatprep.mubr.bf16.mxu0 0
      %790 = vmatmul.mubr.bf16.gmra.mrb[0].mxu0 %v743
      %v791 = vpop.f32.mrb[0].mxu0
      %v792 = vadd.f32 %v712, %v791
      %v793 = vpop.f32.mrb[0].mxu0
      %v794 = vpop.f32.mrb[0].mxu0
      %v795 = vadd.f32 %v715, %v794
      %v796 = vpop.f32.mrb[0].mxu0
      %797 = vmatprep.mubr.bf16.mxu0 0
      %798 = vmatmul.mubr.bf16.gmra.mrb[0].mxu0 %v746
      %v799 = vpop.f32.mrb[0].mxu0
      %v800 = vadd.f32 %v720, %v799
      %v801 = vpop.f32.mrb[0].mxu0
      %v802 = vpop.f32.mrb[0].mxu0
      %v803 = vadd.f32 %v723, %v802
      %v804 = vpop.f32.mrb[0].mxu0
      %805 = vmatprep.mubr.bf16.mxu0 0
      %806 = vmatmul.mubr.bf16.gmra.mrb[0].mxu0 %v749
      %v807 = vpop.f32.mrb[0].mxu0
      %v808 = vadd.f32 %v728, %v807
      %v809 = vpop.f32.mrb[0].mxu0
      %v810 = vpop.f32.mrb[0].mxu0
      %v811 = vadd.f32 %v731, %v810
      %v812 = vpop.f32.mrb[0].mxu0
      %813 = vmatprep.mubr.bf16.mxu0 0
      %814 = vmatmul.mubr.bf16.gmra.mrb[0].mxu0 %v752
      %v815 = vpop.f32.mrb[0].mxu0
      %v816 = vadd.f32 %v736, %v815
      %v817 = vpop.f32.mrb[0].mxu0
      %v818 = vpop.f32.mrb[0].mxu0
      %v819 = vadd.f32 %v739, %v818
      %v820 = vpop.f32.mrb[0].mxu0
      %821 = vdwg.mxu0
      %vm822 = vcmask 1045504
      %v823 = vrot.slane %v574, 2
      %v824 = vrot.slane %v575, 2
      %v825 = vsel %vm822, %v823, %v824
      %v826 = vrot.slane %v576, 2
      %v827 = vrot.slane %v577, 2
      %v828 = vsel %vm822, %v826, %v827
      %v829 = vrot.slane %v578, 2
      %v830 = vrot.slane %v579, 2
      %v831 = vsel %vm822, %v829, %v830
      %v832 = vrot.slane %v580, 2
      %v833 = vrot.slane %v581, 2
      %v834 = vsel %vm822, %v832, %v833
      %v835 = vrot.slane %v582, 2
      %v836 = vrot.slane %v583, 2
      %v837 = vsel %vm822, %v835, %v836
      %v838 = vrot.slane %v584, 2
      %v839 = vrot.slane %v585, 2
      %v840 = vsel %vm822, %v838, %v839
      %v841 = vrot.slane %v586, 2
      %v842 = vrot.slane %v587, 2
      %v843 = vsel %vm822, %v841, %v842
      %v844 = vrot.slane %v588, 2
      %v845 = vrot.slane %v589, 2
      %v846 = vsel %vm822, %v844, %v845
      %v855 = vpack.c.bf16 %v828, %v825
      %v856 = vpack.c.bf16 %v834, %v831
      %v857 = vpack.c.bf16 %v840, %v837
      %v858 = vpack.c.bf16 %v846, %v843
      %v860 = vsel %vm660, %v855, 0
      %v863 = vsel %vm660, %v856, 0
      %v866 = vsel %vm660, %v857, 0
      %v869 = vsel %vm660, %v858, 0
      %v872 = vsel %vm673, %v596, 0
      %874 = vmatprep.subr.bf16.mxu0 0
      %875 = vmatpush1.bf16.msra.mxu0 %v872
      %876 = vmatprep.subr.bf16.mxu0 0
      %877 = vmatpush1.bf16.msra.mxu0 0
      %878 = vmatprep.subr.bf16.mxu0 0
      %879 = vmatpush1.bf16.msra.mxu0 0
      %880 = vmatprep.subr.bf16.mxu0 0
      %881 = vmatpush1.bf16.msra.mxu0 0
      %882 = vmatprep.subr.bf16.mxu0 0
      %883 = vmatpush1.bf16.msra.mxu0 0
      %884 = vmatprep.subr.bf16.mxu0 0
      %885 = vmatpush1.bf16.msra.mxu0 0
      %886 = vmatprep.subr.bf16.mxu0 0
      %887 = vmatpush1.bf16.msra.mxu0 0
      %888 = vmatprep.subr.bf16.mxu0 0
      %889 = vmatpush1.bf16.msra.mxu0 0
      %890 = vmatprep.subr.bf16.mxu0 0
      %891 = vmatpush1.bf16.msra.mxu0 0
      %892 = vmatprep.subr.bf16.mxu0 0
      %893 = vmatpush1.bf16.msra.mxu0 0
      %894 = vmatprep.subr.bf16.mxu0 0
      %895 = vmatpush1.bf16.msra.mxu0 0
      %896 = vmatprep.subr.bf16.mxu0 0
      %897 = vmatpush1.bf16.msra.mxu0 0
      %898 = vmatprep.subr.bf16.mxu0 0
      %899 = vmatpush1.bf16.msra.mxu0 0
      %900 = vmatprep.subr.bf16.mxu0 0
      %901 = vmatpush1.bf16.msra.mxu0 0
      %902 = vmatprep.subr.bf16.mxu0 0
      %903 = vmatpush1.bf16.msra.mxu0 0
      %904 = vmatprep.subr.bf16.mxu0 0
      %905 = vmatpush1.bf16.msra.mxu0 0
      %906 = vmatprep.mubr.bf16.mxu0 0
      %907 = vmatmul.mubr.bf16.gmra.mrb[0].mxu0 %v860
      %v908 = vpop.f32.mrb[0].mxu0
      %v909 = vadd.f32 0.0, %v908
      %v910 = vpop.f32.mrb[0].mxu0
      %v911 = vpop.f32.mrb[0].mxu0
      %v912 = vadd.f32 0.0, %v911
      %v913 = vpop.f32.mrb[0].mxu0
      %914 = vmatprep.mubr.bf16.mxu0 0
      %915 = vmatmul.mubr.bf16.gmra.mrb[0].mxu0 %v863
      %v916 = vpop.f32.mrb[0].mxu0
      %v917 = vadd.f32 0.0, %v916
      %v918 = vpop.f32.mrb[0].mxu0
      %v919 = vpop.f32.mrb[0].mxu0
      %v920 = vadd.f32 0.0, %v919
      %v921 = vpop.f32.mrb[0].mxu0
      %922 = vmatprep.mubr.bf16.mxu0 0
      %923 = vmatmul.mubr.bf16.gmra.mrb[0].mxu0 %v866
      %v924 = vpop.f32.mrb[0].mxu0
      %v925 = vadd.f32 0.0, %v924
      %v926 = vpop.f32.mrb[0].mxu0
      %v927 = vpop.f32.mrb[0].mxu0
      %v928 = vadd.f32 0.0, %v927
      %v929 = vpop.f32.mrb[0].mxu0
      %930 = vmatprep.mubr.bf16.mxu0 0
      %931 = vmatmul.mubr.bf16.gmra.mrb[0].mxu0 %v869
      %v932 = vpop.f32.mrb[0].mxu0
      %v933 = vadd.f32 0.0, %v932
      %v934 = vpop.f32.mrb[0].mxu0
      %v935 = vpop.f32.mrb[0].mxu0
      %v936 = vadd.f32 0.0, %v935
      %v937 = vpop.f32.mrb[0].mxu0
      %938 = vdwg.mxu0
      %v939 = vadd.f32 %v792, %v909
      %v940 = vadd.f32 %v795, %v912
      %v941 = vadd.f32 %v800, %v917
      %v942 = vadd.f32 %v803, %v920
      %v943 = vadd.f32 %v808, %v925
      %v944 = vadd.f32 %v811, %v928
      %v945 = vadd.f32 %v816, %v933
      %v946 = vadd.f32 %v819, %v936
      %v947 = vpack.c.bf16 %v578, %v576
      %v948 = vpack.c.bf16 %v582, %v580
      %v949 = vpack.c.bf16 %v586, %v584
      %v950 = vpack.c.bf16 %v590, %v588
      %v952 = vsel %vm660, %v947, 0
      %v955 = vsel %vm660, %v948, 0
      %v958 = vsel %vm660, %v949, 0
      %v961 = vsel %vm660, %v950, 0
      %v964 = vsel %vm673, %v597, 0
      %966 = vmatprep.subr.bf16.mxu0 0
      %967 = vmatpush1.bf16.msra.mxu0 %v964
      %968 = vmatprep.subr.bf16.mxu0 0
      %969 = vmatpush1.bf16.msra.mxu0 0
      %970 = vmatprep.subr.bf16.mxu0 0
      %971 = vmatpush1.bf16.msra.mxu0 0
      %972 = vmatprep.subr.bf16.mxu0 0
      %973 = vmatpush1.bf16.msra.mxu0 0
      %974 = vmatprep.subr.bf16.mxu0 0
      %975 = vmatpush1.bf16.msra.mxu0 0
      %976 = vmatprep.subr.bf16.mxu0 0
      %977 = vmatpush1.bf16.msra.mxu0 0
      %978 = vmatprep.subr.bf16.mxu0 0
      %979 = vmatpush1.bf16.msra.mxu0 0
      %980 = vmatprep.subr.bf16.mxu0 0
      %981 = vmatpush1.bf16.msra.mxu0 0
      %982 = vmatprep.subr.bf16.mxu0 0
      %983 = vmatpush1.bf16.msra.mxu0 0
      %984 = vmatprep.subr.bf16.mxu0 0
      %985 = vmatpush1.bf16.msra.mxu0 0
      %986 = vmatprep.subr.bf16.mxu0 0
      %987 = vmatpush1.bf16.msra.mxu0 0
      %988 = vmatprep.subr.bf16.mxu0 0
      %989 = vmatpush1.bf16.msra.mxu0 0
      %990 = vmatprep.subr.bf16.mxu0 0
      %991 = vmatpush1.bf16.msra.mxu0 0
      %992 = vmatprep.subr.bf16.mxu0 0
      %993 = vmatpush1.bf16.msra.mxu0 0
      %994 = vmatprep.subr.bf16.mxu0 0
      %995 = vmatpush1.bf16.msra.mxu0 0
      %996 = vmatprep.subr.bf16.mxu0 0
      %997 = vmatpush1.bf16.msra.mxu0 0
      %998 = vmatprep.mubr.bf16.mxu0 0
      %999 = vmatmul.mubr.bf16.gmra.mrb[0].mxu0 %v952
      %v1000 = vpop.f32.mrb[0].mxu0
      %v1001 = vadd.f32 0.0, %v1000
      %v1002 = vpop.f32.mrb[0].mxu0
      %v1003 = vpop.f32.mrb[0].mxu0
      %v1004 = vadd.f32 0.0, %v1003
      %v1005 = vpop.f32.mrb[0].mxu0
      %1006 = vmatprep.mubr.bf16.mxu0 0
      %1007 = vmatmul.mubr.bf16.gmra.mrb[0].mxu0 %v955
      %v1008 = vpop.f32.mrb[0].mxu0
      %v1009 = vadd.f32 0.0, %v1008
      %v1010 = vpop.f32.mrb[0].mxu0
      %v1011 = vpop.f32.mrb[0].mxu0
      %v1012 = vadd.f32 0.0, %v1011
      %v1013 = vpop.f32.mrb[0].mxu0
      %1014 = vmatprep.mubr.bf16.mxu0 0
      %1015 = vmatmul.mubr.bf16.gmra.mrb[0].mxu0 %v958
      %v1016 = vpop.f32.mrb[0].mxu0
      %v1017 = vadd.f32 0.0, %v1016
      %v1018 = vpop.f32.mrb[0].mxu0
      %v1019 = vpop.f32.mrb[0].mxu0
      %v1020 = vadd.f32 0.0, %v1019
      %v1021 = vpop.f32.mrb[0].mxu0
      %1022 = vmatprep.mubr.bf16.mxu0 0
      %1023 = vmatmul.mubr.bf16.gmra.mrb[0].mxu0 %v961
      %v1024 = vpop.f32.mrb[0].mxu0
      %v1025 = vadd.f32 0.0, %v1024
      %v1026 = vpop.f32.mrb[0].mxu0
      %v1027 = vpop.f32.mrb[0].mxu0
      %v1028 = vadd.f32 0.0, %v1027
      %v1029 = vpop.f32.mrb[0].mxu0
      %1030 = vdwg.mxu0
      %v1031 = vadd.f32 %v939, %v1001
      %v1032 = vadd.f32 %v940, %v1004
      %v1033 = vadd.f32 %v941, %v1009
      %v1034 = vadd.f32 %v942, %v1012
      %v1035 = vadd.f32 %v943, %v1017
      %v1036 = vadd.f32 %v944, %v1020
      %v1037 = vadd.f32 %v945, %v1025
      %v1038 = vadd.f32 %v946, %v1028
      %v1041 = vrot.slane %v590, 1
      %v1042 = vrot.slane %v591, 1
      %v1043 = vsel %vm623, %v1041, %v1042
      %v1045 = vpack.c.bf16 %v632, %v629
      %v1046 = vpack.c.bf16 %v638, %v635
      %v1047 = vpack.c.bf16 %v644, %v641
      %v1048 = vpack.c.bf16 %v1043, %v647
      %v1050 = vsel %vm660, %v1045, 0
      %v1053 = vsel %vm660, %v1046, 0
      %v1056 = vsel %vm660, %v1047, 0
      %v1059 = vsel %vm660, %v1048, 0
      %v1062 = vsel %vm673, %v598, 0
      %1064 = vmatprep.subr.bf16.mxu0 0
      %1065 = vmatpush1.bf16.msra.mxu0 %v1062
      %1066 = vmatprep.subr.bf16.mxu0 0
      %1067 = vmatpush1.bf16.msra.mxu0 0
      %1068 = vmatprep.subr.bf16.mxu0 0
      %1069 = vmatpush1.bf16.msra.mxu0 0
      %1070 = vmatprep.subr.bf16.mxu0 0
      %1071 = vmatpush1.bf16.msra.mxu0 0
      %1072 = vmatprep.subr.bf16.mxu0 0
      %1073 = vmatpush1.bf16.msra.mxu0 0
      %1074 = vmatprep.subr.bf16.mxu0 0
      %1075 = vmatpush1.bf16.msra.mxu0 0
      %1076 = vmatprep.subr.bf16.mxu0 0
      %1077 = vmatpush1.bf16.msra.mxu0 0
      %1078 = vmatprep.subr.bf16.mxu0 0
      %1079 = vmatpush1.bf16.msra.mxu0 0
      %1080 = vmatprep.subr.bf16.mxu0 0
      %1081 = vmatpush1.bf16.msra.mxu0 0
      %1082 = vmatprep.subr.bf16.mxu0 0
      %1083 = vmatpush1.bf16.msra.mxu0 0
      %1084 = vmatprep.subr.bf16.mxu0 0
      %1085 = vmatpush1.bf16.msra.mxu0 0
      %1086 = vmatprep.subr.bf16.mxu0 0
      %1087 = vmatpush1.bf16.msra.mxu0 0
      %1088 = vmatprep.subr.bf16.mxu0 0
      %1089 = vmatpush1.bf16.msra.mxu0 0
      %1090 = vmatprep.subr.bf16.mxu0 0
      %1091 = vmatpush1.bf16.msra.mxu0 0
      %1092 = vmatprep.subr.bf16.mxu0 0
      %1093 = vmatpush1.bf16.msra.mxu0 0
      %1094 = vmatprep.subr.bf16.mxu0 0
      %1095 = vmatpush1.bf16.msra.mxu0 0
      %1096 = vmatprep.mubr.bf16.mxu0 0
      %1097 = vmatmul.mubr.bf16.gmra.mrb[0].mxu0 %v1050
      %v1098 = vpop.f32.mrb[0].mxu0
      %v1099 = vadd.f32 0.0, %v1098
      %v1100 = vpop.f32.mrb[0].mxu0
      %v1101 = vpop.f32.mrb[0].mxu0
      %v1102 = vadd.f32 0.0, %v1101
      %v1103 = vpop.f32.mrb[0].mxu0
      %1104 = vmatprep.mubr.bf16.mxu0 0
      %1105 = vmatmul.mubr.bf16.gmra.mrb[0].mxu0 %v1053
      %v1106 = vpop.f32.mrb[0].mxu0
      %v1107 = vadd.f32 0.0, %v1106
      %v1108 = vpop.f32.mrb[0].mxu0
      %v1109 = vpop.f32.mrb[0].mxu0
      %v1110 = vadd.f32 0.0, %v1109
      %v1111 = vpop.f32.mrb[0].mxu0
      %1112 = vmatprep.mubr.bf16.mxu0 0
      %1113 = vmatmul.mubr.bf16.gmra.mrb[0].mxu0 %v1056
      %v1114 = vpop.f32.mrb[0].mxu0
      %v1115 = vadd.f32 0.0, %v1114
      %v1116 = vpop.f32.mrb[0].mxu0
      %v1117 = vpop.f32.mrb[0].mxu0
      %v1118 = vadd.f32 0.0, %v1117
      %v1119 = vpop.f32.mrb[0].mxu0
      %1120 = vmatprep.mubr.bf16.mxu0 0
      %1121 = vmatmul.mubr.bf16.gmra.mrb[0].mxu0 %v1059
      %v1122 = vpop.f32.mrb[0].mxu0
      %v1123 = vadd.f32 0.0, %v1122
      %v1124 = vpop.f32.mrb[0].mxu0
      %v1125 = vpop.f32.mrb[0].mxu0
      %v1126 = vadd.f32 0.0, %v1125
      %v1127 = vpop.f32.mrb[0].mxu0
      %1128 = vdwg.mxu0
      %v1129 = vadd.f32 %v1031, %v1099
      %v1130 = vadd.f32 %v1032, %v1102
      %v1131 = vadd.f32 %v1033, %v1107
      %v1132 = vadd.f32 %v1034, %v1110
      %v1133 = vadd.f32 %v1035, %v1115
      %v1134 = vadd.f32 %v1036, %v1118
      %v1135 = vadd.f32 %v1037, %v1123
      %v1136 = vadd.f32 %v1038, %v1126
      %v1137 = vrot.slane %v590, 2
      %v1138 = vrot.slane %v591, 2
      %v1139 = vsel %vm822, %v1137, %v1138
      %v1141 = vpack.c.bf16 %v831, %v828
      %v1142 = vpack.c.bf16 %v837, %v834
      %v1143 = vpack.c.bf16 %v843, %v840
      %v1144 = vpack.c.bf16 %v1139, %v846
      %v1146 = vsel %vm660, %v1141, 0
      %v1149 = vsel %vm660, %v1142, 0
      %v1152 = vsel %vm660, %v1143, 0
      %v1155 = vsel %vm660, %v1144, 0
      %v1158 = vsel %vm673, %v599, 0
      %1160 = vmatprep.subr.bf16.mxu0 0
      %1161 = vmatpush1.bf16.msra.mxu0 %v1158
      %1162 = vmatprep.subr.bf16.mxu0 0
      %1163 = vmatpush1.bf16.msra.mxu0 0
      %1164 = vmatprep.subr.bf16.mxu0 0
      %1165 = vmatpush1.bf16.msra.mxu0 0
      %1166 = vmatprep.subr.bf16.mxu0 0
      %1167 = vmatpush1.bf16.msra.mxu0 0
      %1168 = vmatprep.subr.bf16.mxu0 0
      %1169 = vmatpush1.bf16.msra.mxu0 0
      %1170 = vmatprep.subr.bf16.mxu0 0
      %1171 = vmatpush1.bf16.msra.mxu0 0
      %1172 = vmatprep.subr.bf16.mxu0 0
      %1173 = vmatpush1.bf16.msra.mxu0 0
      %1174 = vmatprep.subr.bf16.mxu0 0
      %1175 = vmatpush1.bf16.msra.mxu0 0
      %1176 = vmatprep.subr.bf16.mxu0 0
      %1177 = vmatpush1.bf16.msra.mxu0 0
      %1178 = vmatprep.subr.bf16.mxu0 0
      %1179 = vmatpush1.bf16.msra.mxu0 0
      %1180 = vmatprep.subr.bf16.mxu0 0
      %1181 = vmatpush1.bf16.msra.mxu0 0
      %1182 = vmatprep.subr.bf16.mxu0 0
      %1183 = vmatpush1.bf16.msra.mxu0 0
      %1184 = vmatprep.subr.bf16.mxu0 0
      %1185 = vmatpush1.bf16.msra.mxu0 0
      %1186 = vmatprep.subr.bf16.mxu0 0
      %1187 = vmatpush1.bf16.msra.mxu0 0
      %1188 = vmatprep.subr.bf16.mxu0 0
      %1189 = vmatpush1.bf16.msra.mxu0 0
      %1190 = vmatprep.subr.bf16.mxu0 0
      %1191 = vmatpush1.bf16.msra.mxu0 0
      %1192 = vmatprep.mubr.bf16.mxu0 0
      %1193 = vmatmul.mubr.bf16.gmra.mrb[0].mxu0 %v1146
      %v1194 = vpop.f32.mrb[0].mxu0
      %v1195 = vadd.f32 0.0, %v1194
      %v1196 = vpop.f32.mrb[0].mxu0
      %v1197 = vpop.f32.mrb[0].mxu0
      %v1198 = vadd.f32 0.0, %v1197
      %v1199 = vpop.f32.mrb[0].mxu0
      %1200 = vmatprep.mubr.bf16.mxu0 0
      %1201 = vmatmul.mubr.bf16.gmra.mrb[0].mxu0 %v1149
      %v1202 = vpop.f32.mrb[0].mxu0
      %v1203 = vadd.f32 0.0, %v1202
      %v1204 = vpop.f32.mrb[0].mxu0
      %v1205 = vpop.f32.mrb[0].mxu0
      %v1206 = vadd.f32 0.0, %v1205
      %v1207 = vpop.f32.mrb[0].mxu0
      %1208 = vmatprep.mubr.bf16.mxu0 0
      %1209 = vmatmul.mubr.bf16.gmra.mrb[0].mxu0 %v1152
      %v1210 = vpop.f32.mrb[0].mxu0
      %v1211 = vadd.f32 0.0, %v1210
      %v1212 = vpop.f32.mrb[0].mxu0
      %v1213 = vpop.f32.mrb[0].mxu0
      %v1214 = vadd.f32 0.0, %v1213
      %v1215 = vpop.f32.mrb[0].mxu0
      %1216 = vmatprep.mubr.bf16.mxu0 0
      %1217 = vmatmul.mubr.bf16.gmra.mrb[0].mxu0 %v1155
      %v1218 = vpop.f32.mrb[0].mxu0
      %v1219 = vadd.f32 0.0, %v1218
      %v1220 = vpop.f32.mrb[0].mxu0
      %v1221 = vpop.f32.mrb[0].mxu0
      %v1222 = vadd.f32 0.0, %v1221
      %v1223 = vpop.f32.mrb[0].mxu0
      %1224 = vdwg.mxu0
      %v1225 = vadd.f32 %v1129, %v1195
      %v1226 = vadd.f32 %v1130, %v1198
      %v1227 = vadd.f32 %v1131, %v1203
      %v1228 = vadd.f32 %v1132, %v1206
      %v1229 = vadd.f32 %v1133, %v1211
      %v1230 = vadd.f32 %v1134, %v1214
      %v1231 = vadd.f32 %v1135, %v1219
      %v1232 = vadd.f32 %v1136, %v1222
      %v1233 = vpack.c.bf16 %v592, %v590
      %v1235 = vsel %vm660, %v1233, 0
      %v1238 = vsel %vm673, %v600, 0
      %1240 = vmatprep.subr.bf16.mxu0 0
      %1241 = vmatpush1.bf16.msra.mxu0 %v1238
      %1242 = vmatprep.subr.bf16.mxu0 0
      %1243 = vmatpush1.bf16.msra.mxu0 0
      %1244 = vmatprep.subr.bf16.mxu0 0
      %1245 = vmatpush1.bf16.msra.mxu0 0
      %1246 = vmatprep.subr.bf16.mxu0 0
      %1247 = vmatpush1.bf16.msra.mxu0 0
      %1248 = vmatprep.subr.bf16.mxu0 0
      %1249 = vmatpush1.bf16.msra.mxu0 0
      %1250 = vmatprep.subr.bf16.mxu0 0
      %1251 = vmatpush1.bf16.msra.mxu0 0
      %1252 = vmatprep.subr.bf16.mxu0 0
      %1253 = vmatpush1.bf16.msra.mxu0 0
      %1254 = vmatprep.subr.bf16.mxu0 0
      %1255 = vmatpush1.bf16.msra.mxu0 0
      %1256 = vmatprep.subr.bf16.mxu0 0
      %1257 = vmatpush1.bf16.msra.mxu0 0
      %1258 = vmatprep.subr.bf16.mxu0 0
      %1259 = vmatpush1.bf16.msra.mxu0 0
      %1260 = vmatprep.subr.bf16.mxu0 0
      %1261 = vmatpush1.bf16.msra.mxu0 0
      %1262 = vmatprep.subr.bf16.mxu0 0
      %1263 = vmatpush1.bf16.msra.mxu0 0
      %1264 = vmatprep.subr.bf16.mxu0 0
      %1265 = vmatpush1.bf16.msra.mxu0 0
      %1266 = vmatprep.subr.bf16.mxu0 0
      %1267 = vmatpush1.bf16.msra.mxu0 0
      %1268 = vmatprep.subr.bf16.mxu0 0
      %1269 = vmatpush1.bf16.msra.mxu0 0
      %1270 = vmatprep.subr.bf16.mxu0 0
      %1271 = vmatpush1.bf16.msra.mxu0 0
      %1272 = vmatprep.mubr.bf16.mxu0 0
      %1273 = vmatmul.mubr.bf16.gmra.mrb[0].mxu0 %v746
      %v1274 = vpop.f32.mrb[0].mxu0
      %v1275 = vadd.f32 0.0, %v1274
      %v1276 = vpop.f32.mrb[0].mxu0
      %v1277 = vpop.f32.mrb[0].mxu0
      %v1278 = vadd.f32 0.0, %v1277
      %v1279 = vpop.f32.mrb[0].mxu0
      %1280 = vmatprep.mubr.bf16.mxu0 0
      %1281 = vmatmul.mubr.bf16.gmra.mrb[0].mxu0 %v749
      %v1282 = vpop.f32.mrb[0].mxu0
      %v1283 = vadd.f32 0.0, %v1282
      %v1284 = vpop.f32.mrb[0].mxu0
      %v1285 = vpop.f32.mrb[0].mxu0
      %v1286 = vadd.f32 0.0, %v1285
      %v1287 = vpop.f32.mrb[0].mxu0
      %1288 = vmatprep.mubr.bf16.mxu0 0
      %1289 = vmatmul.mubr.bf16.gmra.mrb[0].mxu0 %v752
      %v1290 = vpop.f32.mrb[0].mxu0
      %v1291 = vadd.f32 0.0, %v1290
      %v1292 = vpop.f32.mrb[0].mxu0
      %v1293 = vpop.f32.mrb[0].mxu0
      %v1294 = vadd.f32 0.0, %v1293
      %v1295 = vpop.f32.mrb[0].mxu0
      %1296 = vmatprep.mubr.bf16.mxu0 0
      %1297 = vmatmul.mubr.bf16.gmra.mrb[0].mxu0 %v1235
      %v1298 = vpop.f32.mrb[0].mxu0
      %v1299 = vadd.f32 0.0, %v1298
      %v1300 = vpop.f32.mrb[0].mxu0
      %v1301 = vpop.f32.mrb[0].mxu0
      %v1302 = vadd.f32 0.0, %v1301
      %v1303 = vpop.f32.mrb[0].mxu0
      %1304 = vdwg.mxu0
      %v1305 = vadd.f32 %v1225, %v1275
      %v1306 = vadd.f32 %v1226, %v1278
      %v1307 = vadd.f32 %v1227, %v1283
      %v1308 = vadd.f32 %v1228, %v1286
      %v1309 = vadd.f32 %v1229, %v1291
      %v1310 = vadd.f32 %v1230, %v1294
      %v1311 = vadd.f32 %v1231, %v1299
      %v1312 = vadd.f32 %v1232, %v1302
      %v1315 = vrot.slane %v592, 1
      %v1316 = vrot.slane %v593, 1
      %v1317 = vsel %vm623, %v1315, %v1316
      %v1319 = vpack.c.bf16 %v1317, %v1043
      %v1321 = vsel %vm660, %v1319, 0
      %v1324 = vsel %vm673, %v601, 0
      %1326 = vmatprep.subr.bf16.mxu0 0
      %1327 = vmatpush1.bf16.msra.mxu0 %v1324
      %1328 = vmatprep.subr.bf16.mxu0 0
      %1329 = vmatpush1.bf16.msra.mxu0 0
      %1330 = vmatprep.subr.bf16.mxu0 0
      %1331 = vmatpush1.bf16.msra.mxu0 0
      %1332 = vmatprep.subr.bf16.mxu0 0
      %1333 = vmatpush1.bf16.msra.mxu0 0
      %1334 = vmatprep.subr.bf16.mxu0 0
      %1335 = vmatpush1.bf16.msra.mxu0 0
      %1336 = vmatprep.subr.bf16.mxu0 0
      %1337 = vmatpush1.bf16.msra.mxu0 0
      %1338 = vmatprep.subr.bf16.mxu0 0
      %1339 = vmatpush1.bf16.msra.mxu0 0
      %1340 = vmatprep.subr.bf16.mxu0 0
      %1341 = vmatpush1.bf16.msra.mxu0 0
      %1342 = vmatprep.subr.bf16.mxu0 0
      %1343 = vmatpush1.bf16.msra.mxu0 0
      %1344 = vmatprep.subr.bf16.mxu0 0
      %1345 = vmatpush1.bf16.msra.mxu0 0
      %1346 = vmatprep.subr.bf16.mxu0 0
      %1347 = vmatpush1.bf16.msra.mxu0 0
      %1348 = vmatprep.subr.bf16.mxu0 0
      %1349 = vmatpush1.bf16.msra.mxu0 0
      %1350 = vmatprep.subr.bf16.mxu0 0
      %1351 = vmatpush1.bf16.msra.mxu0 0
      %1352 = vmatprep.subr.bf16.mxu0 0
      %1353 = vmatpush1.bf16.msra.mxu0 0
      %1354 = vmatprep.subr.bf16.mxu0 0
      %1355 = vmatpush1.bf16.msra.mxu0 0
      %1356 = vmatprep.subr.bf16.mxu0 0
      %1357 = vmatpush1.bf16.msra.mxu0 0
      %1358 = vmatprep.mubr.bf16.mxu0 0
      %1359 = vmatmul.mubr.bf16.gmra.mrb[0].mxu0 %v665
      %v1360 = vpop.f32.mrb[0].mxu0
      %v1361 = vadd.f32 0.0, %v1360
      %v1362 = vpop.f32.mrb[0].mxu0
      %v1363 = vpop.f32.mrb[0].mxu0
      %v1364 = vadd.f32 0.0, %v1363
      %v1365 = vpop.f32.mrb[0].mxu0
      %1366 = vmatprep.mubr.bf16.mxu0 0
      %1367 = vmatmul.mubr.bf16.gmra.mrb[0].mxu0 %v668
      %v1368 = vpop.f32.mrb[0].mxu0
      %v1369 = vadd.f32 0.0, %v1368
      %v1370 = vpop.f32.mrb[0].mxu0
      %v1371 = vpop.f32.mrb[0].mxu0
      %v1372 = vadd.f32 0.0, %v1371
      %v1373 = vpop.f32.mrb[0].mxu0
      %1374 = vmatprep.mubr.bf16.mxu0 0
      %1375 = vmatmul.mubr.bf16.gmra.mrb[0].mxu0 %v671
      %v1376 = vpop.f32.mrb[0].mxu0
      %v1377 = vadd.f32 0.0, %v1376
      %v1378 = vpop.f32.mrb[0].mxu0
      %v1379 = vpop.f32.mrb[0].mxu0
      %v1380 = vadd.f32 0.0, %v1379
      %v1381 = vpop.f32.mrb[0].mxu0
      %1382 = vmatprep.mubr.bf16.mxu0 0
      %1383 = vmatmul.mubr.bf16.gmra.mrb[0].mxu0 %v1321
      %v1384 = vpop.f32.mrb[0].mxu0
      %v1385 = vadd.f32 0.0, %v1384
      %v1386 = vpop.f32.mrb[0].mxu0
      %v1387 = vpop.f32.mrb[0].mxu0
      %v1388 = vadd.f32 0.0, %v1387
      %v1389 = vpop.f32.mrb[0].mxu0
      %1390 = vdwg.mxu0
      %v1391 = vadd.f32 %v1305, %v1361
      %v1392 = vadd.f32 %v1306, %v1364
      %v1393 = vadd.f32 %v1307, %v1369
      %v1394 = vadd.f32 %v1308, %v1372
      %v1395 = vadd.f32 %v1309, %v1377
      %v1396 = vadd.f32 %v1310, %v1380
      %v1397 = vadd.f32 %v1311, %v1385
      %v1398 = vadd.f32 %v1312, %v1388
      %v1399 = vrot.slane %v592, 2
      %v1400 = vrot.slane %v593, 2
      %v1401 = vsel %vm822, %v1399, %v1400
      %v1403 = vpack.c.bf16 %v1401, %v1139
      %v1405 = vsel %vm660, %v1403, 0
      %v1408 = vsel %vm673, %v602, 0
      %1410 = vmatprep.subr.bf16.mxu0 0
      %1411 = vmatpush1.bf16.msra.mxu0 %v1408
      %1412 = vmatprep.subr.bf16.mxu0 0
      %1413 = vmatpush1.bf16.msra.mxu0 0
      %1414 = vmatprep.subr.bf16.mxu0 0
      %1415 = vmatpush1.bf16.msra.mxu0 0
      %1416 = vmatprep.subr.bf16.mxu0 0
      %1417 = vmatpush1.bf16.msra.mxu0 0
      %1418 = vmatprep.subr.bf16.mxu0 0
      %1419 = vmatpush1.bf16.msra.mxu0 0
      %1420 = vmatprep.subr.bf16.mxu0 0
      %1421 = vmatpush1.bf16.msra.mxu0 0
      %1422 = vmatprep.subr.bf16.mxu0 0
      %1423 = vmatpush1.bf16.msra.mxu0 0
      %1424 = vmatprep.subr.bf16.mxu0 0
      %1425 = vmatpush1.bf16.msra.mxu0 0
      %1426 = vmatprep.subr.bf16.mxu0 0
      %1427 = vmatpush1.bf16.msra.mxu0 0
      %1428 = vmatprep.subr.bf16.mxu0 0
      %1429 = vmatpush1.bf16.msra.mxu0 0
      %1430 = vmatprep.subr.bf16.mxu0 0
      %1431 = vmatpush1.bf16.msra.mxu0 0
      %1432 = vmatprep.subr.bf16.mxu0 0
      %1433 = vmatpush1.bf16.msra.mxu0 0
      %1434 = vmatprep.subr.bf16.mxu0 0
      %1435 = vmatpush1.bf16.msra.mxu0 0
      %1436 = vmatprep.subr.bf16.mxu0 0
      %1437 = vmatpush1.bf16.msra.mxu0 0
      %1438 = vmatprep.subr.bf16.mxu0 0
      %1439 = vmatpush1.bf16.msra.mxu0 0
      %1440 = vmatprep.subr.bf16.mxu0 0
      %1441 = vmatpush1.bf16.msra.mxu0 0
      %1442 = vmatprep.mubr.bf16.mxu0 0
      %1443 = vmatmul.mubr.bf16.gmra.mrb[0].mxu0 %v863
      %v1444 = vpop.f32.mrb[0].mxu0
      %v1445 = vadd.f32 0.0, %v1444
      %v1446 = vpop.f32.mrb[0].mxu0
      %v1447 = vpop.f32.mrb[0].mxu0
      %v1448 = vadd.f32 0.0, %v1447
      %v1449 = vpop.f32.mrb[0].mxu0
      %1450 = vmatprep.mubr.bf16.mxu0 0
      %1451 = vmatmul.mubr.bf16.gmra.mrb[0].mxu0 %v866
      %v1452 = vpop.f32.mrb[0].mxu0
      %v1453 = vadd.f32 0.0, %v1452
      %v1454 = vpop.f32.mrb[0].mxu0
      %v1455 = vpop.f32.mrb[0].mxu0
      %v1456 = vadd.f32 0.0, %v1455
      %v1457 = vpop.f32.mrb[0].mxu0
      %1458 = vmatprep.mubr.bf16.mxu0 0
      %1459 = vmatmul.mubr.bf16.gmra.mrb[0].mxu0 %v869
      %v1460 = vpop.f32.mrb[0].mxu0
      %v1461 = vadd.f32 0.0, %v1460
      %v1462 = vpop.f32.mrb[0].mxu0
      %v1463 = vpop.f32.mrb[0].mxu0
      %v1464 = vadd.f32 0.0, %v1463
      %v1465 = vpop.f32.mrb[0].mxu0
      %1466 = vmatprep.mubr.bf16.mxu0 0
      %1467 = vmatmul.mubr.bf16.gmra.mrb[0].mxu0 %v1405
      %v1468 = vpop.f32.mrb[0].mxu0
      %v1469 = vadd.f32 0.0, %v1468
      %v1470 = vpop.f32.mrb[0].mxu0
      %v1471 = vpop.f32.mrb[0].mxu0
      %v1472 = vadd.f32 0.0, %v1471
      %v1473 = vpop.f32.mrb[0].mxu0
      %1474 = vdwg.mxu0
      %v1475 = vadd.f32 %v1391, %v1445
      %v1476 = vadd.f32 %v1392, %v1448
      %v1477 = vadd.f32 %v1393, %v1453
      %v1478 = vadd.f32 %v1394, %v1456
      %v1479 = vadd.f32 %v1395, %v1461
      %v1480 = vadd.f32 %v1396, %v1464
      %v1481 = vadd.f32 %v1397, %v1469
      %v1482 = vadd.f32 %v1398, %v1472
      %1483 = vst.msk [vmem:[%s382] sm:$0xff] %vm660, %v1475
      %1484 = vst.msk [vmem:[%s382 + $0x8] sm:$0xff] %vm660, %v1476
      %1485 = vst.msk [vmem:[%s382 + $0x10] sm:$0xff] %vm660, %v1477
      %1486 = vst.msk [vmem:[%s382 + $0x18] sm:$0xff] %vm660, %v1478
      %1487 = vst.msk [vmem:[%s382 + $0x20] sm:$0xff] %vm660, %v1479
      %1488 = vst.msk [vmem:[%s382 + $0x28] sm:$0xff] %vm660, %v1480
      %1489 = vst.msk [vmem:[%s382 + $0x30] sm:$0xff] %vm660, %v1481
      %1490 = vst.msk [vmem:[%s382 + $0x38] sm:$0xff] %vm660, %v1482
      %v1491 = vsel %vm660, %v1475, 0.0
      %v1492 = vsel %vm660, %v1476, 0.0
      %v1493 = vadd.f32 %v1491, %v1492
      %v1494 = vsel %vm660, %v1477, 0.0
      %v1495 = vadd.f32 %v1493, %v1494
      %v1496 = vsel %vm660, %v1478, 0.0
      %v1497 = vadd.f32 %v1495, %v1496
      %v1498 = vsel %vm660, %v1479, 0.0
      %v1499 = vadd.f32 %v1497, %v1498
      %v1500 = vsel %vm660, %v1480, 0.0
      %v1501 = vadd.f32 %v1499, %v1500
      %v1502 = vsel %vm660, %v1481, 0.0
      %v1503 = vadd.f32 %v1501, %v1502
      %v1504 = vsel %vm660, %v1482, 0.0
      %v1505 = vadd.f32 %v1503, %v1504
      %v1506 = vrot.slane %v1505, 4
      %v1507 = vadd.f32 %v1505, %v1506
      %v1508 = vrot.slane %v1507, 2
      %v1509 = vadd.f32 %v1507, %v1508
      %v1510 = vrot.slane %v1509, 1
      %v1511 = vadd.f32 %v1509, %v1510
      %vm1512 = vcmask 57344
      %1513 = vst.msk [vmem:[%s390] sm:$0x1] %vm1512, %v1511
      %v1514 = vmul.f32 %v1475, %v1475
      %v1515 = vmul.f32 %v1476, %v1476
      %v1516 = vmul.f32 %v1477, %v1477
      %v1517 = vmul.f32 %v1478, %v1478
      %v1518 = vmul.f32 %v1479, %v1479
      %v1519 = vmul.f32 %v1480, %v1480
      %v1520 = vmul.f32 %v1481, %v1481
      %v1521 = vmul.f32 %v1482, %v1482
      %v1522 = vsel %vm660, %v1514, 0.0
      %v1523 = vsel %vm660, %v1515, 0.0
      %v1524 = vadd.f32 %v1522, %v1523
      %v1525 = vsel %vm660, %v1516, 0.0
      %v1526 = vadd.f32 %v1524, %v1525
      %v1527 = vsel %vm660, %v1517, 0.0
      %v1528 = vadd.f32 %v1526, %v1527
      %v1529 = vsel %vm660, %v1518, 0.0
      %v1530 = vadd.f32 %v1528, %v1529
      %v1531 = vsel %vm660, %v1519, 0.0
      %v1532 = vadd.f32 %v1530, %v1531
      %v1533 = vsel %vm660, %v1520, 0.0
      %v1534 = vadd.f32 %v1532, %v1533
      %v1535 = vsel %vm660, %v1521, 0.0
      %v1536 = vadd.f32 %v1534, %v1535
      %v1537 = vrot.slane %v1536, 4
      %v1538 = vadd.f32 %v1536, %v1537
      %v1539 = vrot.slane %v1538, 2
      %v1540 = vadd.f32 %v1538, %v1539
      %v1541 = vrot.slane %v1540, 1
      %v1542 = vadd.f32 %v1540, %v1541
      %1543 = vst.msk [vmem:[%s390 + $0x1] sm:$0x1] %vm1512, %v1542
      %s1544 = smul.u32 8, %s23
      %p1545 = scmp.lt.s32.totalorder %s22, 1
      %s1546 = scalar_select %p1545, %s22, 1
      %p1547 = scmp.lt.s32.totalorder %s1544, 7
      %s1548 = scalar_select %p1547, %s1544, 7
      %s1549 = smul.addr %s1546, 8
      %s1550 = sadd.s32 %s1548, %s1549
      %s1551 = smul.addr %s1550, 8
      %s1552 = scalar_lea.vmem %s5, %s1551
      %p1553 = scmp.lt.s32.totalorder %s22, 1
      %s1554 = scalar_select %p1553, %s22, 1
      %p1555 = scmp.lt.s32.totalorder %s23, 0
      %s1556 = scalar_select %p1555, %s23, 0
      %s1557 = sadd.s32 %s1556, %s1554
      %s1558 = smul.addr %s1557, 2
      %s1559 = scalar_lea.vmem %s6, %s1558
      // Predicated region
      $region41: #{decode_block_forward.4} parent=39 // pred_check
        %p1560 = pneg %p173
      $region42: #{decode_block_forward.4} parent=39 // pred_check_branch
        %1562 = sbr.rel (%p1560) target = $region44
      $region43: #{decode_block_forward.4} parent=39 // pred_region
        %s1563 = smul.u32 8, %s23
      $region44: #{decode_block_forward.4} parent=39 // pred_fallthru
        _
      // Predicated region
      $region45: #{decode_block_forward.4} parent=39 // pred_check
        %p1564 = pneg %p201
      $region46: #{decode_block_forward.4} parent=39 // pred_check_branch
        %1566 = sbr.rel (%p1564) target = $region48
      $region47: #{decode_block_forward.4} parent=39 // pred_region
        _
      $region48: #{decode_block_forward.4} parent=39 // pred_fallthru
        _
    $region40: #{decode_block_forward.4} parent=5 // pred_fallthru
      _
    %p1567 = scmp.le.s32.totalorder 2, %s13
    // Predicated region
    $region49: #{decode_block_forward.4} parent=5 // pred_check
      %p1568 = pneg %p1567
    $region50: #{decode_block_forward.4} parent=5 // pred_check_branch
      %1570 = sbr.rel (%p1568) target = $region52
    $region51: #{decode_block_forward.4} parent=5 // pred_region
      %s1571 = ssub.s32 %s13, 2
      // Predicated region
      $region53: #{decode_block_forward.4} parent=51 // pred_check
        %p1572 = pneg %p179
      $region54: #{decode_block_forward.4} parent=51 // pred_check_branch
        %1574 = sbr.rel (%p1572) target = $region56
      $region55: #{decode_block_forward.4} parent=51 // pred_region
        %s1575 = smul.u32 8, %s25
        %p1576 = scmp.lt.s32.totalorder %s24, 1
        %s1577 = scalar_select %p1576, %s24, 1
        %p1578 = scmp.lt.s32.totalorder %s1575, 7
        %s1579 = scalar_select %p1578, %s1575, 7
        %s1580 = smul.addr %s1577, 8
        %s1581 = sadd.s32 %s1579, %s1580
        %s1582 = smul.addr %s1581, 8
        %s1583 = scalar_lea.vmem %s5, %s1582
      $region56: #{decode_block_forward.4} parent=51 // pred_fallthru
        _
      // Predicated region
      $region57: #{decode_block_forward.4} parent=51 // pred_check
        %p1584 = pneg %p207
      $region58: #{decode_block_forward.4} parent=51 // pred_check_branch
        %1586 = sbr.rel (%p1584) target = $region60
      $region59: #{decode_block_forward.4} parent=51 // pred_region
        %p1587 = scmp.lt.s32.totalorder %s24, 1
        %s1588 = scalar_select %p1587, %s24, 1
        %p1589 = scmp.lt.s32.totalorder %s25, 0
        %s1590 = scalar_select %p1589, %s25, 0
        %s1591 = sadd.s32 %s1590, %s1588
        %s1592 = smul.addr %s1591, 2
        %s1593 = scalar_lea.vmem %s6, %s1592
      $region60: #{decode_block_forward.4} parent=51 // pred_fallthru
        _
    $region52: #{decode_block_forward.4} parent=5 // pred_fallthru
      _
  $region6: #{decode_block_forward.4} parent=0 // loop_footer
    %s17 = sadd.s32 1, %s13
  $region7: #{decode_block_forward.4} parent=0 // loop_footer_branch
    %12 = sbr.rel target = $region3
  $region8: #{decode_block_forward.4} parent=0 // loop_exit
    _

// kernel: decode_block_forward.3
$region0: #{decode_block_forward.3}
  #allocation0 [shape = 'u32[]', space=smem, size = 0x4, offset = 0x4, fixed_abs, tag = 'smem constant byte address 0x4 - core index']
  #allocation1 [shape = 'u32[144,128]{1,0:T(1,128)}', space=vmem, size = 0x12000, scoped, tag = 'internal scratch']
  %s0 = inlined_call_operand.vmem [shape: f32[2,20,10,8], index: 0, kind: input, shape index: {}, may-alias: {0,1}]
  %s1 = inlined_call_operand.vmem [shape: f32[2,20,10,8], index: 1, kind: input, shape index: {}, may-alias: {0,1}]
  %s2 = inlined_call_operand.vmem [shape: bf16[3,3,4,8], index: 2, kind: input, shape index: {}]
  %s3 = inlined_call_operand.vmem [shape: f32[2,8,8,8], index: 3, kind: output, shape index: {0}]
  %s4 = inlined_call_operand.vmem [shape: f32[2,1,2,8], index: 4, kind: output, shape index: {1}]
  %5 = xla_tuple %s3, %s4
  %s6 = sld [smem:[#allocation0]]
  $region53: #{decode_block_forward.3} parent=0
    _
  %s8 = ssub.s32 1, %s6
  %s9 = scalar_select 0, %s8, %s6
  loop: start=0, step=1, limit=4
  $region2: #{decode_block_forward.3} parent=0 // loop_pre_header
    _
  $region3: #{decode_block_forward.3} parent=0 // loop_header
    %s11 = sphi 0, %s15
    %p12 = scmp.ge.s32.totalorder %s11, 4
    %s18 = sphi 0, %s30
    %s19 = sphi 0, %s26
    %s20 = sphi 0, %s18
    %s21 = sphi 0, %s19
    %s22 = sphi 0, %s20
    %s23 = sphi 0, %s21
    %s35 = sphi 0, %s37
    %s38 = sphi 0, %s35
    %s39 = sphi 0, %s38
    %s55 = sphi 0, %s39
    %s67 = sphi 0, %s69
    %s70 = sphi 0, %s67
    %s71 = sphi 0, %s70
    %s87 = sphi 0, %s71
    %s91 = sphi 0, %s91
    %s93 = sphi 0, %s91
    %s94 = sphi 0, %s93
    %s108 = sphi 0, %s94
    %s116 = sphi 0, %s118
    %s119 = sphi 0, %s116
    %s120 = sphi 0, %s119
    %s136 = sphi 0, %s120
    %s144 = sphi 0, %s146
    %s147 = sphi 0, %s144
    %s148 = sphi 0, %s147
    %s164 = sphi 0, %s148
  $region4: #{decode_block_forward.3} parent=0 // loop_header_branch
    %14 = sbr.rel (%p12) target = $region8
  $region5: #{decode_block_forward.3} parent=0 // loop_body
    %s16 = ssub.s32 %s11, 1
    %s17 = ssub.s32 %s11, 2
    %s24 = sadd.s32 1, %s19
    %p25 = scmp.ge.s32.totalorder %s24, 1
    %s26 = scalar_select %p25, 0, %s24
    %s27 = sadd.s32 1, %s18
    %s28 = scalar_select %p25, %s27, %s18
    %p29 = scmp.ge.s32.totalorder %s28, 2
    %s30 = scalar_select %p29, 0, %s28
    %s31 = ssub.s32 %s18, %s30
    %s32 = ssub.s32 %s19, %s26
    %s33 = sor.u32 %s31, %s32
    %p34 = scmp.eq.s32.totalorder %s33, 0
    %s36 = sadd.s32 %s35, 1
    %s37 = scalar_select %p34, %s35, %s36
    %p40 = pneg %p34
    %p41 = scmp.eq.s32.totalorder %s11, 1
    %p42 = por %p40, %p41
    %p43 = scmp.ne.s32.totalorder %s35, %s38
    %p44 = scmp.eq.s32.totalorder %s11, 0
    %p45 = por %p43, %p44
    %p46 = scmp.ne.s32.totalorder %s35, %s38
    %p47 = scmp.eq.s32.totalorder %s16, 1
    %p48 = por %p46, %p47
    %p49 = scmp.ne.s32.totalorder %s38, %s39
    %p50 = scmp.eq.s32.totalorder %s16, 0
    %p51 = por %p49, %p50
    %p52 = scmp.ne.s32.totalorder %s38, %s39
    %p53 = scmp.eq.s32.totalorder %s17, 1
    %p54 = por %p52, %p53
    %p56 = scmp.ne.s32.totalorder %s39, %s55
    %p57 = scmp.eq.s32.totalorder %s17, 0
    %p58 = por %p56, %p57
    %s59 = sadd.s32 %s19, 1
    %s60 = smul.u32 %s59, 4
    %s61 = sadd.s32 %s26, 1
    %s62 = smul.u32 %s61, 4
    %s63 = ssub.s32 %s18, %s30
    %s64 = ssub.s32 %s60, %s62
    %s65 = sor.u32 %s63, %s64
    %p66 = scmp.eq.s32.totalorder %s65, 0
    %s68 = sadd.s32 %s67, 1
    %s69 = scalar_select %p66, %s67, %s68
    %p72 = pneg %p66
    %p73 = scmp.eq.s32.totalorder %s11, 1
    %p74 = por %p72, %p73
    %p75 = scmp.ne.s32.totalorder %s67, %s70
    %p76 = scmp.eq.s32.totalorder %s11, 0
    %p77 = por %p75, %p76
    %p78 = scmp.ne.s32.totalorder %s67, %s70
    %p79 = scmp.eq.s32.totalorder %s16, 1
    %p80 = por %p78, %p79
    %p81 = scmp.ne.s32.totalorder %s70, %s71
    %p82 = scmp.eq.s32.totalorder %s16, 0
    %p83 = por %p81, %p82
    %p84 = scmp.ne.s32.totalorder %s70, %s71
    %p85 = scmp.eq.s32.totalorder %s17, 1
    %p86 = por %p84, %p85
    %p88 = scmp.ne.s32.totalorder %s71, %s87
    %p89 = scmp.eq.s32.totalorder %s17, 0
    %p90 = por %p88, %p89
    %s92 = sadd.s32 %s91, 1
    %p95 = scmp.eq.s32.totalorder %s11, 1
    %p96 = scmp.ne.s32.totalorder %s91, %s93
    %p97 = scmp.eq.s32.totalorder %s11, 0
    %p98 = por %p96, %p97
    %p99 = scmp.ne.s32.totalorder %s91, %s93
    %p100 = scmp.eq.s32.totalorder %s16, 1
    %p101 = por %p99, %p100
    %p102 = scmp.ne.s32.totalorder %s93, %s94
    %p103 = scmp.eq.s32.totalorder %s16, 0
    %p104 = por %p102, %p103
    %p105 = scmp.ne.s32.totalorder %s93, %s94
    %p106 = scmp.eq.s32.totalorder %s17, 1
    %p107 = por %p105, %p106
    %p109 = scmp.ne.s32.totalorder %s94, %s108
    %p110 = scmp.eq.s32.totalorder %s17, 0
    %p111 = por %p109, %p110
    %s112 = ssub.s32 %s18, %s30
    %s113 = ssub.s32 %s19, %s26
    %s114 = sor.u32 %s112, %s113
    %p115 = scmp.eq.s32.totalorder %s114, 0
    %s117 = sadd.s32 %s116, 1
    %s118 = scalar_select %p115, %s116, %s117
    %p121 = pneg %p115
    %p122 = scmp.eq.s32.totalorder %s11, 1
    %p123 = por %p121, %p122
    %p124 = scmp.ne.s32.totalorder %s116, %s119
    %p125 = scmp.eq.s32.totalorder %s11, 0
    %p126 = por %p124, %p125
    %p127 = scmp.ne.s32.totalorder %s116, %s119
    %p128 = scmp.eq.s32.totalorder %s16, 1
    %p129 = por %p127, %p128
    %p130 = scmp.ne.s32.totalorder %s119, %s120
    %p131 = scmp.eq.s32.totalorder %s16, 0
    %p132 = por %p130, %p131
    %p133 = scmp.ne.s32.totalorder %s119, %s120
    %p134 = scmp.eq.s32.totalorder %s17, 1
    %p135 = por %p133, %p134
    %p137 = scmp.ne.s32.totalorder %s120, %s136
    %p138 = scmp.eq.s32.totalorder %s17, 0
    %p139 = por %p137, %p138
    %s140 = ssub.s32 %s18, %s30
    %s141 = ssub.s32 %s19, %s26
    %s142 = sor.u32 %s140, %s141
    %p143 = scmp.eq.s32.totalorder %s142, 0
    %s145 = sadd.s32 %s144, 1
    %s146 = scalar_select %p143, %s144, %s145
    %p149 = pneg %p143
    %p150 = scmp.eq.s32.totalorder %s11, 1
    %p151 = por %p149, %p150
    %p152 = scmp.ne.s32.totalorder %s144, %s147
    %p153 = scmp.eq.s32.totalorder %s11, 0
    %p154 = por %p152, %p153
    %p155 = scmp.ne.s32.totalorder %s144, %s147
    %p156 = scmp.eq.s32.totalorder %s16, 1
    %p157 = por %p155, %p156
    %p158 = scmp.ne.s32.totalorder %s147, %s148
    %p159 = scmp.eq.s32.totalorder %s16, 0
    %p160 = por %p158, %p159
    %p161 = scmp.ne.s32.totalorder %s147, %s148
    %p162 = scmp.eq.s32.totalorder %s17, 1
    %p163 = por %p161, %p162
    %p165 = scmp.ne.s32.totalorder %s148, %s164
    %p166 = scmp.eq.s32.totalorder %s17, 0
    %p167 = por %p165, %p166
    %p168 = scmp.le.s32.totalorder 1, %s11
    %p169 = scmp.lt.s32.totalorder %s11, 3
    %p170 = pnand %p168, %p169
    %p171 = pneg %p170
    // Predicated region
    $region9: #{decode_block_forward.3} parent=5 // pred_check
      _
    $region10: #{decode_block_forward.3} parent=5 // pred_check_branch
      %173 = sbr.rel (%p170) target = $region12
    $region11: #{decode_block_forward.3} parent=5 // pred_region
      %s174 = ssub.s32 %s11, 1
      // Predicated region
      $region13: #{decode_block_forward.3} parent=11 // pred_check
        %p175 = pneg %p104
      $region14: #{decode_block_forward.3} parent=11 // pred_check_branch
        %177 = sbr.rel (%p175) target = $region16
      $region15: #{decode_block_forward.3} parent=11 // pred_region
        _
      $region16: #{decode_block_forward.3} parent=11 // pred_fallthru
        _
    $region12: #{decode_block_forward.3} parent=5 // pred_fallthru
      _
    %p178 = scmp.lt.s32.totalorder %s11, 2
    // Predicated region
    $region17: #{decode_block_forward.3} parent=5 // pred_check
      %p179 = pneg %p178
    $region18: #{decode_block_forward.3} parent=5 // pred_check_branch
      %181 = sbr.rel (%p179) target = $region20
    $region19: #{decode_block_forward.3} parent=5 // pred_region
      // Predicated region
      $region21: #{decode_block_forward.3} parent=19 // pred_check
        %p182 = pneg %p45
      $region22: #{decode_block_forward.3} parent=19 // pred_check_branch
        %184 = sbr.rel (%p182) target = $region24
      $region23: #{decode_block_forward.3} parent=19 // pred_region
        %s185 = smul.u32 16, %s19
        %s186 = ssub.s32 20, %s185
        %p187 = scmp.lt.s32.totalorder %s186, 16
        %s188 = scalar_select %p187, %s186, 16
        %s189 = smul.u32 128, %s188
        %s190 = smul.u32 %s189, 2
        %p191 = scmp.lt.s32.totalorder %s18, 1
        %s192 = scalar_select %p191, %s18, 1
        %p193 = scmp.lt.s32.totalorder %s185, 19
        %s194 = scalar_select %p193, %s185, 19
        %s195 = smul.addr %s194, 2
        %s196 = smul.addr %s192, 40
        %s197 = sadd.s32 %s195, %s196
        %s198 = smul.addr %s197, 8
        %s199 = scalar_lea.vmem %s0, %s198
        %s200 = smul.u32 16, %s19
        %s201 = ssub.s32 20, %s200
        %p202 = scmp.lt.s32.totalorder %s201, 16
        %s203 = scalar_select %p202, %s201, 16
        %s204 = smul.u32 128, %s203
        %s205 = smul.u32 %s204, 2
      $region24: #{decode_block_forward.3} parent=19 // pred_fallthru
        _
      // Predicated region
      $region25: #{decode_block_forward.3} parent=19 // pred_check
        %p206 = pneg %p77
      $region26: #{decode_block_forward.3} parent=19 // pred_check_branch
        %208 = sbr.rel (%p206) target = $region28
      $region27: #{decode_block_forward.3} parent=19 // pred_region
        %s209 = sadd.s32 %s19, 1
        %s210 = smul.u32 %s209, 4
        %s211 = smul.u32 4, %s210
        %p212 = scmp.lt.s32.totalorder %s18, 1
        %s213 = scalar_select %p212, %s18, 1
        %p214 = scmp.lt.s32.totalorder %s211, 19
        %s215 = scalar_select %p214, %s211, 19
        %s216 = smul.addr %s215, 2
        %s217 = smul.addr %s213, 40
        %s218 = sadd.s32 %s216, %s217
        %s219 = smul.addr %s218, 8
        %s220 = scalar_lea.vmem %s1, %s219
        %s221 = sadd.s32 %s19, 1
        %s222 = smul.u32 %s221, 4
        %s223 = smul.u32 4, %s222
      $region28: #{decode_block_forward.3} parent=19 // pred_fallthru
        _
    $region20: #{decode_block_forward.3} parent=5 // pred_fallthru
      _
    %p224 = scmp.le.s32.totalorder 1, %s11
    %p225 = scmp.lt.s32.totalorder %s11, 3
    %p226 = pnand %p224, %p225
    %p227 = pneg %p226
    // Predicated region
    $region29: #{decode_block_forward.3} parent=5 // pred_check
      _
    $region30: #{decode_block_forward.3} parent=5 // pred_check_branch
      %229 = sbr.rel (%p226) target = $region32
    $region31: #{decode_block_forward.3} parent=5 // pred_region
      %s230 = ssub.s32 %s11, 1
      %s231 = smul.u32 16, %s21
      %s232 = ssub.s32 20, %s231
      %p233 = scmp.lt.s32.totalorder %s232, 16
      %s234 = scalar_select %p233, %s232, 16
      %s235 = smul.u32 128, %s234
      %s236 = smul.u32 %s235, 2
      %p237 = scmp.lt.s32.totalorder %s20, 1
      %s238 = scalar_select %p237, %s20, 1
      %p239 = scmp.lt.s32.totalorder %s231, 19
      %s240 = scalar_select %p239, %s231, 19
      %s241 = smul.addr %s240, 2
      %s242 = smul.addr %s238, 40
      %s243 = sadd.s32 %s241, %s242
      %s244 = smul.addr %s243, 8
      %s245 = scalar_lea.vmem %s0, %s244
      %p246 = pneg %p51
      %p247 = pneg %p48
      %s248 = sadd.s32 %s21, 1
      %s249 = smul.u32 %s248, 4
      %s250 = smul.u32 4, %s249
      %p251 = scmp.lt.s32.totalorder %s20, 1
      %s252 = scalar_select %p251, %s20, 1
      %p253 = scmp.lt.s32.totalorder %s250, 19
      %s254 = scalar_select %p253, %s250, 19
      %s255 = smul.addr %s254, 2
      %s256 = smul.addr %s252, 40
      %s257 = sadd.s32 %s255, %s256
      %s258 = smul.addr %s257, 8
      %s259 = scalar_lea.vmem %s1, %s258
      %p260 = pneg %p83
      %p261 = pneg %p80
      %p262 = pneg %p104
      %p263 = pneg %p101
      %p264 = pneg %p132
      %p265 = pneg %p129
      %s266 = smul.u32 8, %s21
      %p267 = scmp.lt.s32.totalorder %s20, 1
      %s268 = scalar_select %p267, %s20, 1
      %p269 = scmp.lt.s32.totalorder %s266, 7
      %s270 = scalar_select %p269, %s266, 7
      %s271 = smul.addr %s268, 8
      %s272 = sadd.s32 %s270, %s271
      %s273 = smul.addr %s272, 8
      %s274 = scalar_lea.vmem %s3, %s273
      %p275 = pneg %p160
      %p276 = pneg %p157
      %p277 = scmp.lt.s32.totalorder %s20, 1
      %s278 = scalar_select %p277, %s20, 1
      %p279 = scmp.lt.s32.totalorder %s21, 0
      %s280 = scalar_select %p279, %s21, 0
      %s281 = sadd.s32 %s280, %s278
      %s282 = smul.addr %s281, 2
      %s283 = scalar_lea.vmem %s4, %s282
      %s284 = smul.u32 16, %s21
      %s285 = ssub.s32 20, %s284
      %p286 = scmp.lt.s32.totalorder %s285, 16
      %s287 = scalar_select %p286, %s285, 16
      %s288 = smul.u32 128, %s287
      %s289 = smul.u32 %s288, 2
      %p290 = scmp.lt.s32.totalorder %s20, 1
      %s291 = scalar_select %p290, %s20, 1
      %p292 = scmp.lt.s32.totalorder %s284, 19
      %s293 = scalar_select %p292, %s284, 19
      %s294 = smul.addr %s293, 2
      %s295 = smul.addr %s291, 40
      %s296 = sadd.s32 %s294, %s295
      %s297 = smul.addr %s296, 8
      %s298 = scalar_lea.vmem %s0, %s297
      %s299 = smul.u32 16, %s21
      %s300 = ssub.s32 20, %s299
      %p301 = scmp.lt.s32.totalorder %s300, 16
      %s302 = scalar_select %p301, %s300, 16
      %s303 = smul.u32 128, %s302
      %s304 = smul.u32 %s303, 2
      %s305 = sadd.s32 %s21, 1
      %s306 = smul.u32 %s305, 4
      %s307 = smul.u32 4, %s306
      %p308 = scmp.lt.s32.totalorder %s20, 1
      %s309 = scalar_select %p308, %s20, 1
      %p310 = scmp.lt.s32.totalorder %s307, 19
      %s311 = scalar_select %p310, %s307, 19
      %s312 = smul.addr %s311, 2
      %s313 = smul.addr %s309, 40
      %s314 = sadd.s32 %s312, %s313
      %s315 = smul.addr %s314, 8
      %s316 = scalar_lea.vmem %s1, %s315
      %s317 = sadd.s32 %s21, 1
      %s318 = smul.u32 %s317, 4
      %s319 = smul.u32 4, %s318
      %s320 = smul.u32 8, %s21
      %p321 = scmp.lt.s32.totalorder %s20, 1
      %s322 = scalar_select %p321, %s20, 1
      %p323 = scmp.lt.s32.totalorder %s320, 7
      %s324 = scalar_select %p323, %s320, 7
      %s325 = smul.addr %s322, 8
      %s326 = sadd.s32 %s324, %s325
      %s327 = smul.addr %s326, 8
      %s328 = scalar_lea.vmem %s3, %s327
      %s329 = smul.u32 8, %s21
      %p330 = scmp.lt.s32.totalorder %s20, 1
      %s331 = scalar_select %p330, %s20, 1
      %p332 = scmp.lt.s32.totalorder %s21, 0
      %s333 = scalar_select %p332, %s21, 0
      %s334 = sadd.s32 %s333, %s331
      %s335 = smul.addr %s334, 2
      %s336 = scalar_lea.vmem %s4, %s335
      %v338 = vld [vmem:[%s298] sm:$0xff]
      %v339 = vld [vmem:[%s298 + $0x8] sm:$0x3]
      %v340 = vld [vmem:[%s298 + $0x10] sm:$0xff]
      %v341 = vld [vmem:[%s298 + $0x18] sm:$0x3]
      %v342 = vld [vmem:[%s298 + $0x20] sm:$0xff]
      %v343 = vld [vmem:[%s298 + $0x28] sm:$0x3]
      %v344 = vld [vmem:[%s298 + $0x30] sm:$0xff]
      %v345 = vld [vmem:[%s298 + $0x38] sm:$0x3]
      %v346 = vld [vmem:[%s298 + $0x40] sm:$0xff]
      %v347 = vld [vmem:[%s298 + $0x48] sm:$0x3]
      %v348 = vld [vmem:[%s298 + $0x50] sm:$0xff]
      %v349 = vld [vmem:[%s298 + $0x58] sm:$0x3]
      %v350 = vld [vmem:[%s298 + $0x60] sm:$0xff]
      %v351 = vld [vmem:[%s298 + $0x68] sm:$0x3]
      %v352 = vld [vmem:[%s298 + $0x70] sm:$0xff]
      %v353 = vld [vmem:[%s298 + $0x78] sm:$0x3]
      %v354 = vld [vmem:[%s298 + $0x80] sm:$0xff]
      %v355 = vld [vmem:[%s298 + $0x88] sm:$0x3]
      %v356 = vld [vmem:[%s298 + $0x90] sm:$0xff]
      %v357 = vld [vmem:[%s298 + $0x98] sm:$0x3]
      %v358 = vld [vmem:[%s298 + $0xa0] sm:$0xff]
      %v359 = vld [vmem:[%s298 + $0xa8] sm:$0x3]
      %v360 = vld [vmem:[%s298 + $0xb0] sm:$0xff]
      %v361 = vld [vmem:[%s298 + $0xb8] sm:$0x3]
      %v362 = vld [vmem:[%s298 + $0xc0] sm:$0xff]
      %v363 = vld [vmem:[%s298 + $0xc8] sm:$0x3]
      %v364 = vld [vmem:[%s298 + $0xd0] sm:$0xff]
      %v365 = vld [vmem:[%s298 + $0xd8] sm:$0x3]
      %v366 = vld [vmem:[%s298 + $0xe0] sm:$0xff]
      %v367 = vld [vmem:[%s298 + $0xe8] sm:$0x3]
      %v368 = vld [vmem:[%s298 + $0xf0] sm:$0xff]
      %v369 = vld [vmem:[%s298 + $0xf8] sm:$0x3]
      %v370 = vld [vmem:[%s316] sm:$0xff]
      %v371 = vld [vmem:[%s316 + $0x8] sm:$0x3]
      %v372 = vld [vmem:[%s316 + $0x10] sm:$0xff]
      %v373 = vld [vmem:[%s316 + $0x18] sm:$0x3]
      %v374 = vld [vmem:[%s316 + $0x20] sm:$0xff]
      %v375 = vld [vmem:[%s316 + $0x28] sm:$0x3]
      %v376 = vld [vmem:[%s316 + $0x30] sm:$0xff]
      %v377 = vld [vmem:[%s316 + $0x38] sm:$0x3]
      %vm378 = vcmask 64512
      %v379 = vsel %vm378, %v338, -inf
      %v380 = vsel %vm378, %v340, -inf
      %v381 = vmax.f32 %v379, %v380
      %vm382 = vcmask 58368
      %v383 = vsel %vm382, %v339, -inf
      %v384 = vsel %vm382, %v341, -inf
      %v385 = vmax.f32 %v383, %v384
      %v386 = vsel %vm378, %v342, -inf
      %v387 = vsel %vm378, %v344, -inf
      %v388 = vmax.f32 %v386, %v387
      %v389 = vsel %vm382, %v343, -inf
      %v390 = vsel %vm382, %v345, -inf
      %v391 = vmax.f32 %v389, %v390
      %v392 = vsel %vm378, %v346, -inf
      %v393 = vsel %vm378, %v348, -inf
      %v394 = vmax.f32 %v392, %v393
      %v395 = vsel %vm382, %v347, -inf
      %v396 = vsel %vm382, %v349, -inf
      %v397 = vmax.f32 %v395, %v396
      %v398 = vsel %vm378, %v350, -inf
      %v399 = vsel %vm378, %v352, -inf
      %v400 = vmax.f32 %v398, %v399
      %v401 = vsel %vm382, %v351, -inf
      %v402 = vsel %vm382, %v353, -inf
      %v403 = vmax.f32 %v401, %v402
      %v404 = vsel %vm378, %v354, -inf
      %v405 = vsel %vm378, %v356, -inf
      %v406 = vmax.f32 %v404, %v405
      %v407 = vsel %vm382, %v355, -inf
      %v408 = vsel %vm382, %v357, -inf
      %v409 = vmax.f32 %v407, %v408
      %v410 = vsel %vm378, %v358, -inf
      %v411 = vsel %vm378, %v360, -inf
      %v412 = vmax.f32 %v410, %v411
      %v413 = vsel %vm382, %v359, -inf
      %v414 = vsel %vm382, %v361, -inf
      %v415 = vmax.f32 %v413, %v414
      %v416 = vsel %vm378, %v362, -inf
      %v417 = vsel %vm378, %v364, -inf
      %v418 = vmax.f32 %v416, %v417
      %v419 = vsel %vm382, %v363, -inf
      %v420 = vsel %vm382, %v365, -inf
      %v421 = vmax.f32 %v419, %v420
      %v422 = vsel %vm378, %v366, -inf
      %v423 = vsel %vm378, %v368, -inf
      %v424 = vmax.f32 %v422, %v423
      %v425 = vsel %vm382, %v367, -inf
      %v426 = vsel %vm382, %v369, -inf
      %v427 = vmax.f32 %v425, %v426
      %v428 = vsel %vm378, %v370, -inf
      %v429 = vsel %vm378, %v372, -inf
      %v430 = vmax.f32 %v428, %v429
      %v431 = vsel %vm382, %v371, -inf
      %v432 = vsel %vm382, %v373, -inf
      %v433 = vmax.f32 %v431, %v432
      %v434 = vsel %vm378, %v374, -inf
      %v435 = vsel %vm378, %v376, -inf
      %v436 = vmax.f32 %v434, %v435
      %v437 = vsel %vm382, %v375, -inf
      %v438 = vsel %vm382, %v377, -inf
      %v439 = vmax.f32 %v437, %v438
      %460 = vrot.lane.b32.xlu0 %v381, 124
      %v461 = vpop.permute.xlu0 %460
      %462 = vrot.lane.b32.xlu0 %v385, 124
      %v463 = vpop.permute.xlu0 %462
      %464 = vrot.lane.b32.xlu0 %v388, 124
      %v465 = vpop.permute.xlu0 %464
      %466 = vrot.lane.b32.xlu0 %v391, 124
      %v467 = vpop.permute.xlu0 %466
      %468 = vrot.lane.b32.xlu0 %v394, 124
      %v469 = vpop.permute.xlu0 %468
      %470 = vrot.lane.b32.xlu0 %v397, 124
      %v471 = vpop.permute.xlu0 %470
      %472 = vrot.lane.b32.xlu0 %v400, 124
      %v473 = vpop.permute.xlu0 %472
      %474 = vrot.lane.b32.xlu0 %v403, 124
      %v475 = vpop.permute.xlu0 %474
      %476 = vrot.lane.b32.xlu0 %v406, 124
      %v477 = vpop.permute.xlu0 %476
      %478 = vrot.lane.b32.xlu0 %v409, 124
      %v479 = vpop.permute.xlu0 %478
      %480 = vrot.lane.b32.xlu0 %v412, 124
      %v481 = vpop.permute.xlu0 %480
      %482 = vrot.lane.b32.xlu0 %v415, 124
      %v483 = vpop.permute.xlu0 %482
      %484 = vrot.lane.b32.xlu0 %v418, 124
      %v485 = vpop.permute.xlu0 %484
      %486 = vrot.lane.b32.xlu0 %v421, 124
      %v487 = vpop.permute.xlu0 %486
      %488 = vrot.lane.b32.xlu0 %v424, 124
      %v489 = vpop.permute.xlu0 %488
      %490 = vrot.lane.b32.xlu0 %v427, 124
      %v491 = vpop.permute.xlu0 %490
      %492 = vrot.lane.b32.xlu0 %v430, 124
      %v493 = vpop.permute.xlu0 %492
      %494 = vrot.lane.b32.xlu0 %v433, 124
      %v495 = vpop.permute.xlu0 %494
      %496 = vrot.lane.b32.xlu0 %v436, 124
      %v497 = vpop.permute.xlu0 %496
      %498 = vrot.lane.b32.xlu0 %v439, 124
      %v499 = vpop.permute.xlu0 %498
      %v520 = vmax.f32 %v381, %v461
      %v521 = vmax.f32 %v385, %v463
      %v522 = vmax.f32 %v388, %v465
      %v523 = vmax.f32 %v391, %v467
      %v524 = vmax.f32 %v394, %v469
      %v525 = vmax.f32 %v397, %v471
      %v526 = vmax.f32 %v400, %v473
      %v527 = vmax.f32 %v403, %v475
      %v528 = vmax.f32 %v406, %v477
      %v529 = vmax.f32 %v409, %v479
      %v530 = vmax.f32 %v412, %v481
      %v531 = vmax.f32 %v415, %v483
      %v532 = vmax.f32 %v418, %v485
      %v533 = vmax.f32 %v421, %v487
      %v534 = vmax.f32 %v424, %v489
      %v535 = vmax.f32 %v427, %v491
      %v536 = vmax.f32 %v430, %v493
      %v537 = vmax.f32 %v433, %v495
      %v538 = vmax.f32 %v436, %v497
      %v539 = vmax.f32 %v439, %v499
      %v540 = vld [vmem:[%s2] sm:$0x3]
      %v541 = vld [vmem:[%s2 + $0x2] sm:$0x3]
      %v542 = vld [vmem:[%s2 + $0x4] sm:$0x3]
      %v543 = vld [vmem:[%s2 + $0x6] sm:$0x3]
      %v544 = vld [vmem:[%s2 + $0x8] sm:$0x3]
      %v545 = vld [vmem:[%s2 + $0xa] sm:$0x3]
      %v546 = vld [vmem:[%s2 + $0xc] sm:$0x3]
      %v547 = vld [vmem:[%s2 + $0xe] sm:$0x3]
      %v548 = vld [vmem:[%s2 + $0x10] sm:$0x3]
      %v549 = vpack.c.bf16 %v522, %v520
      %v550 = vpack.c.bf16 %v526, %v524
      %v551 = vpack.c.bf16 %v530, %v528
      %v552 = vpack.c.bf16 %v534, %v532
      %vm569 = vcmask 1046528
      %v570 = vrot.slane %v520, 1
      %v571 = vrot.slane %v521, 1
      %v572 = vsel %vm569, %v570, %v571
      %v573 = vrot.slane %v522, 1
      %v574 = vrot.slane %v523, 1
      %v575 = vsel %vm569, %v573, %v574
      %v576 = vrot.slane %v524, 1
      %v577 = vrot.slane %v525, 1
      %v578 = vsel %vm569, %v576, %v577
      %v579 = vrot.slane %v526, 1
      %v580 = vrot.slane %v527, 1
      %v581 = vsel %vm569, %v579, %v580
      %v582 = vrot.slane %v528, 1
      %v583 = vrot.slane %v529, 1
      %v584 = vsel %vm569, %v582, %v583
      %v585 = vrot.slane %v530, 1
      %v586 = vrot.slane %v531, 1
      %v587 = vsel %vm569, %v585, %v586
      %v588 = vrot.slane %v532, 1
      %v589 = vrot.slane %v533, 1
      %v590 = vsel %vm569, %v588, %v589
      %v591 = vrot.slane %v534, 1
      %v592 = vrot.slane %v535, 1
      %v593 = vsel %vm569, %v591, %v592
      %v602 = vpack.c.bf16 %v575, %v572
      %v603 = vpack.c.bf16 %v581, %v578
      %v604 = vpack.c.bf16 %v587, %v584
      %v605 = vpack.c.bf16 %v593, %v590
      %vm606 = vcmask 31744
      %v608 = vsel %vm606, %v602, 0
      %v611 = vsel %vm606, %v603, 0
      %v614 = vsel %vm606, %v604, 0
      %v617 = vsel %vm606, %v605, 0
      %vm619 = vcmask 1041408
      %v621 = vsel %vm619, %v541, 0
      %623 = vmatprep.subr.bf16.mxu0 0
      %624 = vmatpush1.bf16.msra.mxu0 %v621
      %625 = vmatprep.subr.bf16.mxu0 0
      %626 = vmatpush1.bf16.msra.mxu0 0
      %627 = vmatprep.subr.bf16.mxu0 0
      %628 = vmatpush1.bf16.msra.mxu0 0
      %629 = vmatprep.subr.bf16.mxu0 0
      %630 = vmatpush1.bf16.msra.mxu0 0
      %631 = vmatprep.subr.bf16.mxu0 0
      %632 = vmatpush1.bf16.msra.mxu0 0
      %633 = vmatprep.subr.bf16.mxu0 0
      %634 = vmatpush1.bf16.msra.mxu0 0
      %635 = vmatprep.subr.bf16.mxu0 0
      %636 = vmatpush1.bf16.msra.mxu0 0
      %637 = vmatprep.subr.bf16.mxu0 0
      %638 = vmatpush1.bf16.msra.mxu0 0
      %639 = vmatprep.subr.bf16.mxu0 0
      %640 = vmatpush1.bf16.msra.mxu0 0
      %641 = vmatprep.subr.bf16.mxu0 0
      %642 = vmatpush1.bf16.msra.mxu0 0
      %643 = vmatprep.subr.bf16.mxu0 0
      %644 = vmatpush1.bf16.msra.mxu0 0
      %645 = vmatprep.subr.bf16.mxu0 0
      %646 = vmatpush1.bf16.msra.mxu0 0
      %647 = vmatprep.subr.bf16.mxu0 0
      %648 = vmatpush1.bf16.msra.mxu0 0
      %649 = vmatprep.subr.bf16.mxu0 0
      %650 = vmatpush1.bf16.msra.mxu0 0
      %651 = vmatprep.subr.bf16.mxu0 0
      %652 = vmatpush1.bf16.msra.mxu0 0
      %653 = vmatprep.subr.bf16.mxu0 0
      %654 = vmatpush1.bf16.msra.mxu0 0
      %655 = vmatprep.mubr.bf16.mxu0 0
      %656 = vmatmul.mubr.bf16.gmra.mrb[0].mxu0 %v608
      %v657 = vpop.f32.mrb[0].mxu0
      %v658 = vadd.f32 0.0, %v657
      %v659 = vpop.f32.mrb[0].mxu0
      %v660 = vpop.f32.mrb[0].mxu0
      %v661 = vadd.f32 0.0, %v660
      %v662 = vpop.f32.mrb[0].mxu0
      %663 = vmatprep.mubr.bf16.mxu0 0
      %664 = vmatmul.mubr.bf16.gmra.mrb[0].mxu0 %v611
      %v665 = vpop.f32.mrb[0].mxu0
      %v666 = vadd.f32 0.0, %v665
      %v667 = vpop.f32.mrb[0].mxu0
      %v668 = vpop.f32.mrb[0].mxu0
      %v669 = vadd.f32 0.0, %v668
      %v670 = vpop.f32.mrb[0].mxu0
      %671 = vmatprep.mubr.bf16.mxu0 0
      %672 = vmatmul.mubr.bf16.gmra.mrb[0].mxu0 %v614
      %v673 = vpop.f32.mrb[0].mxu0
      %v674 = vadd.f32 0.0, %v673
      %v675 = vpop.f32.mrb[0].mxu0
      %v676 = vpop.f32.mrb[0].mxu0
      %v677 = vadd.f32 0.0, %v676
      %v678 = vpop.f32.mrb[0].mxu0
      %679 = vmatprep.mubr.bf16.mxu0 0
      %680 = vmatmul.mubr.bf16.gmra.mrb[0].mxu0 %v617
      %v681 = vpop.f32.mrb[0].mxu0
      %v682 = vadd.f32 0.0, %v681
      %v683 = vpop.f32.mrb[0].mxu0
      %v684 = vpop.f32.mrb[0].mxu0
      %v685 = vadd.f32 0.0, %v684
      %v686 = vpop.f32.mrb[0].mxu0
      %687 = vdwg.mxu0
      %v689 = vsel %vm606, %v549, 0
      %v692 = vsel %vm606, %v550, 0
      %v695 = vsel %vm606, %v551, 0
      %v698 = vsel %vm606, %v552, 0
      %v701 = vsel %vm619, %v540, 0
      %703 = vmatprep.subr.bf16.mxu0 0
      %704 = vmatpush1.bf16.msra.mxu0 %v701
      %705 = vmatprep.subr.bf16.mxu0 0
      %706 = vmatpush1.bf16.msra.mxu0 0
      %707 = vmatprep.subr.bf16.mxu0 0
      %708 = vmatpush1.bf16.msra.mxu0 0
      %709 = vmatprep.subr.bf16.mxu0 0
      %710 = vmatpush1.bf16.msra.mxu0 0
      %711 = vmatprep.subr.bf16.mxu0 0
      %712 = vmatpush1.bf16.msra.mxu0 0
      %713 = vmatprep.subr.bf16.mxu0 0
      %714 = vmatpush1.bf16.msra.mxu0 0
      %715 = vmatprep.subr.bf16.mxu0 0
      %716 = vmatpush1.bf16.msra.mxu0 0
      %717 = vmatprep.subr.bf16.mxu0 0
      %718 = vmatpush1.bf16.msra.mxu0 0
      %719 = vmatprep.subr.bf16.mxu0 0
      %720 = vmatpush1.bf16.msra.mxu0 0
      %721 = vmatprep.subr.bf16.mxu0 0
      %722 = vmatpush1.bf16.msra.mxu0 0
      %723 = vmatprep.subr.bf16.mxu0 0
      %724 = vmatpush1.bf16.msra.mxu0 0
      %725 = vmatprep.subr.bf16.mxu0 0
      %726 = vmatpush1.bf16.msra.mxu0 0
      %727 = vmatprep.subr.bf16.mxu0 0
      %728 = vmatpush1.bf16.msra.mxu0 0
      %729 = vmatprep.subr.bf16.mxu0 0
      %730 = vmatpush1.bf16.msra.mxu0 0
      %731 = vmatprep.subr.bf16.mxu0 0
      %732 = vmatpush1.bf16.msra.mxu0 0
      %733 = vmatprep.subr.bf16.mxu0 0
      %734 = vmatpush1.bf16.msra.mxu0 0
      %735 = vmatprep.mubr.bf16.mxu0 0
      %736 = vmatmul.mubr.bf16.gmra.mrb[0].mxu0 %v689
      %v737 = vpop.f32.mrb[0].mxu0
      %v738 = vadd.f32 %v658, %v737
      %v739 = vpop.f32.mrb[0].mxu0
      %v740 = vpop.f32.mrb[0].mxu0
      %v741 = vadd.f32 %v661, %v740
      %v742 = vpop.f32.mrb[0].mxu0
      %743 = vmatprep.mubr.bf16.mxu0 0
      %744 = vmatmul.mubr.bf16.gmra.mrb[0].mxu0 %v692
      %v745 = vpop.f32.mrb[0].mxu0
      %v746 = vadd.f32 %v666, %v745
      %v747 = vpop.f32.mrb[0].mxu0
      %v748 = vpop.f32.mrb[0].mxu0
      %v749 = vadd.f32 %v669, %v748
      %v750 = vpop.f32.mrb[0].mxu0
      %751 = vmatprep.mubr.bf16.mxu0 0
      %752 = vmatmul.mubr.bf16.gmra.mrb[0].mxu0 %v695
      %v753 = vpop.f32.mrb[0].mxu0
      %v754 = vadd.f32 %v674, %v753
      %v755 = vpop.f32.mrb[0].mxu0
      %v756 = vpop.f32.mrb[0].mxu0
      %v757 = vadd.f32 %v677, %v756
      %v758 = vpop.f32.mrb[0].mxu0
      %759 = vmatprep.mubr.bf16.mxu0 0
      %760 = vmatmul.mubr.bf16.gmra.mrb[0].mxu0 %v698
      %v761 = vpop.f32.mrb[0].mxu0
      %v762 = vadd.f32 %v682, %v761
      %v763 = vpop.f32.mrb[0].mxu0
      %v764 = vpop.f32.mrb[0].mxu0
      %v765 = vadd.f32 %v685, %v764
      %v766 = vpop.f32.mrb[0].mxu0
      %767 = vdwg.mxu0
      %vm768 = vcmask 1045504
      %v769 = vrot.slane %v520, 2
      %v770 = vrot.slane %v521, 2
      %v771 = vsel %vm768, %v769, %v770
      %v772 = vrot.slane %v522, 2
      %v773 = vrot.slane %v523, 2
      %v774 = vsel %vm768, %v772, %v773
      %v775 = vrot.slane %v524, 2
      %v776 = vrot.slane %v525, 2
      %v777 = vsel %vm768, %v775, %v776
      %v778 = vrot.slane %v526, 2
      %v779 = vrot.slane %v527, 2
      %v780 = vsel %vm768, %v778, %v779
      %v781 = vrot.slane %v528, 2
      %v782 = vrot.slane %v529, 2
      %v783 = vsel %vm768, %v781, %v782
      %v784 = vrot.slane %v530, 2
      %v785 = vrot.slane %v531, 2
      %v786 = vsel %vm768, %v784, %v785
      %v787 = vrot.slane %v532, 2
      %v788 = vrot.slane %v533, 2
      %v789 = vsel %vm768, %v787, %v788
      %v790 = vrot.slane %v534, 2
      %v791 = vrot.slane %v535, 2
      %v792 = vsel %vm768, %v790, %v791
      %v801 = vpack.c.bf16 %v774, %v771
      %v802 = vpack.c.bf16 %v780, %v777
      %v803 = vpack.c.bf16 %v786, %v783
      %v804 = vpack.c.bf16 %v792, %v789
      %v806 = vsel %vm606, %v801, 0
      %v809 = vsel %vm606, %v802, 0
      %v812 = vsel %vm606, %v803, 0
      %v815 = vsel %vm606, %v804, 0
      %v818 = vsel %vm619, %v542, 0
      %820 = vmatprep.subr.bf16.mxu0 0
      %821 = vmatpush1.bf16.msra.mxu0 %v818
      %822 = vmatprep.subr.bf16.mxu0 0
      %823 = vmatpush1.bf16.msra.mxu0 0
      %824 = vmatprep.subr.bf16.mxu0 0
      %825 = vmatpush1.bf16.msra.mxu0 0
      %826 = vmatprep.subr.bf16.mxu0 0
      %827 = vmatpush1.bf16.msra.mxu0 0
      %828 = vmatprep.subr.bf16.mxu0 0
      %829 = vmatpush1.bf16.msra.mxu0 0
      %830 = vmatprep.subr.bf16.mxu0 0
      %831 = vmatpush1.bf16.msra.mxu0 0
      %832 = vmatprep.subr.bf16.mxu0 0
      %833 = vmatpush1.bf16.msra.mxu0 0
      %834 = vmatprep.subr.bf16.mxu0 0
      %835 = vmatpush1.bf16.msra.mxu0 0
      %836 = vmatprep.subr.bf16.mxu0 0
      %837 = vmatpush1.bf16.msra.mxu0 0
      %838 = vmatprep.subr.bf16.mxu0 0
      %839 = vmatpush1.bf16.msra.mxu0 0
      %840 = vmatprep.subr.bf16.mxu0 0
      %841 = vmatpush1.bf16.msra.mxu0 0
      %842 = vmatprep.subr.bf16.mxu0 0
      %843 = vmatpush1.bf16.msra.mxu0 0
      %844 = vmatprep.subr.bf16.mxu0 0
      %845 = vmatpush1.bf16.msra.mxu0 0
      %846 = vmatprep.subr.bf16.mxu0 0
      %847 = vmatpush1.bf16.msra.mxu0 0
      %848 = vmatprep.subr.bf16.mxu0 0
      %849 = vmatpush1.bf16.msra.mxu0 0
      %850 = vmatprep.subr.bf16.mxu0 0
      %851 = vmatpush1.bf16.msra.mxu0 0
      %852 = vmatprep.mubr.bf16.mxu0 0
      %853 = vmatmul.mubr.bf16.gmra.mrb[0].mxu0 %v806
      %v854 = vpop.f32.mrb[0].mxu0
      %v855 = vadd.f32 0.0, %v854
      %v856 = vpop.f32.mrb[0].mxu0
      %v857 = vpop.f32.mrb[0].mxu0
      %v858 = vadd.f32 0.0, %v857
      %v859 = vpop.f32.mrb[0].mxu0
      %860 = vmatprep.mubr.bf16.mxu0 0
      %861 = vmatmul.mubr.bf16.gmra.mrb[0].mxu0 %v809
      %v862 = vpop.f32.mrb[0].mxu0
      %v863 = vadd.f32 0.0, %v862
      %v864 = vpop.f32.mrb[0].mxu0
      %v865 = vpop.f32.mrb[0].mxu0
      %v866 = vadd.f32 0.0, %v865
      %v867 = vpop.f32.mrb[0].mxu0
      %868 = vmatprep.mubr.bf16.mxu0 0
      %869 = vmatmul.mubr.bf16.gmra.mrb[0].mxu0 %v812
      %v870 = vpop.f32.mrb[0].mxu0
      %v871 = vadd.f32 0.0, %v870
      %v872 = vpop.f32.mrb[0].mxu0
      %v873 = vpop.f32.mrb[0].mxu0
      %v874 = vadd.f32 0.0, %v873
      %v875 = vpop.f32.mrb[0].mxu0
      %876 = vmatprep.mubr.bf16.mxu0 0
      %877 = vmatmul.mubr.bf16.gmra.mrb[0].mxu0 %v815
      %v878 = vpop.f32.mrb[0].mxu0
      %v879 = vadd.f32 0.0, %v878
      %v880 = vpop.f32.mrb[0].mxu0
      %v881 = vpop.f32.mrb[0].mxu0
      %v882 = vadd.f32 0.0, %v881
      %v883 = vpop.f32.mrb[0].mxu0
      %884 = vdwg.mxu0
      %v885 = vadd.f32 %v738, %v855
      %v886 = vadd.f32 %v741, %v858
      %v887 = vadd.f32 %v746, %v863
      %v888 = vadd.f32 %v749, %v866
      %v889 = vadd.f32 %v754, %v871
      %v890 = vadd.f32 %v757, %v874
      %v891 = vadd.f32 %v762, %v879
      %v892 = vadd.f32 %v765, %v882
      %v893 = vpack.c.bf16 %v524, %v522
      %v894 = vpack.c.bf16 %v528, %v526
      %v895 = vpack.c.bf16 %v532, %v530
      %v896 = vpack.c.bf16 %v536, %v534
      %v898 = vsel %vm606, %v893, 0
      %v901 = vsel %vm606, %v894, 0
      %v904 = vsel %vm606, %v895, 0
      %v907 = vsel %vm606, %v896, 0
      %v910 = vsel %vm619, %v543, 0
      %912 = vmatprep.subr.bf16.mxu0 0
      %913 = vmatpush1.bf16.msra.mxu0 %v910
      %914 = vmatprep.subr.bf16.mxu0 0
      %915 = vmatpush1.bf16.msra.mxu0 0
      %916 = vmatprep.subr.bf16.mxu0 0
      %917 = vmatpush1.bf16.msra.mxu0 0
      %918 = vmatprep.subr.bf16.mxu0 0
      %919 = vmatpush1.bf16.msra.mxu0 0
      %920 = vmatprep.subr.bf16.mxu0 0
      %921 = vmatpush1.bf16.msra.mxu0 0
      %922 = vmatprep.subr.bf16.mxu0 0
      %923 = vmatpush1.bf16.msra.mxu0 0
      %924 = vmatprep.subr.bf16.mxu0 0
      %925 = vmatpush1.bf16.msra.mxu0 0
      %926 = vmatprep.subr.bf16.mxu0 0
      %927 = vmatpush1.bf16.msra.mxu0 0
      %928 = vmatprep.subr.bf16.mxu0 0
      %929 = vmatpush1.bf16.msra.mxu0 0
      %930 = vmatprep.subr.bf16.mxu0 0
      %931 = vmatpush1.bf16.msra.mxu0 0
      %932 = vmatprep.subr.bf16.mxu0 0
      %933 = vmatpush1.bf16.msra.mxu0 0
      %934 = vmatprep.subr.bf16.mxu0 0
      %935 = vmatpush1.bf16.msra.mxu0 0
      %936 = vmatprep.subr.bf16.mxu0 0
      %937 = vmatpush1.bf16.msra.mxu0 0
      %938 = vmatprep.subr.bf16.mxu0 0
      %939 = vmatpush1.bf16.msra.mxu0 0
      %940 = vmatprep.subr.bf16.mxu0 0
      %941 = vmatpush1.bf16.msra.mxu0 0
      %942 = vmatprep.subr.bf16.mxu0 0
      %943 = vmatpush1.bf16.msra.mxu0 0
      %944 = vmatprep.mubr.bf16.mxu0 0
      %945 = vmatmul.mubr.bf16.gmra.mrb[0].mxu0 %v898
      %v946 = vpop.f32.mrb[0].mxu0
      %v947 = vadd.f32 0.0, %v946
      %v948 = vpop.f32.mrb[0].mxu0
      %v949 = vpop.f32.mrb[0].mxu0
      %v950 = vadd.f32 0.0, %v949
      %v951 = vpop.f32.mrb[0].mxu0
      %952 = vmatprep.mubr.bf16.mxu0 0
      %953 = vmatmul.mubr.bf16.gmra.mrb[0].mxu0 %v901
      %v954 = vpop.f32.mrb[0].mxu0
      %v955 = vadd.f32 0.0, %v954
      %v956 = vpop.f32.mrb[0].mxu0
      %v957 = vpop.f32.mrb[0].mxu0
      %v958 = vadd.f32 0.0, %v957
      %v959 = vpop.f32.mrb[0].mxu0
      %960 = vmatprep.mubr.bf16.mxu0 0
      %961 = vmatmul.mubr.bf16.gmra.mrb[0].mxu0 %v904
      %v962 = vpop.f32.mrb[0].mxu0
      %v963 = vadd.f32 0.0, %v962
      %v964 = vpop.f32.mrb[0].mxu0
      %v965 = vpop.f32.mrb[0].mxu0
      %v966 = vadd.f32 0.0, %v965
      %v967 = vpop.f32.mrb[0].mxu0
      %968 = vmatprep.mubr.bf16.mxu0 0
      %969 = vmatmul.mubr.bf16.gmra.mrb[0].mxu0 %v907
      %v970 = vpop.f32.mrb[0].mxu0
      %v971 = vadd.f32 0.0, %v970
      %v972 = vpop.f32.mrb[0].mxu0
      %v973 = vpop.f32.mrb[0].mxu0
      %v974 = vadd.f32 0.0, %v973
      %v975 = vpop.f32.mrb[0].mxu0
      %976 = vdwg.mxu0
      %v977 = vadd.f32 %v885, %v947
      %v978 = vadd.f32 %v886, %v950
      %v979 = vadd.f32 %v887, %v955
      %v980 = vadd.f32 %v888, %v958
      %v981 = vadd.f32 %v889, %v963
      %v982 = vadd.f32 %v890, %v966
      %v983 = vadd.f32 %v891, %v971
      %v984 = vadd.f32 %v892, %v974
      %v987 = vrot.slane %v536, 1
      %v988 = vrot.slane %v537, 1
      %v989 = vsel %vm569, %v987, %v988
      %v991 = vpack.c.bf16 %v578, %v575
      %v992 = vpack.c.bf16 %v584, %v581
      %v993 = vpack.c.bf16 %v590, %v587
      %v994 = vpack.c.bf16 %v989, %v593
      %v996 = vsel %vm606, %v991, 0
      %v999 = vsel %vm606, %v992, 0
      %v1002 = vsel %vm606, %v993, 0
      %v1005 = vsel %vm606, %v994, 0
      %v1008 = vsel %vm619, %v544, 0
      %1010 = vmatprep.subr.bf16.mxu0 0
      %1011 = vmatpush1.bf16.msra.mxu0 %v1008
      %1012 = vmatprep.subr.bf16.mxu0 0
      %1013 = vmatpush1.bf16.msra.mxu0 0
      %1014 = vmatprep.subr.bf16.mxu0 0
      %1015 = vmatpush1.bf16.msra.mxu0 0
      %1016 = vmatprep.subr.bf16.mxu0 0
      %1017 = vmatpush1.bf16.msra.mxu0 0
      %1018 = vmatprep.subr.bf16.mxu0 0
      %1019 = vmatpush1.bf16.msra.mxu0 0
      %1020 = vmatprep.subr.bf16.mxu0 0
      %1021 = vmatpush1.bf16.msra.mxu0 0
      %1022 = vmatprep.subr.bf16.mxu0 0
      %1023 = vmatpush1.bf16.msra.mxu0 0
      %1024 = vmatprep.subr.bf16.mxu0 0
      %1025 = vmatpush1.bf16.msra.mxu0 0
      %1026 = vmatprep.subr.bf16.mxu0 0
      %1027 = vmatpush1.bf16.msra.mxu0 0
      %1028 = vmatprep.subr.bf16.mxu0 0
      %1029 = vmatpush1.bf16.msra.mxu0 0
      %1030 = vmatprep.subr.bf16.mxu0 0
      %1031 = vmatpush1.bf16.msra.mxu0 0
      %1032 = vmatprep.subr.bf16.mxu0 0
      %1033 = vmatpush1.bf16.msra.mxu0 0
      %1034 = vmatprep.subr.bf16.mxu0 0
      %1035 = vmatpush1.bf16.msra.mxu0 0
      %1036 = vmatprep.subr.bf16.mxu0 0
      %1037 = vmatpush1.bf16.msra.mxu0 0
      %1038 = vmatprep.subr.bf16.mxu0 0
      %1039 = vmatpush1.bf16.msra.mxu0 0
      %1040 = vmatprep.subr.bf16.mxu0 0
      %1041 = vmatpush1.bf16.msra.mxu0 0
      %1042 = vmatprep.mubr.bf16.mxu0 0
      %1043 = vmatmul.mubr.bf16.gmra.mrb[0].mxu0 %v996
      %v1044 = vpop.f32.mrb[0].mxu0
      %v1045 = vadd.f32 0.0, %v1044
      %v1046 = vpop.f32.mrb[0].mxu0
      %v1047 = vpop.f32.mrb[0].mxu0
      %v1048 = vadd.f32 0.0, %v1047
      %v1049 = vpop.f32.mrb[0].mxu0
      %1050 = vmatprep.mubr.bf16.mxu0 0
      %1051 = vmatmul.mubr.bf16.gmra.mrb[0].mxu0 %v999
      %v1052 = vpop.f32.mrb[0].mxu0
      %v1053 = vadd.f32 0.0, %v1052
      %v1054 = vpop.f32.mrb[0].mxu0
      %v1055 = vpop.f32.mrb[0].mxu0
      %v1056 = vadd.f32 0.0, %v1055
      %v1057 = vpop.f32.mrb[0].mxu0
      %1058 = vmatprep.mubr.bf16.mxu0 0
      %1059 = vmatmul.mubr.bf16.gmra.mrb[0].mxu0 %v1002
      %v1060 = vpop.f32.mrb[0].mxu0
      %v1061 = vadd.f32 0.0, %v1060
      %v1062 = vpop.f32.mrb[0].mxu0
      %v1063 = vpop.f32.mrb[0].mxu0
      %v1064 = vadd.f32 0.0, %v1063
      %v1065 = vpop.f32.mrb[0].mxu0
      %1066 = vmatprep.mubr.bf16.mxu0 0
      %1067 = vmatmul.mubr.bf16.gmra.mrb[0].mxu0 %v1005
      %v1068 = vpop.f32.mrb[0].mxu0
      %v1069 = vadd.f32 0.0, %v1068
      %v1070 = vpop.f32.mrb[0].mxu0
      %v1071 = vpop.f32.mrb[0].mxu0
      %v1072 = vadd.f32 0.0, %v1071
      %v1073 = vpop.f32.mrb[0].mxu0
      %1074 = vdwg.mxu0
      %v1075 = vadd.f32 %v977, %v1045
      %v1076 = vadd.f32 %v978, %v1048
      %v1077 = vadd.f32 %v979, %v1053
      %v1078 = vadd.f32 %v980, %v1056
      %v1079 = vadd.f32 %v981, %v1061
      %v1080 = vadd.f32 %v982, %v1064
      %v1081 = vadd.f32 %v983, %v1069
      %v1082 = vadd.f32 %v984, %v1072
      %v1083 = vrot.slane %v536, 2
      %v1084 = vrot.slane %v537, 2
      %v1085 = vsel %vm768, %v1083, %v1084
      %v1087 = vpack.c.bf16 %v777, %v774
      %v1088 = vpack.c.bf16 %v783, %v780
      %v1089 = vpack.c.bf16 %v789, %v786
      %v1090 = vpack.c.bf16 %v1085, %v792
      %v1092 = vsel %vm606, %v1087, 0
      %v1095 = vsel %vm606, %v1088, 0
      %v1098 = vsel %vm606, %v1089, 0
      %v1101 = vsel %vm606, %v1090, 0
      %v1104 = vsel %vm619, %v545, 0
      %1106 = vmatprep.subr.bf16.mxu0 0
      %1107 = vmatpush1.bf16.msra.mxu0 %v1104
      %1108 = vmatprep.subr.bf16.mxu0 0
      %1109 = vmatpush1.bf16.msra.mxu0 0
      %1110 = vmatprep.subr.bf16.mxu0 0
      %1111 = vmatpush1.bf16.msra.mxu0 0
      %1112 = vmatprep.subr.bf16.mxu0 0
      %1113 = vmatpush1.bf16.msra.mxu0 0
      %1114 = vmatprep.subr.bf16.mxu0 0
      %1115 = vmatpush1.bf16.msra.mxu0 0
      %1116 = vmatprep.subr.bf16.mxu0 0
      %1117 = vmatpush1.bf16.msra.mxu0 0
      %1118 = vmatprep.subr.bf16.mxu0 0
      %1119 = vmatpush1.bf16.msra.mxu0 0
      %1120 = vmatprep.subr.bf16.mxu0 0
      %1121 = vmatpush1.bf16.msra.mxu0 0
      %1122 = vmatprep.subr.bf16.mxu0 0
      %1123 = vmatpush1.bf16.msra.mxu0 0
      %1124 = vmatprep.subr.bf16.mxu0 0
      %1125 = vmatpush1.bf16.msra.mxu0 0
      %1126 = vmatprep.subr.bf16.mxu0 0
      %1127 = vmatpush1.bf16.msra.mxu0 0
      %1128 = vmatprep.subr.bf16.mxu0 0
      %1129 = vmatpush1.bf16.msra.mxu0 0
      %1130 = vmatprep.subr.bf16.mxu0 0
      %1131 = vmatpush1.bf16.msra.mxu0 0
      %1132 = vmatprep.subr.bf16.mxu0 0
      %1133 = vmatpush1.bf16.msra.mxu0 0
      %1134 = vmatprep.subr.bf16.mxu0 0
      %1135 = vmatpush1.bf16.msra.mxu0 0
      %1136 = vmatprep.subr.bf16.mxu0 0
      %1137 = vmatpush1.bf16.msra.mxu0 0
      %1138 = vmatprep.mubr.bf16.mxu0 0
      %1139 = vmatmul.mubr.bf16.gmra.mrb[0].mxu0 %v1092
      %v1140 = vpop.f32.mrb[0].mxu0
      %v1141 = vadd.f32 0.0, %v1140
      %v1142 = vpop.f32.mrb[0].mxu0
      %v1143 = vpop.f32.mrb[0].mxu0
      %v1144 = vadd.f32 0.0, %v1143
      %v1145 = vpop.f32.mrb[0].mxu0
      %1146 = vmatprep.mubr.bf16.mxu0 0
      %1147 = vmatmul.mubr.bf16.gmra.mrb[0].mxu0 %v1095
      %v1148 = vpop.f32.mrb[0].mxu0
      %v1149 = vadd.f32 0.0, %v1148
      %v1150 = vpop.f32.mrb[0].mxu0
      %v1151 = vpop.f32.mrb[0].mxu0
      %v1152 = vadd.f32 0.0, %v1151
      %v1153 = vpop.f32.mrb[0].mxu0
      %1154 = vmatprep.mubr.bf16.mxu0 0
      %1155 = vmatmul.mubr.bf16.gmra.mrb[0].mxu0 %v1098
      %v1156 = vpop.f32.mrb[0].mxu0
      %v1157 = vadd.f32 0.0, %v1156
      %v1158 = vpop.f32.mrb[0].mxu0
      %v1159 = vpop.f32.mrb[0].mxu0
      %v1160 = vadd.f32 0.0, %v1159
      %v1161 = vpop.f32.mrb[0].mxu0
      %1162 = vmatprep.mubr.bf16.mxu0 0
      %1163 = vmatmul.mubr.bf16.gmra.mrb[0].mxu0 %v1101
      %v1164 = vpop.f32.mrb[0].mxu0
      %v1165 = vadd.f32 0.0, %v1164
      %v1166 = vpop.f32.mrb[0].mxu0
      %v1167 = vpop.f32.mrb[0].mxu0
      %v1168 = vadd.f32 0.0, %v1167
      %v1169 = vpop.f32.mrb[0].mxu0
      %1170 = vdwg.mxu0
      %v1171 = vadd.f32 %v1075, %v1141
      %v1172 = vadd.f32 %v1076, %v1144
      %v1173 = vadd.f32 %v1077, %v1149
      %v1174 = vadd.f32 %v1078, %v1152
      %v1175 = vadd.f32 %v1079, %v1157
      %v1176 = vadd.f32 %v1080, %v1160
      %v1177 = vadd.f32 %v1081, %v1165
      %v1178 = vadd.f32 %v1082, %v1168
      %v1179 = vpack.c.bf16 %v538, %v536
      %v1181 = vsel %vm606, %v1179, 0
      %v1184 = vsel %vm619, %v546, 0
      %1186 = vmatprep.subr.bf16.mxu0 0
      %1187 = vmatpush1.bf16.msra.mxu0 %v1184
      %1188 = vmatprep.subr.bf16.mxu0 0
      %1189 = vmatpush1.bf16.msra.mxu0 0
      %1190 = vmatprep.subr.bf16.mxu0 0
      %1191 = vmatpush1.bf16.msra.mxu0 0
      %1192 = vmatprep.subr.bf16.mxu0 0
      %1193 = vmatpush1.bf16.msra.mxu0 0
      %1194 = vmatprep.subr.bf16.mxu0 0
      %1195 = vmatpush1.bf16.msra.mxu0 0
      %1196 = vmatprep.subr.bf16.mxu0 0
      %1197 = vmatpush1.bf16.msra.mxu0 0
      %1198 = vmatprep.subr.bf16.mxu0 0
      %1199 = vmatpush1.bf16.msra.mxu0 0
      %1200 = vmatprep.subr.bf16.mxu0 0
      %1201 = vmatpush1.bf16.msra.mxu0 0
      %1202 = vmatprep.subr.bf16.mxu0 0
      %1203 = vmatpush1.bf16.msra.mxu0 0
      %1204 = vmatprep.subr.bf16.mxu0 0
      %1205 = vmatpush1.bf16.msra.mxu0 0
      %1206 = vmatprep.subr.bf16.mxu0 0
      %1207 = vmatpush1.bf16.msra.mxu0 0
      %1208 = vmatprep.subr.bf16.mxu0 0
      %1209 = vmatpush1.bf16.msra.mxu0 0
      %1210 = vmatprep.subr.bf16.mxu0 0
      %1211 = vmatpush1.bf16.msra.mxu0 0
      %1212 = vmatprep.subr.bf16.mxu0 0
      %1213 = vmatpush1.bf16.msra.mxu0 0
      %1214 = vmatprep.subr.bf16.mxu0 0
      %1215 = vmatpush1.bf16.msra.mxu0 0
      %1216 = vmatprep.subr.bf16.mxu0 0
      %1217 = vmatpush1.bf16.msra.mxu0 0
      %1218 = vmatprep.mubr.bf16.mxu0 0
      %1219 = vmatmul.mubr.bf16.gmra.mrb[0].mxu0 %v692
      %v1220 = vpop.f32.mrb[0].mxu0
      %v1221 = vadd.f32 0.0, %v1220
      %v1222 = vpop.f32.mrb[0].mxu0
      %v1223 = vpop.f32.mrb[0].mxu0
      %v1224 = vadd.f32 0.0, %v1223
      %v1225 = vpop.f32.mrb[0].mxu0
      %1226 = vmatprep.mubr.bf16.mxu0 0
      %1227 = vmatmul.mubr.bf16.gmra.mrb[0].mxu0 %v695
      %v1228 = vpop.f32.mrb[0].mxu0
      %v1229 = vadd.f32 0.0, %v1228
      %v1230 = vpop.f32.mrb[0].mxu0
      %v1231 = vpop.f32.mrb[0].mxu0
      %v1232 = vadd.f32 0.0, %v1231
      %v1233 = vpop.f32.mrb[0].mxu0
      %1234 = vmatprep.mubr.bf16.mxu0 0
      %1235 = vmatmul.mubr.bf16.gmra.mrb[0].mxu0 %v698
      %v1236 = vpop.f32.mrb[0].mxu0
      %v1237 = vadd.f32 0.0, %v1236
      %v1238 = vpop.f32.mrb[0].mxu0
      %v1239 = vpop.f32.mrb[0].mxu0
      %v1240 = vadd.f32 0.0, %v1239
      %v1241 = vpop.f32.mrb[0].mxu0
      %1242 = vmatprep.mubr.bf16.mxu0 0
      %1243 = vmatmul.mubr.bf16.gmra.mrb[0].mxu0 %v1181
      %v1244 = vpop.f32.mrb[0].mxu0
      %v1245 = vadd.f32 0.0, %v1244
      %v1246 = vpop.f32.mrb[0].mxu0
      %v1247 = vpop.f32.mrb[0].mxu0
      %v1248 = vadd.f32 0.0, %v1247
      %v1249 = vpop.f32.mrb[0].mxu0
      %1250 = vdwg.mxu0
      %v1251 = vadd.f32 %v1171, %v1221
      %v1252 = vadd.f32 %v1172, %v1224
      %v1253 = vadd.f32 %v1173, %v1229
      %v1254 = vadd.f32 %v1174, %v1232
      %v1255 = vadd.f32 %v1175, %v1237
      %v1256 = vadd.f32 %v1176, %v1240
      %v1257 = vadd.f32 %v1177, %v1245
      %v1258 = vadd.f32 %v1178, %v1248
      %v1261 = vrot.slane %v538, 1
      %v1262 = vrot.slane %v539, 1
      %v1263 = vsel %vm569, %v1261, %v1262
      %v1265 = vpack.c.bf16 %v1263, %v989
      %v1267 = vsel %vm606, %v1265, 0
      %v1270 = vsel %vm619, %v547, 0
      %1272 = vmatprep.subr.bf16.mxu0 0
      %1273 = vmatpush1.bf16.msra.mxu0 %v1270
      %1274 = vmatprep.subr.bf16.mxu0 0
      %1275 = vmatpush1.bf16.msra.mxu0 0
      %1276 = vmatprep.subr.bf16.mxu0 0
      %1277 = vmatpush1.bf16.msra.mxu0 0
      %1278 = vmatprep.subr.bf16.mxu0 0
      %1279 = vmatpush1.bf16.msra.mxu0 0
      %1280 = vmatprep.subr.bf16.mxu0 0
      %1281 = vmatpush1.bf16.msra.mxu0 0
      %1282 = vmatprep.subr.bf16.mxu0 0
      %1283 = vmatpush1.bf16.msra.mxu0 0
      %1284 = vmatprep.subr.bf16.mxu0 0
      %1285 = vmatpush1.bf16.msra.mxu0 0
      %1286 = vmatprep.subr.bf16.mxu0 0
      %1287 = vmatpush1.bf16.msra.mxu0 0
      %1288 = vmatprep.subr.bf16.mxu0 0
      %1289 = vmatpush1.bf16.msra.mxu0 0
      %1290 = vmatprep.subr.bf16.mxu0 0
      %1291 = vmatpush1.bf16.msra.mxu0 0
      %1292 = vmatprep.subr.bf16.mxu0 0
      %1293 = vmatpush1.bf16.msra.mxu0 0
      %1294 = vmatprep.subr.bf16.mxu0 0
      %1295 = vmatpush1.bf16.msra.mxu0 0
      %1296 = vmatprep.subr.bf16.mxu0 0
      %1297 = vmatpush1.bf16.msra.mxu0 0
      %1298 = vmatprep.subr.bf16.mxu0 0
      %1299 = vmatpush1.bf16.msra.mxu0 0
      %1300 = vmatprep.subr.bf16.mxu0 0
      %1301 = vmatpush1.bf16.msra.mxu0 0
      %1302 = vmatprep.subr.bf16.mxu0 0
      %1303 = vmatpush1.bf16.msra.mxu0 0
      %1304 = vmatprep.mubr.bf16.mxu0 0
      %1305 = vmatmul.mubr.bf16.gmra.mrb[0].mxu0 %v611
      %v1306 = vpop.f32.mrb[0].mxu0
      %v1307 = vadd.f32 0.0, %v1306
      %v1308 = vpop.f32.mrb[0].mxu0
      %v1309 = vpop.f32.mrb[0].mxu0
      %v1310 = vadd.f32 0.0, %v1309
      %v1311 = vpop.f32.mrb[0].mxu0
      %1312 = vmatprep.mubr.bf16.mxu0 0
      %1313 = vmatmul.mubr.bf16.gmra.mrb[0].mxu0 %v614
      %v1314 = vpop.f32.mrb[0].mxu0
      %v1315 = vadd.f32 0.0, %v1314
      %v1316 = vpop.f32.mrb[0].mxu0
      %v1317 = vpop.f32.mrb[0].mxu0
      %v1318 = vadd.f32 0.0, %v1317
      %v1319 = vpop.f32.mrb[0].mxu0
      %1320 = vmatprep.mubr.bf16.mxu0 0
      %1321 = vmatmul.mubr.bf16.gmra.mrb[0].mxu0 %v617
      %v1322 = vpop.f32.mrb[0].mxu0
      %v1323 = vadd.f32 0.0, %v1322
      %v1324 = vpop.f32.mrb[0].mxu0
      %v1325 = vpop.f32.mrb[0].mxu0
      %v1326 = vadd.f32 0.0, %v1325
      %v1327 = vpop.f32.mrb[0].mxu0
      %1328 = vmatprep.mubr.bf16.mxu0 0
      %1329 = vmatmul.mubr.bf16.gmra.mrb[0].mxu0 %v1267
      %v1330 = vpop.f32.mrb[0].mxu0
      %v1331 = vadd.f32 0.0, %v1330
      %v1332 = vpop.f32.mrb[0].mxu0
      %v1333 = vpop.f32.mrb[0].mxu0
      %v1334 = vadd.f32 0.0, %v1333
      %v1335 = vpop.f32.mrb[0].mxu0
      %1336 = vdwg.mxu0
      %v1337 = vadd.f32 %v1251, %v1307
      %v1338 = vadd.f32 %v1252, %v1310
      %v1339 = vadd.f32 %v1253, %v1315
      %v1340 = vadd.f32 %v1254, %v1318
      %v1341 = vadd.f32 %v1255, %v1323
      %v1342 = vadd.f32 %v1256, %v1326
      %v1343 = vadd.f32 %v1257, %v1331
      %v1344 = vadd.f32 %v1258, %v1334
      %v1345 = vrot.slane %v538, 2
      %v1346 = vrot.slane %v539, 2
      %v1347 = vsel %vm768, %v1345, %v1346
      %v1349 = vpack.c.bf16 %v1347, %v1085
      %v1351 = vsel %vm606, %v1349, 0
      %v1354 = vsel %vm619, %v548, 0
      %1356 = vmatprep.subr.bf16.mxu0 0
      %1357 = vmatpush1.bf16.msra.mxu0 %v1354
      %1358 = vmatprep.subr.bf16.mxu0 0
      %1359 = vmatpush1.bf16.msra.mxu0 0
      %1360 = vmatprep.subr.bf16.mxu0 0
      %1361 = vmatpush1.bf16.msra.mxu0 0
      %1362 = vmatprep.subr.bf16.mxu0 0
      %1363 = vmatpush1.bf16.msra.mxu0 0
      %1364 = vmatprep.subr.bf16.mxu0 0
      %1365 = vmatpush1.bf16.msra.mxu0 0
      %1366 = vmatprep.subr.bf16.mxu0 0
      %1367 = vmatpush1.bf16.msra.mxu0 0
      %1368 = vmatprep.subr.bf16.mxu0 0
      %1369 = vmatpush1.bf16.msra.mxu0 0
      %1370 = vmatprep.subr.bf16.mxu0 0
      %1371 = vmatpush1.bf16.msra.mxu0 0
      %1372 = vmatprep.subr.bf16.mxu0 0
      %1373 = vmatpush1.bf16.msra.mxu0 0
      %1374 = vmatprep.subr.bf16.mxu0 0
      %1375 = vmatpush1.bf16.msra.mxu0 0
      %1376 = vmatprep.subr.bf16.mxu0 0
      %1377 = vmatpush1.bf16.msra.mxu0 0
      %1378 = vmatprep.subr.bf16.mxu0 0
      %1379 = vmatpush1.bf16.msra.mxu0 0
      %1380 = vmatprep.subr.bf16.mxu0 0
      %1381 = vmatpush1.bf16.msra.mxu0 0
      %1382 = vmatprep.subr.bf16.mxu0 0
      %1383 = vmatpush1.bf16.msra.mxu0 0
      %1384 = vmatprep.subr.bf16.mxu0 0
      %1385 = vmatpush1.bf16.msra.mxu0 0
      %1386 = vmatprep.subr.bf16.mxu0 0
      %1387 = vmatpush1.bf16.msra.mxu0 0
      %1388 = vmatprep.mubr.bf16.mxu0 0
      %1389 = vmatmul.mubr.bf16.gmra.mrb[0].mxu0 %v809
      %v1390 = vpop.f32.mrb[0].mxu0
      %v1391 = vadd.f32 0.0, %v1390
      %v1392 = vpop.f32.mrb[0].mxu0
      %v1393 = vpop.f32.mrb[0].mxu0
      %v1394 = vadd.f32 0.0, %v1393
      %v1395 = vpop.f32.mrb[0].mxu0
      %1396 = vmatprep.mubr.bf16.mxu0 0
      %1397 = vmatmul.mubr.bf16.gmra.mrb[0].mxu0 %v812
      %v1398 = vpop.f32.mrb[0].mxu0
      %v1399 = vadd.f32 0.0, %v1398
      %v1400 = vpop.f32.mrb[0].mxu0
      %v1401 = vpop.f32.mrb[0].mxu0
      %v1402 = vadd.f32 0.0, %v1401
      %v1403 = vpop.f32.mrb[0].mxu0
      %1404 = vmatprep.mubr.bf16.mxu0 0
      %1405 = vmatmul.mubr.bf16.gmra.mrb[0].mxu0 %v815
      %v1406 = vpop.f32.mrb[0].mxu0
      %v1407 = vadd.f32 0.0, %v1406
      %v1408 = vpop.f32.mrb[0].mxu0
      %v1409 = vpop.f32.mrb[0].mxu0
      %v1410 = vadd.f32 0.0, %v1409
      %v1411 = vpop.f32.mrb[0].mxu0
      %1412 = vmatprep.mubr.bf16.mxu0 0
      %1413 = vmatmul.mubr.bf16.gmra.mrb[0].mxu0 %v1351
      %v1414 = vpop.f32.mrb[0].mxu0
      %v1415 = vadd.f32 0.0, %v1414
      %v1416 = vpop.f32.mrb[0].mxu0
      %v1417 = vpop.f32.mrb[0].mxu0
      %v1418 = vadd.f32 0.0, %v1417
      %v1419 = vpop.f32.mrb[0].mxu0
      %1420 = vdwg.mxu0
      %v1421 = vadd.f32 %v1337, %v1391
      %v1422 = vadd.f32 %v1338, %v1394
      %v1423 = vadd.f32 %v1339, %v1399
      %v1424 = vadd.f32 %v1340, %v1402
      %v1425 = vadd.f32 %v1341, %v1407
      %v1426 = vadd.f32 %v1342, %v1410
      %v1427 = vadd.f32 %v1343, %v1415
      %v1428 = vadd.f32 %v1344, %v1418
      %1429 = vst.msk [vmem:[%s328] sm:$0xff] %vm378, %v1421
      %1430 = vst.msk [vmem:[%s328 + $0x8] sm:$0xff] %vm378, %v1422
      %1431 = vst.msk [vmem:[%s328 + $0x10] sm:$0xff] %vm378, %v1423
      %1432 = vst.msk [vmem:[%s328 + $0x18] sm:$0xff] %vm378, %v1424
      %1433 = vst.msk [vmem:[%s328 + $0x20] sm:$0xff] %vm378, %v1425
      %1434 = vst.msk [vmem:[%s328 + $0x28] sm:$0xff] %vm378, %v1426
      %1435 = vst.msk [vmem:[%s328 + $0x30] sm:$0xff] %vm378, %v1427
      %1436 = vst.msk [vmem:[%s328 + $0x38] sm:$0xff] %vm378, %v1428
      %v1437 = vsel %vm378, %v1421, 0.0
      %v1438 = vsel %vm378, %v1422, 0.0
      %v1439 = vadd.f32 %v1437, %v1438
      %v1440 = vsel %vm378, %v1423, 0.0
      %v1441 = vadd.f32 %v1439, %v1440
      %v1442 = vsel %vm378, %v1424, 0.0
      %v1443 = vadd.f32 %v1441, %v1442
      %v1444 = vsel %vm378, %v1425, 0.0
      %v1445 = vadd.f32 %v1443, %v1444
      %v1446 = vsel %vm378, %v1426, 0.0
      %v1447 = vadd.f32 %v1445, %v1446
      %v1448 = vsel %vm378, %v1427, 0.0
      %v1449 = vadd.f32 %v1447, %v1448
      %v1450 = vsel %vm378, %v1428, 0.0
      %v1451 = vadd.f32 %v1449, %v1450
      %v1452 = vrot.slane %v1451, 4
      %v1453 = vadd.f32 %v1451, %v1452
      %v1454 = vrot.slane %v1453, 2
      %v1455 = vadd.f32 %v1453, %v1454
      %v1456 = vrot.slane %v1455, 1
      %v1457 = vadd.f32 %v1455, %v1456
      %vm1458 = vcmask 57344
      %1459 = vst.msk [vmem:[%s336] sm:$0x1] %vm1458, %v1457
      %v1460 = vmul.f32 %v1421, %v1421
      %v1461 = vmul.f32 %v1422, %v1422
      %v1462 = vmul.f32 %v1423, %v1423
      %v1463 = vmul.f32 %v1424, %v1424
      %v1464 = vmul.f32 %v1425, %v1425
      %v1465 = vmul.f32 %v1426, %v1426
      %v1466 = vmul.f32 %v1427, %v1427
      %v1467 = vmul.f32 %v1428, %v1428
      %v1468 = vsel %vm378, %v1460, 0.0
      %v1469 = vsel %vm378, %v1461, 0.0
      %v1470 = vadd.f32 %v1468, %v1469
      %v1471 = vsel %vm378, %v1462, 0.0
      %v1472 = vadd.f32 %v1470, %v1471
      %v1473 = vsel %vm378, %v1463, 0.0
      %v1474 = vadd.f32 %v1472, %v1473
      %v1475 = vsel %vm378, %v1464, 0.0
      %v1476 = vadd.f32 %v1474, %v1475
      %v1477 = vsel %vm378, %v1465, 0.0
      %v1478 = vadd.f32 %v1476, %v1477
      %v1479 = vsel %vm378, %v1466, 0.0
      %v1480 = vadd.f32 %v1478, %v1479
      %v1481 = vsel %vm378, %v1467, 0.0
      %v1482 = vadd.f32 %v1480, %v1481
      %v1483 = vrot.slane %v1482, 4
      %v1484 = vadd.f32 %v1482, %v1483
      %v1485 = vrot.slane %v1484, 2
      %v1486 = vadd.f32 %v1484, %v1485
      %v1487 = vrot.slane %v1486, 1
      %v1488 = vadd.f32 %v1486, %v1487
      %1489 = vst.msk [vmem:[%s336 + $0x1] sm:$0x1] %vm1458, %v1488
      %s1490 = smul.u32 8, %s21
      %p1491 = scmp.lt.s32.totalorder %s20, 1
      %s1492 = scalar_select %p1491, %s20, 1
      %p1493 = scmp.lt.s32.totalorder %s1490, 7
      %s1494 = scalar_select %p1493, %s1490, 7
      %s1495 = smul.addr %s1492, 8
      %s1496 = sadd.s32 %s1494, %s1495
      %s1497 = smul.addr %s1496, 8
      %s1498 = scalar_lea.vmem %s3, %s1497
      %p1499 = scmp.lt.s32.totalorder %s20, 1
      %s1500 = scalar_select %p1499, %s20, 1
      %p1501 = scmp.lt.s32.totalorder %s21, 0
      %s1502 = scalar_select %p1501, %s21, 0
      %s1503 = sadd.s32 %s1502, %s1500
      %s1504 = smul.addr %s1503, 2
      %s1505 = scalar_lea.vmem %s4, %s1504
      // Predicated region
      $region33: #{decode_block_forward.3} parent=31 // pred_check
        %p1506 = pneg %p129
      $region34: #{decode_block_forward.3} parent=31 // pred_check_branch
        %1508 = sbr.rel (%p1506) target = $region36
      $region35: #{decode_block_forward.3} parent=31 // pred_region
        %s1509 = smul.u32 8, %s21
      $region36: #{decode_block_forward.3} parent=31 // pred_fallthru
        _
      // Predicated region
      $region37: #{decode_block_forward.3} parent=31 // pred_check
        %p1510 = pneg %p157
      $region38: #{decode_block_forward.3} parent=31 // pred_check_branch
        %1512 = sbr.rel (%p1510) target = $region40
      $region39: #{decode_block_forward.3} parent=31 // pred_region
        _
      $region40: #{decode_block_forward.3} parent=31 // pred_fallthru
        _
    $region32: #{decode_block_forward.3} parent=5 // pred_fallthru
      _
    %p1513 = scmp.le.s32.totalorder 2, %s11
    // Predicated region
    $region41: #{decode_block_forward.3} parent=5 // pred_check
      %p1514 = pneg %p1513
    $region42: #{decode_block_forward.3} parent=5 // pred_check_branch
      %1516 = sbr.rel (%p1514) target = $region44
    $region43: #{decode_block_forward.3} parent=5 // pred_region
      %s1517 = ssub.s32 %s11, 2
      // Predicated region
      $region45: #{decode_block_forward.3} parent=43 // pred_check
        %p1518 = pneg %p135
      $region46: #{decode_block_forward.3} parent=43 // pred_check_branch
        %1520 = sbr.rel (%p1518) target = $region48
      $region47: #{decode_block_forward.3} parent=43 // pred_region
        %s1521 = smul.u32 8, %s23
        %p1522 = scmp.lt.s32.totalorder %s22, 1
        %s1523 = scalar_select %p1522, %s22, 1
        %p1524 = scmp.lt.s32.totalorder %s1521, 7
        %s1525 = scalar_select %p1524, %s1521, 7
        %s1526 = smul.addr %s1523, 8
        %s1527 = sadd.s32 %s1525, %s1526
        %s1528 = smul.addr %s1527, 8
        %s1529 = scalar_lea.vmem %s3, %s1528
      $region48: #{decode_block_forward.3} parent=43 // pred_fallthru
        _
      // Predicated region
      $region49: #{decode_block_forward.3} parent=43 // pred_check
        %p1530 = pneg %p163
      $region50: #{decode_block_forward.3} parent=43 // pred_check_branch
        %1532 = sbr.rel (%p1530) target = $region52
      $region51: #{decode_block_forward.3} parent=43 // pred_region
        %p1533 = scmp.lt.s32.totalorder %s22, 1
        %s1534 = scalar_select %p1533, %s22, 1
        %p1535 = scmp.lt.s32.totalorder %s23, 0
        %s1536 = scalar_select %p1535, %s23, 0
        %s1537 = sadd.s32 %s1536, %s1534
        %s1538 = smul.addr %s1537, 2
        %s1539 = scalar_lea.vmem %s4, %s1538
      $region52: #{decode_block_forward.3} parent=43 // pred_fallthru
        _
    $region44: #{decode_block_forward.3} parent=5 // pred_fallthru
      _
  $region6: #{decode_block_forward.3} parent=0 // loop_footer
    %s15 = sadd.s32 1, %s11
  $region7: #{decode_block_forward.3} parent=0 // loop_footer_branch
    %10 = sbr.rel target = $region3
  $region8: #{decode_block_forward.3} parent=0 // loop_exit
    _

</llo_original>
